<compile_context>
chip_gen: v7x
topology: tpu7x:2x2x1
jax: 0.10.0
libtpu: 0.0.40
codegen_flags: <defaults>
</compile_context>

<pallas_src>
import jax
import jax.numpy as jnp
from jax.experimental import pallas as pl
from jax.experimental.pallas import tpu as pltpu


def _round_up(n, m):
    return (n + m - 1) // m * m


# ---------------------------------------------------------------------------
# Fused Pallas kernel (Bblk images per grid step)
# ---------------------------------------------------------------------------
def _make_se_block_kernel(Bblk, H, W, Cp, PAD):
    HW = H * W
    OFFSETS = [(dy - 1, dx - 1) for dy in range(3) for dx in range(3)]

    def kernel(x_ref, w1_ref, b1_ref, w2_ref, b2_ref, fc1_ref, fc2_ref,
               o_ref, pad_ref, cols_ref):
        # Horizontal-border masks (zero the taps that would read across the left/right
        # image border after the flat row shift). Hoisted out of the tap loops.
        wcoord = jax.lax.broadcasted_iota(jnp.int32, (HW, Cp), 0) % W
        not_left = wcoord != 0
        not_right = wcoord != (W - 1)
        zero_tap = jnp.zeros((HW, Cp), jnp.bfloat16)
        zero_border = jnp.zeros((PAD, Cp), jnp.bfloat16)

        def build_cols():
            """Scatter the 9 shifted 3x3 taps of every image into the im2col scratch."""
            for b in range(Bblk):
                for k, (oy, ox) in enumerate(OFFSETS):
                    start = PAD + oy * W + ox                       # static offset
                    tap = pad_ref[b, start:start + HW, :]           # (HW, Cp) bf16
                    if ox == -1:
                        tap = jnp.where(not_left, tap, zero_tap)
                    elif ox == 1:
                        tap = jnp.where(not_right, tap, zero_tap)
                    cols_ref[b * HW:(b + 1) * HW, k * Cp:(k + 1) * Cp] = tap

        # ---- conv1 + folded bn1 + relu (single K = 9*Cp MXU matmul) -----------------
        for b in range(Bblk):
            pad_ref[b, :PAD, :] = zero_border          # only the border rows need zeros
            pad_ref[b, PAD + HW:, :] = zero_border
            pad_ref[b, PAD:PAD + HW, :] = x_ref[b].astype(jnp.bfloat16)
        build_cols()
        out1 = jnp.dot(cols_ref[...], w1_ref[...],
                       preferred_element_type=jnp.float32)          # (Bblk*HW, Cp) f32
        out1 = jnp.maximum(out1 + b1_ref[...], 0.0)

        # ---- conv2 + folded bn2 (conv1 output never leaves VMEM) --------------------
        out1_bf = out1.astype(jnp.bfloat16).reshape(Bblk, HW, Cp)
        for b in range(Bblk):
            pad_ref[b, PAD:PAD + HW, :] = out1_bf[b]                # borders stay zero
        build_cols()
        out2 = jnp.dot(cols_ref[...], w2_ref[...],
                       preferred_element_type=jnp.float32)          # (Bblk*HW, Cp) f32
        out2 = (out2 + b2_ref[...]).reshape(Bblk, HW, Cp)

        # ---- Squeeze-and-Excitation (per image) -------------------------------------
        y = jnp.mean(out2, axis=1)                                  # (Bblk, Cp)
        h = jnp.maximum(jnp.dot(y, fc1_ref[...],
                                preferred_element_type=jnp.float32), 0.0)
        gate = jax.nn.sigmoid(jnp.dot(h, fc2_ref[...],
                                      preferred_element_type=jnp.float32))  # (Bblk, Cp)

        # ---- gate * out + residual + relu (lane-dense f32 store) --------------------
        o_ref[...] = jnp.maximum(out2 * gate[:, None, :] + x_ref[...], 0.0)

    return kernel


# ---------------------------------------------------------------------------
# Parameter preparation (BN folding + bf16 cast), shared by kernel & reference
# ---------------------------------------------------------------------------
def _fold_bn(gamma, beta, mean, var, eps=1e-5):
    scale = gamma / jnp.sqrt(var + eps)
    bias = beta - mean * scale
    return scale, bias


def _prepare_params(params):
    s1, b1 = _fold_bn(params["bn1_gamma"], params["bn1_beta"],
                      params["bn1_mean"], params["bn1_var"])
    s2, b2 = _fold_bn(params["bn2_gamma"], params["bn2_beta"],
                      params["bn2_mean"], params["bn2_var"])
    w1f = (params["w1"] * s1).astype(jnp.bfloat16)   # (3,3,Cin,C), bn1 scale folded in
    w2f = (params["w2"] * s2).astype(jnp.bfloat16)   # (3,3,C,C),  bn2 scale folded in
    return w1f, b1.reshape(1, -1).astype(jnp.float32), \
           w2f, b2.reshape(1, -1).astype(jnp.float32)


# ---------------------------------------------------------------------------
# Public wrapper: NCHW in, NCHW out
# ---------------------------------------------------------------------------
def se_basic_block_forward(x_nchw, params, *, bblk=1):
    x = jnp.transpose(x_nchw, (0, 2, 3, 1)).astype(jnp.float32)   # NCHW -> NHWC
    B, H, W, Cin = x.shape
    assert B % bblk == 0, "batch must be divisible by bblk"

    w1f, b1, w2f, b2 = _prepare_params(params)
    C = w1f.shape[-1]
    assert Cin == C, "stride=1 / downsample=None block requires inplanes == planes"
    hid = params["fc1_w"].shape[1]

    HW = H * W
    Cp = _round_up(C, 128)               # lane-dense channels
    HIDP = _round_up(hid, 128)           # lane-dense SE hidden dim
    PAD = _round_up(W + 1, 16)           # sublane-aligned (bf16) zero border rows

    # Zero-pad channels; padded lanes stay exactly zero through the whole block.
    def pad_conv_w(w):                   # (3,3,C,C) bf16 -> (9*Cp, Cp) bf16
        wp = jnp.zeros((3, 3, Cp, Cp), jnp.bfloat16).at[:, :, :C, :C].set(w)
        return wp.reshape(9 * Cp, Cp)

    w1k = pad_conv_w(w1f)
    w2k = pad_conv_w(w2f)
    b1p = jnp.zeros((1, Cp), jnp.float32).at[:, :C].set(b1)
    b2p = jnp.zeros((1, Cp), jnp.float32).at[:, :C].set(b2)
    fc1p = jnp.zeros((Cp, HIDP), jnp.float32).at[:C, :hid].set(
        params["fc1_w"].astype(jnp.float32))
    fc2p = jnp.zeros((HIDP, Cp), jnp.float32).at[:hid, :C].set(
        params["fc2_w"].astype(jnp.float32))

    x_flat = jnp.zeros((B, HW, Cp), jnp.float32).at[:, :, :C].set(x.reshape(B, HW, C))

    kernel = _make_se_block_kernel(bblk, H, W, Cp, PAD)

    out = pl.pallas_call(
        kernel,
        out_shape=jax.ShapeDtypeStruct((B, HW, Cp), jnp.float32),
        grid_spec=pltpu.PrefetchScalarGridSpec(
            num_scalar_prefetch=0,
            grid=(B // bblk,),
            in_specs=[
                pl.BlockSpec((bblk, HW, Cp), lambda i: (i, 0, 0)),    # activations
                pl.BlockSpec((9 * Cp, Cp), lambda i: (0, 0)),         # conv1 w (folded)
                pl.BlockSpec((1, Cp), lambda i: (0, 0)),              # bn1 bias
                pl.BlockSpec((9 * Cp, Cp), lambda i: (0, 0)),         # conv2 w (folded)
                pl.BlockSpec((1, Cp), lambda i: (0, 0)),              # bn2 bias
                pl.BlockSpec((Cp, HIDP), lambda i: (0, 0)),           # SE fc1
                pl.BlockSpec((HIDP, Cp), lambda i: (0, 0)),           # SE fc2
            ],
            out_specs=pl.BlockSpec((bblk, HW, Cp), lambda i: (i, 0, 0)),
            scratch_shapes=[
                pltpu.VMEM((bblk, HW + 2 * PAD, Cp), jnp.bfloat16),   # row-padded image
                pltpu.VMEM((bblk * HW, 9 * Cp), jnp.bfloat16),        # in-VMEM im2col
            ]),
        compiler_params=pltpu.CompilerParams(
            dimension_semantics=("parallel",)),
    )(x_flat, w1k, b1p, w2k, b2p, fc1p, fc2p)

    out = out[:, :, :C].reshape(B, H, W, C)
    return jnp.transpose(out, (0, 3, 1, 2))                          # NHWC -> NCHW


# ---------------------------------------------------------------------------
# Pure-JAX reference (same math / same bf16 conv quantization, XLA ops)
# ---------------------------------------------------------------------------
def se_basic_block_reference(x_nchw, params):
    x = jnp.transpose(x_nchw, (0, 2, 3, 1)).astype(jnp.float32)
    w1f, b1, w2f, b2 = _prepare_params(params)

    def conv3x3(v, w):
        return jax.lax.conv_general_dilated(
            v.astype(jnp.bfloat16), w, (1, 1), ((1, 1), (1, 1)),
            dimension_numbers=("NHWC", "HWIO", "NHWC"),
            preferred_element_type=jnp.float32)

    out = jnp.maximum(conv3x3(x, w1f) + b1, 0.0)
    out = conv3x3(out, w2f) + b2
    y = jnp.mean(out, axis=(1, 2))                                   # (B, C)
    h = jnp.maximum(jnp.dot(y, params["fc1_w"].astype(jnp.float32)), 0.0)
    gate = jax.nn.sigmoid(jnp.dot(h, params["fc2_w"].astype(jnp.float32)))
    out = jnp.maximum(out * gate[:, None, None, :] + x, 0.0)
    return jnp.transpose(out, (0, 3, 1, 2))


# ---------------------------------------------------------------------------
if __name__ == "__main__":
    B, C, H, W = 4, 32, 8, 8          # inplanes == planes == 32, stride=1
    reduction = 16
    hid = C // reduction              # = 2

    key = jax.random.PRNGKey(0)
    ks = jax.random.split(key, 16)
    params = {
        "w1": jax.random.normal(ks[0], (3, 3, C, C), jnp.float32) * 0.1,
        "w2": jax.random.normal(ks[1], (3, 3, C, C), jnp.float32) * 0.1,
        "bn1_gamma": jax.random.uniform(ks[2], (C,), jnp.float32, 0.5, 1.5),
        "bn1_beta": jax.random.normal(ks[3], (C,), jnp.float32) * 0.1,
        "bn1_mean": jax.random.normal(ks[4], (C,), jnp.float32) * 0.1,
        "bn1_var": jax.random.uniform(ks[5], (C,), jnp.float32, 0.5, 1.5),
        "bn2_gamma": jax.random.uniform(ks[6], (C,), jnp.float32, 0.5, 1.5),
        "bn2_beta": jax.random.normal(ks[7], (C,), jnp.float32) * 0.1,
        "bn2_mean": jax.random.normal(ks[8], (C,), jnp.float32) * 0.1,
        "bn2_var": jax.random.uniform(ks[9], (C,), jnp.float32, 0.5, 1.5),
        "fc1_w": jax.random.normal(ks[10], (C, hid), jnp.float32) * 0.2,
        "fc2_w": jax.random.normal(ks[11], (hid, C), jnp.float32) * 0.2,
    }
    x = jax.random.normal(ks[12], (B, C, H, W), jnp.float32)

    # bblk=2: M = 2*64 = 128 rows per MXU matmul; grid=(2,) keeps 2 cores busy on v7x.
    out = jax.block_until_ready(se_basic_block_forward(x, params, bblk=2))
    ref = jax.block_until_ready(se_basic_block_reference(x, params))

    assert out.shape == (B, C, H, W), out.shape
    if not jnp.allclose(out, ref, atol=1e-2, rtol=1e-2):
        raise AssertionError(
            f"mismatch: max abs diff = {float(jnp.max(jnp.abs(out - ref)))}")
    print("KERNEL_OK")
</pallas_src>

<mosaic_0001>
module attributes {stable_mosaic.version = 11 : i64} {
  func.func @kernel(%arg0: i32, %arg1: memref<2x64x128xf32, #tpu.memory_space<vmem>>, %arg2: memref<1152x128xbf16, #tpu.memory_space<vmem>>, %arg3: memref<1x128xf32, #tpu.memory_space<vmem>>, %arg4: memref<1152x128xbf16, #tpu.memory_space<vmem>>, %arg5: memref<1x128xf32, #tpu.memory_space<vmem>>, %arg6: memref<128x128xf32, #tpu.memory_space<vmem>>, %arg7: memref<128x128xf32, #tpu.memory_space<vmem>>, %arg8: memref<2x64x128xf32, #tpu.memory_space<vmem>>, %arg9: memref<2x96x128xbf16, #tpu.memory_space<vmem>>, %arg10: memref<128x1152xbf16, #tpu.memory_space<vmem>>) attributes {dimension_semantics = [#tpu.dimension_semantics<parallel>], iteration_bounds = array<i64: 2>, scalar_prefetch = 0 : i64, scratch_operands = 2 : i64, tpu.core_type = #tpu.core_type<tc>, window_params = [{transform_indices = @transform_0, window_bounds = array<i64: 2, 64, 128>}, {pipeline_mode = #tpu.pipeline_mode<synchronous>, transform_indices = @transform_1, window_bounds = array<i64: 1152, 128>}, {pipeline_mode = #tpu.pipeline_mode<synchronous>, transform_indices = @transform_2, window_bounds = array<i64: 1, 128>}, {pipeline_mode = #tpu.pipeline_mode<synchronous>, transform_indices = @transform_3, window_bounds = array<i64: 1152, 128>}, {pipeline_mode = #tpu.pipeline_mode<synchronous>, transform_indices = @transform_4, window_bounds = array<i64: 1, 128>}, {pipeline_mode = #tpu.pipeline_mode<synchronous>, transform_indices = @transform_5, window_bounds = array<i64: 128, 128>}, {pipeline_mode = #tpu.pipeline_mode<synchronous>, transform_indices = @transform_6, window_bounds = array<i64: 128, 128>}, {transform_indices = @transform_7, window_bounds = array<i64: 2, 64, 128>}]} {
    %0 = tpu.iota {dimensions = array<i32: 0>} : vector<64x128xi32>
    %c8_i32 = arith.constant 8 : i32
    %c0_i32 = arith.constant 0 : i32
    %1 = arith.cmpi eq, %c8_i32, %c0_i32 : i32
    %c1_i32 = arith.constant 1 : i32
    %2 = arith.select %1, %c1_i32, %c8_i32 : i32
    %3 = vector.broadcast %2 : i32 to vector<64x128xi32>
    %4 = arith.remsi %0, %3 : vector<64x128xi32>
    %c0_i32_0 = arith.constant 0 : i32
    %5 = vector.broadcast %c0_i32_0 : i32 to vector<64x128xi32>
    %6 = arith.cmpi ne, %4, %5 : vector<64x128xi32>
    %c0_i32_1 = arith.constant 0 : i32
    %7 = vector.broadcast %c0_i32_1 : i32 to vector<64x128xi32>
    %8 = arith.cmpi slt, %4, %7 : vector<64x128xi32>
    %c0_i32_2 = arith.constant 0 : i32
    %9 = arith.cmpi slt, %2, %c0_i32_2 : i32
    %10 = vector.broadcast %9 : i1 to vector<64x128xi1>
    %11 = vector.broadcast %10 : vector<64x128xi1> to vector<64x128xi1>
    %12 = arith.xori %8, %11 : vector<64x128xi1>
    %13 = arith.andi %12, %6 : vector<64x128xi1>
    %14 = vector.broadcast %2 : i32 to vector<64x128xi32>
    %15 = arith.addi %4, %14 : vector<64x128xi32>
    %16 = arith.select %13, %15, %4 : vector<64x128xi1>, vector<64x128xi32>
    %c0_i32_3 = arith.constant 0 : i32
    %17 = vector.broadcast %c0_i32_3 : i32 to vector<64x128xi32>
    %18 = arith.cmpi ne, %16, %17 : vector<64x128xi32>
    %c7_i32 = arith.constant 7 : i32
    %19 = vector.broadcast %c7_i32 : i32 to vector<64x128xi32>
    %20 = arith.cmpi ne, %16, %19 : vector<64x128xi32>
    %cst = arith.constant 0.000000e+00 : bf16
    %21 = vector.broadcast %cst : bf16 to vector<64x128xbf16>
    %cst_4 = arith.constant 0.000000e+00 : bf16
    %22 = vector.broadcast %cst_4 : bf16 to vector<16x128xbf16>
    %c0 = arith.constant 0 : index
    %c0_5 = arith.constant 0 : index
    %c0_6 = arith.constant 0 : index
    %23 = vector.load %arg9[%c0, %c0_5, %c0_6] : memref<2x96x128xbf16, #tpu.memory_space<vmem>>, vector<1x16x128xbf16>
    %24 = vector.shape_cast %23 : vector<1x16x128xbf16> to vector<16x128xbf16>
    %25 = vector.shape_cast %22 : vector<16x128xbf16> to vector<1x16x128xbf16>
    tpu.vector_store %arg9[%c0, %c0_5, %c0_6], %25 {strides = array<i32>} : memref<2x96x128xbf16, #tpu.memory_space<vmem>>, vector<1x16x128xbf16>,
    %c0_7 = arith.constant 0 : index
    %c80 = arith.constant 80 : index
    %c0_8 = arith.constant 0 : index
    %26 = vector.load %arg9[%c0_7, %c80, %c0_8] : memref<2x96x128xbf16, #tpu.memory_space<vmem>>, vector<1x16x128xbf16>
    %27 = vector.shape_cast %26 : vector<1x16x128xbf16> to vector<16x128xbf16>
    %28 = vector.shape_cast %22 : vector<16x128xbf16> to vector<1x16x128xbf16>
    tpu.vector_store %arg9[%c0_7, %c80, %c0_8], %28 {strides = array<i32>} : memref<2x96x128xbf16, #tpu.memory_space<vmem>>, vector<1x16x128xbf16>,
    %c0_9 = arith.constant 0 : index
    %c0_10 = arith.constant 0 : index
    %c0_11 = arith.constant 0 : index
    %29 = vector.load %arg1[%c0_9, %c0_10, %c0_11] : memref<2x64x128xf32, #tpu.memory_space<vmem>>, vector<1x64x128xf32>
    %30 = vector.shape_cast %29 : vector<1x64x128xf32> to vector<64x128xf32>
    %31 = arith.truncf %30 : vector<64x128xf32> to vector<64x128xbf16>
    %c0_12 = arith.constant 0 : index
    %c16 = arith.constant 16 : index
    %c0_13 = arith.constant 0 : index
    %32 = vector.load %arg9[%c0_12, %c16, %c0_13] : memref<2x96x128xbf16, #tpu.memory_space<vmem>>, vector<1x64x128xbf16>
    %33 = vector.shape_cast %32 : vector<1x64x128xbf16> to vector<64x128xbf16>
    %34 = vector.shape_cast %31 : vector<64x128xbf16> to vector<1x64x128xbf16>
    tpu.vector_store %arg9[%c0_12, %c16, %c0_13], %34 {strides = array<i32>} : memref<2x96x128xbf16, #tpu.memory_space<vmem>>, vector<1x64x128xbf16>,
    %c1 = arith.constant 1 : index
    %c0_14 = arith.constant 0 : index
    %c0_15 = arith.constant 0 : index
    %35 = vector.load %arg9[%c1, %c0_14, %c0_15] : memref<2x96x128xbf16, #tpu.memory_space<vmem>>, vector<1x16x128xbf16>
    %36 = vector.shape_cast %35 : vector<1x16x128xbf16> to vector<16x128xbf16>
    %37 = vector.shape_cast %22 : vector<16x128xbf16> to vector<1x16x128xbf16>
    tpu.vector_store %arg9[%c1, %c0_14, %c0_15], %37 {strides = array<i32>} : memref<2x96x128xbf16, #tpu.memory_space<vmem>>, vector<1x16x128xbf16>,
    %c1_16 = arith.constant 1 : index
    %c80_17 = arith.constant 80 : index
    %c0_18 = arith.constant 0 : index
    %38 = vector.load %arg9[%c1_16, %c80_17, %c0_18] : memref<2x96x128xbf16, #tpu.memory_space<vmem>>, vector<1x16x128xbf16>
    %39 = vector.shape_cast %38 : vector<1x16x128xbf16> to vector<16x128xbf16>
    %40 = vector.shape_cast %22 : vector<16x128xbf16> to vector<1x16x128xbf16>
    tpu.vector_store %arg9[%c1_16, %c80_17, %c0_18], %40 {strides = array<i32>} : memref<2x96x128xbf16, #tpu.memory_space<vmem>>, vector<1x16x128xbf16>,
    %c1_19 = arith.constant 1 : index
    %c0_20 = arith.constant 0 : index
    %c0_21 = arith.constant 0 : index
    %41 = vector.load %arg1[%c1_19, %c0_20, %c0_21] : memref<2x64x128xf32, #tpu.memory_space<vmem>>, vector<1x64x128xf32>
    %42 = vector.shape_cast %41 : vector<1x64x128xf32> to vector<64x128xf32>
    %43 = arith.truncf %42 : vector<64x128xf32> to vector<64x128xbf16>
    %c1_22 = arith.constant 1 : index
    %c16_23 = arith.constant 16 : index
    %c0_24 = arith.constant 0 : index
    %44 = vector.load %arg9[%c1_22, %c16_23, %c0_24] : memref<2x96x128xbf16, #tpu.memory_space<vmem>>, vector<1x64x128xbf16>
    %45 = vector.shape_cast %44 : vector<1x64x128xbf16> to vector<64x128xbf16>
    %46 = vector.shape_cast %43 : vector<64x128xbf16> to vector<1x64x128xbf16>
    tpu.vector_store %arg9[%c1_22, %c16_23, %c0_24], %46 {strides = array<i32>} : memref<2x96x128xbf16, #tpu.memory_space<vmem>>, vector<1x64x128xbf16>,
    %c0_25 = arith.constant 0 : index
    %c7 = arith.constant 7 : index
    %c0_26 = arith.constant 0 : index
    %47 = vector.load %arg9[%c0_25, %c7, %c0_26] : memref<2x96x128xbf16, #tpu.memory_space<vmem>>, vector<1x64x128xbf16>
    %48 = vector.shape_cast %47 : vector<1x64x128xbf16> to vector<64x128xbf16>
    %49 = arith.select %18, %48, %21 : vector<64x128xi1>, vector<64x128xbf16>
    %c0_27 = arith.constant 0 : index
    %c0_28 = arith.constant 0 : index
    %50 = vector.load %arg10[%c0_27, %c0_28] : memref<128x1152xbf16, #tpu.memory_space<vmem>>, vector<64x128xbf16>
    tpu.vector_store %arg10[%c0_27, %c0_28], %49 {strides = array<i32>} : memref<128x1152xbf16, #tpu.memory_space<vmem>>, vector<64x128xbf16>,
    %c0_29 = arith.constant 0 : index
    %c8 = arith.constant 8 : index
    %c0_30 = arith.constant 0 : index
    %51 = vector.load %arg9[%c0_29, %c8, %c0_30] : memref<2x96x128xbf16, #tpu.memory_space<vmem>>, vector<1x64x128xbf16>
    %52 = vector.shape_cast %51 : vector<1x64x128xbf16> to vector<64x128xbf16>
    %c0_31 = arith.constant 0 : index
    %c128 = arith.constant 128 : index
    %53 = vector.load %arg10[%c0_31, %c128] : memref<128x1152xbf16, #tpu.memory_space<vmem>>, vector<64x128xbf16>
    tpu.vector_store %arg10[%c0_31, %c128], %52 {strides = array<i32>} : memref<128x1152xbf16, #tpu.memory_space<vmem>>, vector<64x128xbf16>,
    %c0_32 = arith.constant 0 : index
    %c9 = arith.constant 9 : index
    %c0_33 = arith.constant 0 : index
    %54 = vector.load %arg9[%c0_32, %c9, %c0_33] : memref<2x96x128xbf16, #tpu.memory_space<vmem>>, vector<1x64x128xbf16>
    %55 = vector.shape_cast %54 : vector<1x64x128xbf16> to vector<64x128xbf16>
    %56 = arith.select %20, %55, %21 : vector<64x128xi1>, vector<64x128xbf16>
    %c0_34 = arith.constant 0 : index
    %c256 = arith.constant 256 : index
    %57 = vector.load %arg10[%c0_34, %c256] : memref<128x1152xbf16, #tpu.memory_space<vmem>>, vector<64x128xbf16>
    tpu.vector_store %arg10[%c0_34, %c256], %56 {strides = array<i32>} : memref<128x1152xbf16, #tpu.memory_space<vmem>>, vector<64x128xbf16>,
    %c0_35 = arith.constant 0 : index
    %c15 = arith.constant 15 : index
    %c0_36 = arith.constant 0 : index
    %58 = vector.load %arg9[%c0_35, %c15, %c0_36] : memref<2x96x128xbf16, #tpu.memory_space<vmem>>, vector<1x64x128xbf16>
    %59 = vector.shape_cast %58 : vector<1x64x128xbf16> to vector<64x128xbf16>
    %60 = arith.select %18, %59, %21 : vector<64x128xi1>, vector<64x128xbf16>
    %c0_37 = arith.constant 0 : index
    %c384 = arith.constant 384 : index
    %61 = vector.load %arg10[%c0_37, %c384] : memref<128x1152xbf16, #tpu.memory_space<vmem>>, vector<64x128xbf16>
    tpu.vector_store %arg10[%c0_37, %c384], %60 {strides = array<i32>} : memref<128x1152xbf16, #tpu.memory_space<vmem>>, vector<64x128xbf16>,
    %c0_38 = arith.constant 0 : index
    %c16_39 = arith.constant 16 : index
    %c0_40 = arith.constant 0 : index
    %62 = vector.load %arg9[%c0_38, %c16_39, %c0_40] : memref<2x96x128xbf16, #tpu.memory_space<vmem>>, vector<1x64x128xbf16>
    %63 = vector.shape_cast %62 : vector<1x64x128xbf16> to vector<64x128xbf16>
    %c0_41 = arith.constant 0 : index
    %c512 = arith.constant 512 : index
    %64 = vector.load %arg10[%c0_41, %c512] : memref<128x1152xbf16, #tpu.memory_space<vmem>>, vector<64x128xbf16>
    tpu.vector_store %arg10[%c0_41, %c512], %63 {strides = array<i32>} : memref<128x1152xbf16, #tpu.memory_space<vmem>>, vector<64x128xbf16>,
    %c0_42 = arith.constant 0 : index
    %c17 = arith.constant 17 : index
    %c0_43 = arith.constant 0 : index
    %65 = vector.load %arg9[%c0_42, %c17, %c0_43] : memref<2x96x128xbf16, #tpu.memory_space<vmem>>, vector<1x64x128xbf16>
    %66 = vector.shape_cast %65 : vector<1x64x128xbf16> to vector<64x128xbf16>
    %67 = arith.select %20, %66, %21 : vector<64x128xi1>, vector<64x128xbf16>
    %c0_44 = arith.constant 0 : index
    %c640 = arith.constant 640 : index
    %68 = vector.load %arg10[%c0_44, %c640] : memref<128x1152xbf16, #tpu.memory_space<vmem>>, vector<64x128xbf16>
    tpu.vector_store %arg10[%c0_44, %c640], %67 {strides = array<i32>} : memref<128x1152xbf16, #tpu.memory_space<vmem>>, vector<64x128xbf16>,
    %c0_45 = arith.constant 0 : index
    %c23 = arith.constant 23 : index
    %c0_46 = arith.constant 0 : index
    %69 = vector.load %arg9[%c0_45, %c23, %c0_46] : memref<2x96x128xbf16, #tpu.memory_space<vmem>>, vector<1x64x128xbf16>
    %70 = vector.shape_cast %69 : vector<1x64x128xbf16> to vector<64x128xbf16>
    %71 = arith.select %18, %70, %21 : vector<64x128xi1>, vector<64x128xbf16>
    %c0_47 = arith.constant 0 : index
    %c768 = arith.constant 768 : index
    %72 = vector.load %arg10[%c0_47, %c768] : memref<128x1152xbf16, #tpu.memory_space<vmem>>, vector<64x128xbf16>
    tpu.vector_store %arg10[%c0_47, %c768], %71 {strides = array<i32>} : memref<128x1152xbf16, #tpu.memory_space<vmem>>, vector<64x128xbf16>,
    %c0_48 = arith.constant 0 : index
    %c24 = arith.constant 24 : index
    %c0_49 = arith.constant 0 : index
    %73 = vector.load %arg9[%c0_48, %c24, %c0_49] : memref<2x96x128xbf16, #tpu.memory_space<vmem>>, vector<1x64x128xbf16>
    %74 = vector.shape_cast %73 : vector<1x64x128xbf16> to vector<64x128xbf16>
    %c0_50 = arith.constant 0 : index
    %c896 = arith.constant 896 : index
    %75 = vector.load %arg10[%c0_50, %c896] : memref<128x1152xbf16, #tpu.memory_space<vmem>>, vector<64x128xbf16>
    tpu.vector_store %arg10[%c0_50, %c896], %74 {strides = array<i32>} : memref<128x1152xbf16, #tpu.memory_space<vmem>>, vector<64x128xbf16>,
    %c0_51 = arith.constant 0 : index
    %c25 = arith.constant 25 : index
    %c0_52 = arith.constant 0 : index
    %76 = vector.load %arg9[%c0_51, %c25, %c0_52] : memref<2x96x128xbf16, #tpu.memory_space<vmem>>, vector<1x64x128xbf16>
    %77 = vector.shape_cast %76 : vector<1x64x128xbf16> to vector<64x128xbf16>
    %78 = arith.select %20, %77, %21 : vector<64x128xi1>, vector<64x128xbf16>
    %c0_53 = arith.constant 0 : index
    %c1024 = arith.constant 1024 : index
    %79 = vector.load %arg10[%c0_53, %c1024] : memref<128x1152xbf16, #tpu.memory_space<vmem>>, vector<64x128xbf16>
    tpu.vector_store %arg10[%c0_53, %c1024], %78 {strides = array<i32>} : memref<128x1152xbf16, #tpu.memory_space<vmem>>, vector<64x128xbf16>,
    %c1_54 = arith.constant 1 : index
    %c7_55 = arith.constant 7 : index
    %c0_56 = arith.constant 0 : index
    %80 = vector.load %arg9[%c1_54, %c7_55, %c0_56] : memref<2x96x128xbf16, #tpu.memory_space<vmem>>, vector<1x64x128xbf16>
    %81 = vector.shape_cast %80 : vector<1x64x128xbf16> to vector<64x128xbf16>
    %82 = arith.select %18, %81, %21 : vector<64x128xi1>, vector<64x128xbf16>
    %c64 = arith.constant 64 : index
    %c0_57 = arith.constant 0 : index
    %83 = vector.load %arg10[%c64, %c0_57] : memref<128x1152xbf16, #tpu.memory_space<vmem>>, vector<64x128xbf16>
    tpu.vector_store %arg10[%c64, %c0_57], %82 {strides = array<i32>} : memref<128x1152xbf16, #tpu.memory_space<vmem>>, vector<64x128xbf16>,
    %c1_58 = arith.constant 1 : index
    %c8_59 = arith.constant 8 : index
    %c0_60 = arith.constant 0 : index
    %84 = vector.load %arg9[%c1_58, %c8_59, %c0_60] : memref<2x96x128xbf16, #tpu.memory_space<vmem>>, vector<1x64x128xbf16>
    %85 = vector.shape_cast %84 : vector<1x64x128xbf16> to vector<64x128xbf16>
    %c64_61 = arith.constant 64 : index
    %c128_62 = arith.constant 128 : index
    %86 = vector.load %arg10[%c64_61, %c128_62] : memref<128x1152xbf16, #tpu.memory_space<vmem>>, vector<64x128xbf16>
    tpu.vector_store %arg10[%c64_61, %c128_62], %85 {strides = array<i32>} : memref<128x1152xbf16, #tpu.memory_space<vmem>>, vector<64x128xbf16>,
    %c1_63 = arith.constant 1 : index
    %c9_64 = arith.constant 9 : index
    %c0_65 = arith.constant 0 : index
    %87 = vector.load %arg9[%c1_63, %c9_64, %c0_65] : memref<2x96x128xbf16, #tpu.memory_space<vmem>>, vector<1x64x128xbf16>
    %88 = vector.shape_cast %87 : vector<1x64x128xbf16> to vector<64x128xbf16>
    %89 = arith.select %20, %88, %21 : vector<64x128xi1>, vector<64x128xbf16>
    %c64_66 = arith.constant 64 : index
    %c256_67 = arith.constant 256 : index
    %90 = vector.load %arg10[%c64_66, %c256_67] : memref<128x1152xbf16, #tpu.memory_space<vmem>>, vector<64x128xbf16>
    tpu.vector_store %arg10[%c64_66, %c256_67], %89 {strides = array<i32>} : memref<128x1152xbf16, #tpu.memory_space<vmem>>, vector<64x128xbf16>,
    %c1_68 = arith.constant 1 : index
    %c15_69 = arith.constant 15 : index
    %c0_70 = arith.constant 0 : index
    %91 = vector.load %arg9[%c1_68, %c15_69, %c0_70] : memref<2x96x128xbf16, #tpu.memory_space<vmem>>, vector<1x64x128xbf16>
    %92 = vector.shape_cast %91 : vector<1x64x128xbf16> to vector<64x128xbf16>
    %93 = arith.select %18, %92, %21 : vector<64x128xi1>, vector<64x128xbf16>
    %c64_71 = arith.constant 64 : index
    %c384_72 = arith.constant 384 : index
    %94 = vector.load %arg10[%c64_71, %c384_72] : memref<128x1152xbf16, #tpu.memory_space<vmem>>, vector<64x128xbf16>
    tpu.vector_store %arg10[%c64_71, %c384_72], %93 {strides = array<i32>} : memref<128x1152xbf16, #tpu.memory_space<vmem>>, vector<64x128xbf16>,
    %c1_73 = arith.constant 1 : index
    %c16_74 = arith.constant 16 : index
    %c0_75 = arith.constant 0 : index
    %95 = vector.load %arg9[%c1_73, %c16_74, %c0_75] : memref<2x96x128xbf16, #tpu.memory_space<vmem>>, vector<1x64x128xbf16>
    %96 = vector.shape_cast %95 : vector<1x64x128xbf16> to vector<64x128xbf16>
    %c64_76 = arith.constant 64 : index
    %c512_77 = arith.constant 512 : index
    %97 = vector.load %arg10[%c64_76, %c512_77] : memref<128x1152xbf16, #tpu.memory_space<vmem>>, vector<64x128xbf16>
    tpu.vector_store %arg10[%c64_76, %c512_77], %96 {strides = array<i32>} : memref<128x1152xbf16, #tpu.memory_space<vmem>>, vector<64x128xbf16>,
    %c1_78 = arith.constant 1 : index
    %c17_79 = arith.constant 17 : index
    %c0_80 = arith.constant 0 : index
    %98 = vector.load %arg9[%c1_78, %c17_79, %c0_80] : memref<2x96x128xbf16, #tpu.memory_space<vmem>>, vector<1x64x128xbf16>
    %99 = vector.shape_cast %98 : vector<1x64x128xbf16> to vector<64x128xbf16>
    %100 = arith.select %20, %99, %21 : vector<64x128xi1>, vector<64x128xbf16>
    %c64_81 = arith.constant 64 : index
    %c640_82 = arith.constant 640 : index
    %101 = vector.load %arg10[%c64_81, %c640_82] : memref<128x1152xbf16, #tpu.memory_space<vmem>>, vector<64x128xbf16>
    tpu.vector_store %arg10[%c64_81, %c640_82], %100 {strides = array<i32>} : memref<128x1152xbf16, #tpu.memory_space<vmem>>, vector<64x128xbf16>,
    %c1_83 = arith.constant 1 : index
    %c23_84 = arith.constant 23 : index
    %c0_85 = arith.constant 0 : index
    %102 = vector.load %arg9[%c1_83, %c23_84, %c0_85] : memref<2x96x128xbf16, #tpu.memory_space<vmem>>, vector<1x64x128xbf16>
    %103 = vector.shape_cast %102 : vector<1x64x128xbf16> to vector<64x128xbf16>
    %104 = arith.select %18, %103, %21 : vector<64x128xi1>, vector<64x128xbf16>
    %c64_86 = arith.constant 64 : index
    %c768_87 = arith.constant 768 : index
    %105 = vector.load %arg10[%c64_86, %c768_87] : memref<128x1152xbf16, #tpu.memory_space<vmem>>, vector<64x128xbf16>
    tpu.vector_store %arg10[%c64_86, %c768_87], %104 {strides = array<i32>} : memref<128x1152xbf16, #tpu.memory_space<vmem>>, vector<64x128xbf16>,
    %c1_88 = arith.constant 1 : index
    %c24_89 = arith.constant 24 : index
    %c0_90 = arith.constant 0 : index
    %106 = vector.load %arg9[%c1_88, %c24_89, %c0_90] : memref<2x96x128xbf16, #tpu.memory_space<vmem>>, vector<1x64x128xbf16>
    %107 = vector.shape_cast %106 : vector<1x64x128xbf16> to vector<64x128xbf16>
    %c64_91 = arith.constant 64 : index
    %c896_92 = arith.constant 896 : index
    %108 = vector.load %arg10[%c64_91, %c896_92] : memref<128x1152xbf16, #tpu.memory_space<vmem>>, vector<64x128xbf16>
    tpu.vector_store %arg10[%c64_91, %c896_92], %107 {strides = array<i32>} : memref<128x1152xbf16, #tpu.memory_space<vmem>>, vector<64x128xbf16>,
    %c1_93 = arith.constant 1 : index
    %c25_94 = arith.constant 25 : index
    %c0_95 = arith.constant 0 : index
    %109 = vector.load %arg9[%c1_93, %c25_94, %c0_95] : memref<2x96x128xbf16, #tpu.memory_space<vmem>>, vector<1x64x128xbf16>
    %110 = vector.shape_cast %109 : vector<1x64x128xbf16> to vector<64x128xbf16>
    %111 = arith.select %20, %110, %21 : vector<64x128xi1>, vector<64x128xbf16>
    %c64_96 = arith.constant 64 : index
    %c1024_97 = arith.constant 1024 : index
    %112 = vector.load %arg10[%c64_96, %c1024_97] : memref<128x1152xbf16, #tpu.memory_space<vmem>>, vector<64x128xbf16>
    tpu.vector_store %arg10[%c64_96, %c1024_97], %111 {strides = array<i32>} : memref<128x1152xbf16, #tpu.memory_space<vmem>>, vector<64x128xbf16>,
    %c0_98 = arith.constant 0 : index
    %c0_99 = arith.constant 0 : index
    %113 = vector.load %arg10[%c0_98, %c0_99] : memref<128x1152xbf16, #tpu.memory_space<vmem>>, vector<128x1152xbf16>
    %c0_100 = arith.constant 0 : index
    %c0_101 = arith.constant 0 : index
    %114 = vector.load %arg2[%c0_100, %c0_101] : memref<1152x128xbf16, #tpu.memory_space<vmem>>, vector<1152x128xbf16>
    %cst_102 = arith.constant dense<0.000000e+00> : vector<128x128xf32>
    %115 = tpu.matmul %113, %114, %cst_102 {dimension_numbers = #tpu.dot_dimension_numbers<[1], [0], [0], [1], [0, 0, 1, 1], [], []>} : vector<128x1152xbf16>, vector<1152x128xbf16>, vector<128x128xf32> -> vector<128x128xf32>
    %c0_103 = arith.constant 0 : index
    %c0_104 = arith.constant 0 : index
    %116 = vector.load %arg3[%c0_103, %c0_104] : memref<1x128xf32, #tpu.memory_space<vmem>>, vector<1x128xf32>
    %117 = vector.broadcast %116 : vector<1x128xf32> to vector<128x128xf32>
    %118 = arith.addf %115, %117 : vector<128x128xf32>
    %cst_105 = arith.constant 0.000000e+00 : f32
    %119 = vector.broadcast %cst_105 : f32 to vector<128x128xf32>
    %120 = arith.maximumf %118, %119 : vector<128x128xf32>
    %121 = arith.truncf %120 : vector<128x128xf32> to vector<128x128xbf16>
    %122 = vector.shape_cast %121 : vector<128x128xbf16> to vector<2x64x128xbf16>
    %123 = vector.extract_strided_slice %122 {offsets = [0, 0, 0], sizes = [1, 64, 128], strides = [1, 1, 1]} : vector<2x64x128xbf16> to vector<1x64x128xbf16>
    %124 = vector.shape_cast %123 : vector<1x64x128xbf16> to vector<64x128xbf16>
    %c0_106 = arith.constant 0 : index
    %c16_107 = arith.constant 16 : index
    %c0_108 = arith.constant 0 : index
    %125 = vector.load %arg9[%c0_106, %c16_107, %c0_108] : memref<2x96x128xbf16, #tpu.memory_space<vmem>>, vector<1x64x128xbf16>
    %126 = vector.shape_cast %125 : vector<1x64x128xbf16> to vector<64x128xbf16>
    %127 = vector.shape_cast %124 : vector<64x128xbf16> to vector<1x64x128xbf16>
    tpu.vector_store %arg9[%c0_106, %c16_107, %c0_108], %127 {strides = array<i32>} : memref<2x96x128xbf16, #tpu.memory_space<vmem>>, vector<1x64x128xbf16>,
    %128 = vector.extract_strided_slice %122 {offsets = [1, 0, 0], sizes = [1, 64, 128], strides = [1, 1, 1]} : vector<2x64x128xbf16> to vector<1x64x128xbf16>
    %129 = vector.shape_cast %128 : vector<1x64x128xbf16> to vector<64x128xbf16>
    %c1_109 = arith.constant 1 : index
    %c16_110 = arith.constant 16 : index
    %c0_111 = arith.constant 0 : index
    %130 = vector.load %arg9[%c1_109, %c16_110, %c0_111] : memref<2x96x128xbf16, #tpu.memory_space<vmem>>, vector<1x64x128xbf16>
    %131 = vector.shape_cast %130 : vector<1x64x128xbf16> to vector<64x128xbf16>
    %132 = vector.shape_cast %129 : vector<64x128xbf16> to vector<1x64x128xbf16>
    tpu.vector_store %arg9[%c1_109, %c16_110, %c0_111], %132 {strides = array<i32>} : memref<2x96x128xbf16, #tpu.memory_space<vmem>>, vector<1x64x128xbf16>,
    %c0_112 = arith.constant 0 : index
    %c7_113 = arith.constant 7 : index
    %c0_114 = arith.constant 0 : index
    %133 = vector.load %arg9[%c0_112, %c7_113, %c0_114] : memref<2x96x128xbf16, #tpu.memory_space<vmem>>, vector<1x64x128xbf16>
    %134 = vector.shape_cast %133 : vector<1x64x128xbf16> to vector<64x128xbf16>
    %135 = arith.select %18, %134, %21 : vector<64x128xi1>, vector<64x128xbf16>
    %c0_115 = arith.constant 0 : index
    %c0_116 = arith.constant 0 : index
    %136 = vector.load %arg10[%c0_115, %c0_116] : memref<128x1152xbf16, #tpu.memory_space<vmem>>, vector<64x128xbf16>
    tpu.vector_store %arg10[%c0_115, %c0_116], %135 {strides = array<i32>} : memref<128x1152xbf16, #tpu.memory_space<vmem>>, vector<64x128xbf16>,
    %c0_117 = arith.constant 0 : index
    %c8_118 = arith.constant 8 : index
    %c0_119 = arith.constant 0 : index
    %137 = vector.load %arg9[%c0_117, %c8_118, %c0_119] : memref<2x96x128xbf16, #tpu.memory_space<vmem>>, vector<1x64x128xbf16>
    %138 = vector.shape_cast %137 : vector<1x64x128xbf16> to vector<64x128xbf16>
    %c0_120 = arith.constant 0 : index
    %c128_121 = arith.constant 128 : index
    %139 = vector.load %arg10[%c0_120, %c128_121] : memref<128x1152xbf16, #tpu.memory_space<vmem>>, vector<64x128xbf16>
    tpu.vector_store %arg10[%c0_120, %c128_121], %138 {strides = array<i32>} : memref<128x1152xbf16, #tpu.memory_space<vmem>>, vector<64x128xbf16>,
    %c0_122 = arith.constant 0 : index
    %c9_123 = arith.constant 9 : index
    %c0_124 = arith.constant 0 : index
    %140 = vector.load %arg9[%c0_122, %c9_123, %c0_124] : memref<2x96x128xbf16, #tpu.memory_space<vmem>>, vector<1x64x128xbf16>
    %141 = vector.shape_cast %140 : vector<1x64x128xbf16> to vector<64x128xbf16>
    %142 = arith.select %20, %141, %21 : vector<64x128xi1>, vector<64x128xbf16>
    %c0_125 = arith.constant 0 : index
    %c256_126 = arith.constant 256 : index
    %143 = vector.load %arg10[%c0_125, %c256_126] : memref<128x1152xbf16, #tpu.memory_space<vmem>>, vector<64x128xbf16>
    tpu.vector_store %arg10[%c0_125, %c256_126], %142 {strides = array<i32>} : memref<128x1152xbf16, #tpu.memory_space<vmem>>, vector<64x128xbf16>,
    %c0_127 = arith.constant 0 : index
    %c15_128 = arith.constant 15 : index
    %c0_129 = arith.constant 0 : index
    %144 = vector.load %arg9[%c0_127, %c15_128, %c0_129] : memref<2x96x128xbf16, #tpu.memory_space<vmem>>, vector<1x64x128xbf16>
    %145 = vector.shape_cast %144 : vector<1x64x128xbf16> to vector<64x128xbf16>
    %146 = arith.select %18, %145, %21 : vector<64x128xi1>, vector<64x128xbf16>
    %c0_130 = arith.constant 0 : index
    %c384_131 = arith.constant 384 : index
    %147 = vector.load %arg10[%c0_130, %c384_131] : memref<128x1152xbf16, #tpu.memory_space<vmem>>, vector<64x128xbf16>
    tpu.vector_store %arg10[%c0_130, %c384_131], %146 {strides = array<i32>} : memref<128x1152xbf16, #tpu.memory_space<vmem>>, vector<64x128xbf16>,
    %c0_132 = arith.constant 0 : index
    %c16_133 = arith.constant 16 : index
    %c0_134 = arith.constant 0 : index
    %148 = vector.load %arg9[%c0_132, %c16_133, %c0_134] : memref<2x96x128xbf16, #tpu.memory_space<vmem>>, vector<1x64x128xbf16>
    %149 = vector.shape_cast %148 : vector<1x64x128xbf16> to vector<64x128xbf16>
    %c0_135 = arith.constant 0 : index
    %c512_136 = arith.constant 512 : index
    %150 = vector.load %arg10[%c0_135, %c512_136] : memref<128x1152xbf16, #tpu.memory_space<vmem>>, vector<64x128xbf16>
    tpu.vector_store %arg10[%c0_135, %c512_136], %149 {strides = array<i32>} : memref<128x1152xbf16, #tpu.memory_space<vmem>>, vector<64x128xbf16>,
    %c0_137 = arith.constant 0 : index
    %c17_138 = arith.constant 17 : index
    %c0_139 = arith.constant 0 : index
    %151 = vector.load %arg9[%c0_137, %c17_138, %c0_139] : memref<2x96x128xbf16, #tpu.memory_space<vmem>>, vector<1x64x128xbf16>
    %152 = vector.shape_cast %151 : vector<1x64x128xbf16> to vector<64x128xbf16>
    %153 = arith.select %20, %152, %21 : vector<64x128xi1>, vector<64x128xbf16>
    %c0_140 = arith.constant 0 : index
    %c640_141 = arith.constant 640 : index
    %154 = vector.load %arg10[%c0_140, %c640_141] : memref<128x1152xbf16, #tpu.memory_space<vmem>>, vector<64x128xbf16>
    tpu.vector_store %arg10[%c0_140, %c640_141], %153 {strides = array<i32>} : memref<128x1152xbf16, #tpu.memory_space<vmem>>, vector<64x128xbf16>,
    %c0_142 = arith.constant 0 : index
    %c23_143 = arith.constant 23 : index
    %c0_144 = arith.constant 0 : index
    %155 = vector.load %arg9[%c0_142, %c23_143, %c0_144] : memref<2x96x128xbf16, #tpu.memory_space<vmem>>, vector<1x64x128xbf16>
    %156 = vector.shape_cast %155 : vector<1x64x128xbf16> to vector<64x128xbf16>
    %157 = arith.select %18, %156, %21 : vector<64x128xi1>, vector<64x128xbf16>
    %c0_145 = arith.constant 0 : index
    %c768_146 = arith.constant 768 : index
    %158 = vector.load %arg10[%c0_145, %c768_146] : memref<128x1152xbf16, #tpu.memory_space<vmem>>, vector<64x128xbf16>
    tpu.vector_store %arg10[%c0_145, %c768_146], %157 {strides = array<i32>} : memref<128x1152xbf16, #tpu.memory_space<vmem>>, vector<64x128xbf16>,
    %c0_147 = arith.constant 0 : index
    %c24_148 = arith.constant 24 : index
    %c0_149 = arith.constant 0 : index
    %159 = vector.load %arg9[%c0_147, %c24_148, %c0_149] : memref<2x96x128xbf16, #tpu.memory_space<vmem>>, vector<1x64x128xbf16>
    %160 = vector.shape_cast %159 : vector<1x64x128xbf16> to vector<64x128xbf16>
    %c0_150 = arith.constant 0 : index
    %c896_151 = arith.constant 896 : index
    %161 = vector.load %arg10[%c0_150, %c896_151] : memref<128x1152xbf16, #tpu.memory_space<vmem>>, vector<64x128xbf16>
    tpu.vector_store %arg10[%c0_150, %c896_151], %160 {strides = array<i32>} : memref<128x1152xbf16, #tpu.memory_space<vmem>>, vector<64x128xbf16>,
    %c0_152 = arith.constant 0 : index
    %c25_153 = arith.constant 25 : index
    %c0_154 = arith.constant 0 : index
    %162 = vector.load %arg9[%c0_152, %c25_153, %c0_154] : memref<2x96x128xbf16, #tpu.memory_space<vmem>>, vector<1x64x128xbf16>
    %163 = vector.shape_cast %162 : vector<1x64x128xbf16> to vector<64x128xbf16>
    %164 = arith.select %20, %163, %21 : vector<64x128xi1>, vector<64x128xbf16>
    %c0_155 = arith.constant 0 : index
    %c1024_156 = arith.constant 1024 : index
    %165 = vector.load %arg10[%c0_155, %c1024_156] : memref<128x1152xbf16, #tpu.memory_space<vmem>>, vector<64x128xbf16>
    tpu.vector_store %arg10[%c0_155, %c1024_156], %164 {strides = array<i32>} : memref<128x1152xbf16, #tpu.memory_space<vmem>>, vector<64x128xbf16>,
    %c1_157 = arith.constant 1 : index
    %c7_158 = arith.constant 7 : index
    %c0_159 = arith.constant 0 : index
    %166 = vector.load %arg9[%c1_157, %c7_158, %c0_159] : memref<2x96x128xbf16, #tpu.memory_space<vmem>>, vector<1x64x128xbf16>
    %167 = vector.shape_cast %166 : vector<1x64x128xbf16> to vector<64x128xbf16>
    %168 = arith.select %18, %167, %21 : vector<64x128xi1>, vector<64x128xbf16>
    %c64_160 = arith.constant 64 : index
    %c0_161 = arith.constant 0 : index
    %169 = vector.load %arg10[%c64_160, %c0_161] : memref<128x1152xbf16, #tpu.memory_space<vmem>>, vector<64x128xbf16>
    tpu.vector_store %arg10[%c64_160, %c0_161], %168 {strides = array<i32>} : memref<128x1152xbf16, #tpu.memory_space<vmem>>, vector<64x128xbf16>,
    %c1_162 = arith.constant 1 : index
    %c8_163 = arith.constant 8 : index
    %c0_164 = arith.constant 0 : index
    %170 = vector.load %arg9[%c1_162, %c8_163, %c0_164] : memref<2x96x128xbf16, #tpu.memory_space<vmem>>, vector<1x64x128xbf16>
    %171 = vector.shape_cast %170 : vector<1x64x128xbf16> to vector<64x128xbf16>
    %c64_165 = arith.constant 64 : index
    %c128_166 = arith.constant 128 : index
    %172 = vector.load %arg10[%c64_165, %c128_166] : memref<128x1152xbf16, #tpu.memory_space<vmem>>, vector<64x128xbf16>
    tpu.vector_store %arg10[%c64_165, %c128_166], %171 {strides = array<i32>} : memref<128x1152xbf16, #tpu.memory_space<vmem>>, vector<64x128xbf16>,
    %c1_167 = arith.constant 1 : index
    %c9_168 = arith.constant 9 : index
    %c0_169 = arith.constant 0 : index
    %173 = vector.load %arg9[%c1_167, %c9_168, %c0_169] : memref<2x96x128xbf16, #tpu.memory_space<vmem>>, vector<1x64x128xbf16>
    %174 = vector.shape_cast %173 : vector<1x64x128xbf16> to vector<64x128xbf16>
    %175 = arith.select %20, %174, %21 : vector<64x128xi1>, vector<64x128xbf16>
    %c64_170 = arith.constant 64 : index
    %c256_171 = arith.constant 256 : index
    %176 = vector.load %arg10[%c64_170, %c256_171] : memref<128x1152xbf16, #tpu.memory_space<vmem>>, vector<64x128xbf16>
    tpu.vector_store %arg10[%c64_170, %c256_171], %175 {strides = array<i32>} : memref<128x1152xbf16, #tpu.memory_space<vmem>>, vector<64x128xbf16>,
    %c1_172 = arith.constant 1 : index
    %c15_173 = arith.constant 15 : index
    %c0_174 = arith.constant 0 : index
    %177 = vector.load %arg9[%c1_172, %c15_173, %c0_174] : memref<2x96x128xbf16, #tpu.memory_space<vmem>>, vector<1x64x128xbf16>
    %178 = vector.shape_cast %177 : vector<1x64x128xbf16> to vector<64x128xbf16>
    %179 = arith.select %18, %178, %21 : vector<64x128xi1>, vector<64x128xbf16>
    %c64_175 = arith.constant 64 : index
    %c384_176 = arith.constant 384 : index
    %180 = vector.load %arg10[%c64_175, %c384_176] : memref<128x1152xbf16, #tpu.memory_space<vmem>>, vector<64x128xbf16>
    tpu.vector_store %arg10[%c64_175, %c384_176], %179 {strides = array<i32>} : memref<128x1152xbf16, #tpu.memory_space<vmem>>, vector<64x128xbf16>,
    %c1_177 = arith.constant 1 : index
    %c16_178 = arith.constant 16 : index
    %c0_179 = arith.constant 0 : index
    %181 = vector.load %arg9[%c1_177, %c16_178, %c0_179] : memref<2x96x128xbf16, #tpu.memory_space<vmem>>, vector<1x64x128xbf16>
    %182 = vector.shape_cast %181 : vector<1x64x128xbf16> to vector<64x128xbf16>
    %c64_180 = arith.constant 64 : index
    %c512_181 = arith.constant 512 : index
    %183 = vector.load %arg10[%c64_180, %c512_181] : memref<128x1152xbf16, #tpu.memory_space<vmem>>, vector<64x128xbf16>
    tpu.vector_store %arg10[%c64_180, %c512_181], %182 {strides = array<i32>} : memref<128x1152xbf16, #tpu.memory_space<vmem>>, vector<64x128xbf16>,
    %c1_182 = arith.constant 1 : index
    %c17_183 = arith.constant 17 : index
    %c0_184 = arith.constant 0 : index
    %184 = vector.load %arg9[%c1_182, %c17_183, %c0_184] : memref<2x96x128xbf16, #tpu.memory_space<vmem>>, vector<1x64x128xbf16>
    %185 = vector.shape_cast %184 : vector<1x64x128xbf16> to vector<64x128xbf16>
    %186 = arith.select %20, %185, %21 : vector<64x128xi1>, vector<64x128xbf16>
    %c64_185 = arith.constant 64 : index
    %c640_186 = arith.constant 640 : index
    %187 = vector.load %arg10[%c64_185, %c640_186] : memref<128x1152xbf16, #tpu.memory_space<vmem>>, vector<64x128xbf16>
    tpu.vector_store %arg10[%c64_185, %c640_186], %186 {strides = array<i32>} : memref<128x1152xbf16, #tpu.memory_space<vmem>>, vector<64x128xbf16>,
    %c1_187 = arith.constant 1 : index
    %c23_188 = arith.constant 23 : index
    %c0_189 = arith.constant 0 : index
    %188 = vector.load %arg9[%c1_187, %c23_188, %c0_189] : memref<2x96x128xbf16, #tpu.memory_space<vmem>>, vector<1x64x128xbf16>
    %189 = vector.shape_cast %188 : vector<1x64x128xbf16> to vector<64x128xbf16>
    %190 = arith.select %18, %189, %21 : vector<64x128xi1>, vector<64x128xbf16>
    %c64_190 = arith.constant 64 : index
    %c768_191 = arith.constant 768 : index
    %191 = vector.load %arg10[%c64_190, %c768_191] : memref<128x1152xbf16, #tpu.memory_space<vmem>>, vector<64x128xbf16>
    tpu.vector_store %arg10[%c64_190, %c768_191], %190 {strides = array<i32>} : memref<128x1152xbf16, #tpu.memory_space<vmem>>, vector<64x128xbf16>,
    %c1_192 = arith.constant 1 : index
    %c24_193 = arith.constant 24 : index
    %c0_194 = arith.constant 0 : index
    %192 = vector.load %arg9[%c1_192, %c24_193, %c0_194] : memref<2x96x128xbf16, #tpu.memory_space<vmem>>, vector<1x64x128xbf16>
    %193 = vector.shape_cast %192 : vector<1x64x128xbf16> to vector<64x128xbf16>
    %c64_195 = arith.constant 64 : index
    %c896_196 = arith.constant 896 : index
    %194 = vector.load %arg10[%c64_195, %c896_196] : memref<128x1152xbf16, #tpu.memory_space<vmem>>, vector<64x128xbf16>
    tpu.vector_store %arg10[%c64_195, %c896_196], %193 {strides = array<i32>} : memref<128x1152xbf16, #tpu.memory_space<vmem>>, vector<64x128xbf16>,
    %c1_197 = arith.constant 1 : index
    %c25_198 = arith.constant 25 : index
    %c0_199 = arith.constant 0 : index
    %195 = vector.load %arg9[%c1_197, %c25_198, %c0_199] : memref<2x96x128xbf16, #tpu.memory_space<vmem>>, vector<1x64x128xbf16>
    %196 = vector.shape_cast %195 : vector<1x64x128xbf16> to vector<64x128xbf16>
    %197 = arith.select %20, %196, %21 : vector<64x128xi1>, vector<64x128xbf16>
    %c64_200 = arith.constant 64 : index
    %c1024_201 = arith.constant 1024 : index
    %198 = vector.load %arg10[%c64_200, %c1024_201] : memref<128x1152xbf16, #tpu.memory_space<vmem>>, vector<64x128xbf16>
    tpu.vector_store %arg10[%c64_200, %c1024_201], %197 {strides = array<i32>} : memref<128x1152xbf16, #tpu.memory_space<vmem>>, vector<64x128xbf16>,
    %c0_202 = arith.constant 0 : index
    %c0_203 = arith.constant 0 : index
    %199 = vector.load %arg10[%c0_202, %c0_203] : memref<128x1152xbf16, #tpu.memory_space<vmem>>, vector<128x1152xbf16>
    %c0_204 = arith.constant 0 : index
    %c0_205 = arith.constant 0 : index
    %200 = vector.load %arg4[%c0_204, %c0_205] : memref<1152x128xbf16, #tpu.memory_space<vmem>>, vector<1152x128xbf16>
    %cst_206 = arith.constant dense<0.000000e+00> : vector<128x128xf32>
    %201 = tpu.matmul %199, %200, %cst_206 {dimension_numbers = #tpu.dot_dimension_numbers<[1], [0], [0], [1], [0, 0, 1, 1], [], []>} : vector<128x1152xbf16>, vector<1152x128xbf16>, vector<128x128xf32> -> vector<128x128xf32>
    %c0_207 = arith.constant 0 : index
    %c0_208 = arith.constant 0 : index
    %202 = vector.load %arg5[%c0_207, %c0_208] : memref<1x128xf32, #tpu.memory_space<vmem>>, vector<1x128xf32>
    %203 = vector.broadcast %202 : vector<1x128xf32> to vector<128x128xf32>
    %204 = arith.addf %201, %203 : vector<128x128xf32>
    %205 = vector.shape_cast %204 : vector<128x128xf32> to vector<2x64x128xf32>
    %cst_209 = arith.constant dense<0.000000e+00> : vector<2x128xf32>
    %206 = vector.multi_reduction <add>, %205, %cst_209 [1] : vector<2x64x128xf32> to vector<2x128xf32>
    %cst_210 = arith.constant 6.400000e+01 : f32
    %207 = vector.broadcast %cst_210 : f32 to vector<2x128xf32>
    %208 = arith.divf %206, %207 : vector<2x128xf32>
    %c0_211 = arith.constant 0 : index
    %c0_212 = arith.constant 0 : index
    %209 = vector.load %arg6[%c0_211, %c0_212] : memref<128x128xf32, #tpu.memory_space<vmem>>, vector<128x128xf32>
    %cst_213 = arith.constant dense<0.000000e+00> : vector<2x128xf32>
    %210 = tpu.matmul %208, %209, %cst_213 {dimension_numbers = #tpu.dot_dimension_numbers<[1], [0], [0], [1], [0, 0, 1, 1], [], []>} : vector<2x128xf32>, vector<128x128xf32>, vector<2x128xf32> -> vector<2x128xf32>
    %cst_214 = arith.constant 0.000000e+00 : f32
    %211 = vector.broadcast %cst_214 : f32 to vector<2x128xf32>
    %212 = arith.maximumf %210, %211 : vector<2x128xf32>
    %c0_215 = arith.constant 0 : index
    %c0_216 = arith.constant 0 : index
    %213 = vector.load %arg7[%c0_215, %c0_216] : memref<128x128xf32, #tpu.memory_space<vmem>>, vector<128x128xf32>
    %cst_217 = arith.constant dense<0.000000e+00> : vector<2x128xf32>
    %214 = tpu.matmul %212, %213, %cst_217 {dimension_numbers = #tpu.dot_dimension_numbers<[1], [0], [0], [1], [0, 0, 1, 1], [], []>} : vector<2x128xf32>, vector<128x128xf32>, vector<2x128xf32> -> vector<2x128xf32>
    %215 = arith.negf %214 : vector<2x128xf32>
    %216 = math.exp %215 : vector<2x128xf32>
    %cst_218 = arith.constant 1.000000e+00 : f32
    %217 = vector.broadcast %cst_218 : f32 to vector<2x128xf32>
    %218 = arith.addf %217, %216 : vector<2x128xf32>
    %219 = arith.divf %217, %218 : vector<2x128xf32>
    %220 = vector.shape_cast %219 : vector<2x128xf32> to vector<2x1x128xf32>
    %221 = vector.broadcast %220 : vector<2x1x128xf32> to vector<2x64x128xf32>
    %222 = arith.mulf %205, %221 : vector<2x64x128xf32>
    %c0_219 = arith.constant 0 : index
    %c0_220 = arith.constant 0 : index
    %c0_221 = arith.constant 0 : index
    %223 = vector.load %arg1[%c0_219, %c0_220, %c0_221] : memref<2x64x128xf32, #tpu.memory_space<vmem>>, vector<2x64x128xf32>
    %224 = arith.addf %222, %223 : vector<2x64x128xf32>
    %cst_222 = arith.constant 0.000000e+00 : f32
    %225 = vector.broadcast %cst_222 : f32 to vector<2x64x128xf32>
    %226 = arith.maximumf %224, %225 : vector<2x64x128xf32>
    %c0_223 = arith.constant 0 : index
    %c0_224 = arith.constant 0 : index
    %c0_225 = arith.constant 0 : index
    %227 = vector.load %arg8[%c0_223, %c0_224, %c0_225] : memref<2x64x128xf32, #tpu.memory_space<vmem>>, vector<2x64x128xf32>
    tpu.vector_store %arg8[%c0_223, %c0_224, %c0_225], %226 {strides = array<i32>} : memref<2x64x128xf32, #tpu.memory_space<vmem>>, vector<2x64x128xf32>,
    return
  }
  func.func @transform_0(%arg0: i32) -> (i32, i32, i32) {
    %c0_i32 = arith.constant 0 : i32
    %c0_i32_0 = arith.constant 0 : i32
    %c0_i32_1 = arith.constant 0 : i32
    return %arg0, %c0_i32, %c0_i32_0 : i32, i32, i32
  }
  func.func @transform_1(%arg0: i32) -> (i32, i32) {
    %c0_i32 = arith.constant 0 : i32
    %c0_i32_0 = arith.constant 0 : i32
    %c0_i32_1 = arith.constant 0 : i32
    return %c0_i32, %c0_i32_0 : i32, i32
  }
  func.func @transform_2(%arg0: i32) -> (i32, i32) {
    %c0_i32 = arith.constant 0 : i32
    %c0_i32_0 = arith.constant 0 : i32
    %c0_i32_1 = arith.constant 0 : i32
    return %c0_i32, %c0_i32_0 : i32, i32
  }
  func.func @transform_3(%arg0: i32) -> (i32, i32) {
    %c0_i32 = arith.constant 0 : i32
    %c0_i32_0 = arith.constant 0 : i32
    %c0_i32_1 = arith.constant 0 : i32
    return %c0_i32, %c0_i32_0 : i32, i32
  }
  func.func @transform_4(%arg0: i32) -> (i32, i32) {
    %c0_i32 = arith.constant 0 : i32
    %c0_i32_0 = arith.constant 0 : i32
    %c0_i32_1 = arith.constant 0 : i32
    return %c0_i32, %c0_i32_0 : i32, i32
  }
  func.func @transform_5(%arg0: i32) -> (i32, i32) {
    %c0_i32 = arith.constant 0 : i32
    %c0_i32_0 = arith.constant 0 : i32
    %c0_i32_1 = arith.constant 0 : i32
    return %c0_i32, %c0_i32_0 : i32, i32
  }
  func.func @transform_6(%arg0: i32) -> (i32, i32) {
    %c0_i32 = arith.constant 0 : i32
    %c0_i32_0 = arith.constant 0 : i32
    %c0_i32_1 = arith.constant 0 : i32
    return %c0_i32, %c0_i32_0 : i32, i32
  }
  func.func @transform_7(%arg0: i32) -> (i32, i32, i32) {
    %c0_i32 = arith.constant 0 : i32
    %c0_i32_0 = arith.constant 0 : i32
    %c0_i32_1 = arith.constant 0 : i32
    return %arg0, %c0_i32, %c0_i32_0 : i32, i32, i32
  }
}

</mosaic_0001>

<llo_original>
// kernel: tpu_custom_call.1
$region0: #{tpu_custom_call.1}
  #allocation0 [shape = 'u32[]', space=smem, size = 0x4, offset = 0x4, fixed_abs, tag = 'smem constant byte address 0x4 - core index']
  #allocation1 [shape = 'u32[144,128]{1,0:T(1,128)}', space=vmem, size = 0x12000, scoped, tag = 'internal scratch']
  #allocation2 [shape = 'bf16[2,96,128]{2,1,0:T(16,128)(2,1)}', space=vmem, size = 0xc000, scoped, tag = 'scratch operand']
  #allocation3 [shape = 'bf16[128,1152]{1,0:T(16,128)(2,1)}', space=vmem, size = 0x48000, scoped, tag = 'scratch operand']
  %s0 = inlined_call_operand.hbm [shape: f32[4,64,128], index: 0, kind: input, shape index: {}]
  %s1 = inlined_call_operand.hbm [shape: bf16[1152,128], index: 1, kind: input, shape index: {}]
  %s2 = inlined_call_operand.vmem [shape: f32[1,128], index: 2, kind: input, shape index: {}]
  %s3 = inlined_call_operand.hbm [shape: bf16[1152,128], index: 3, kind: input, shape index: {}]
  %s4 = inlined_call_operand.vmem [shape: f32[1,128], index: 4, kind: input, shape index: {}]
  %s5 = inlined_call_operand.hbm [shape: f32[128,128], index: 5, kind: input, shape index: {}]
  %s6 = inlined_call_operand.hbm [shape: f32[128,128], index: 6, kind: input, shape index: {}]
  %s7 = inlined_call_operand.hbm [shape: f32[4,64,128], index: 7, kind: output, shape index: {}]
  %s8 = sld [smem:[#allocation0]]
  $region81: #{tpu_custom_call.1} parent=0
    _
  %s10 = ssub.s32 1, %s8
  %s11 = scalar_select 0, %s10, %s8
  $region1: #{tpu_custom_call.1} parent=0
    #allocation4 [shape = 'u8[131072]{0}', space=vmem, size = 0x20000, scoped, tag = 'input window, operand 0']
    #allocation5 [shape = 's32[2]{0}', space=sflag, size = 0x8, scoped, tag = 'scoped memory for tpu_custom_call.1']
    #allocation6 [shape = 's32[2]{0}', space=sflag, size = 0x8, scoped, tag = 'scoped memory for tpu_custom_call.1']
    #allocation7 [shape = 'u8[294912]{0}', space=vmem, size = 0x48000, scoped, tag = 'input window, operand 1, single buffered']
    #allocation8 [shape = 's32[1]{0}', space=sflag, size = 0x4, scoped, tag = 'scoped memory for tpu_custom_call.1']
    #allocation9 [shape = 'u8[294912]{0}', space=vmem, size = 0x48000, scoped, tag = 'input window, operand 3, single buffered']
    #allocation10 [shape = 'u8[65536]{0}', space=vmem, size = 0x10000, scoped, tag = 'input window, operand 5, single buffered']
    #allocation11 [shape = 's32[1]{0}', space=sflag, size = 0x4, scoped, tag = 'scoped memory for tpu_custom_call.1']
    #allocation12 [shape = 'u8[65536]{0}', space=vmem, size = 0x10000, scoped, tag = 'input window, operand 6, single buffered']
    #allocation13 [shape = 'u8[131072]{0}', space=vmem, size = 0x20000, scoped, tag = 'output window, operand 0']
    %12 = vsyncpa [#allocation5], 0
    %s13 = scalar_lea.sflag [#allocation5], 1
    %14 = vsyncpa %s13, 0
    %15 = vsyncpa [#allocation8], 0
    %16 = vsyncpa [#allocation11], 0
    %17 = vsyncpa [#allocation6], 0
    %s18 = scalar_lea.sflag [#allocation6], 1
    %19 = vsyncpa %s18, 0
    loop: start=0, step=1, limit=4
    $region2: #{tpu_custom_call.1} parent=1 // loop_pre_header
      _
    $region3: #{tpu_custom_call.1} parent=1 // loop_header
      %s21 = sphi 0, %s25
      %p22 = scmp.ge.s32.totalorder %s21, 4
      %s31 = sphi 0, %s33
      %s34 = sphi 0, %s31
      %s35 = sphi 0, %s34
      %s51 = sphi 0, %s35
      %s55 = sphi 0, %s55
      %s57 = sphi 0, %s55
      %s58 = sphi 0, %s57
      %s72 = sphi 0, %s58
      %s76 = sphi 0, %s76
      %s78 = sphi 0, %s76
      %s79 = sphi 0, %s78
      %s93 = sphi 0, %s79
      %s97 = sphi 0, %s97
      %s99 = sphi 0, %s97
      %s100 = sphi 0, %s99
      %s114 = sphi 0, %s100
      %s118 = sphi 0, %s118
      %s120 = sphi 0, %s118
      %s121 = sphi 0, %s120
      %s135 = sphi 0, %s121
      %s139 = sphi 0, %s139
      %s141 = sphi 0, %s139
      %s142 = sphi 0, %s141
      %s156 = sphi 0, %s142
      %s160 = sphi 0, %s160
      %s162 = sphi 0, %s160
      %s163 = sphi 0, %s162
      %s177 = sphi 0, %s163
      %s183 = sphi 0, %s185
      %s186 = sphi 0, %s183
      %s187 = sphi 0, %s186
      %s203 = sphi 0, %s187
    $region4: #{tpu_custom_call.1} parent=1 // loop_header_branch
      %24 = sbr.rel (%p22) target = $region8
    $region5: #{tpu_custom_call.1} parent=1 // loop_body
      %s26 = ssub.s32 %s21, 1
      %s27 = ssub.s32 %s21, 2
      %s28 = sadd.s32 %s21, 1
      %s29 = ssub.s32 %s21, %s28
      %p30 = scmp.eq.s32.totalorder %s29, 0
      %s32 = sadd.s32 %s31, 1
      %s33 = scalar_select %p30, %s31, %s32
      %p36 = pneg %p30
      %p37 = scmp.eq.s32.totalorder %s21, 1
      %p38 = por %p36, %p37
      %p39 = scmp.ne.s32.totalorder %s31, %s34
      %p40 = scmp.eq.s32.totalorder %s21, 0
      %p41 = por %p39, %p40
      %p42 = scmp.ne.s32.totalorder %s31, %s34
      %p43 = scmp.eq.s32.totalorder %s26, 1
      %p44 = por %p42, %p43
      %p45 = scmp.ne.s32.totalorder %s34, %s35
      %p46 = scmp.eq.s32.totalorder %s26, 0
      %p47 = por %p45, %p46
      %p48 = scmp.ne.s32.totalorder %s34, %s35
      %p49 = scmp.eq.s32.totalorder %s27, 1
      %p50 = por %p48, %p49
      %p52 = scmp.ne.s32.totalorder %s35, %s51
      %p53 = scmp.eq.s32.totalorder %s27, 0
      %p54 = por %p52, %p53
      %s56 = sadd.s32 %s55, 1
      %p59 = scmp.eq.s32.totalorder %s21, 1
      %p60 = scmp.ne.s32.totalorder %s55, %s57
      %p61 = scmp.eq.s32.totalorder %s21, 0
      %p62 = por %p60, %p61
      %p63 = scmp.ne.s32.totalorder %s55, %s57
      %p64 = scmp.eq.s32.totalorder %s26, 1
      %p65 = por %p63, %p64
      %p66 = scmp.ne.s32.totalorder %s57, %s58
      %p67 = scmp.eq.s32.totalorder %s26, 0
      %p68 = por %p66, %p67
      %p69 = scmp.ne.s32.totalorder %s57, %s58
      %p70 = scmp.eq.s32.totalorder %s27, 1
      %p71 = por %p69, %p70
      %p73 = scmp.ne.s32.totalorder %s58, %s72
      %p74 = scmp.eq.s32.totalorder %s27, 0
      %p75 = por %p73, %p74
      %s77 = sadd.s32 %s76, 1
      %p80 = scmp.eq.s32.totalorder %s21, 1
      %p81 = scmp.ne.s32.totalorder %s76, %s78
      %p82 = scmp.eq.s32.totalorder %s21, 0
      %p83 = por %p81, %p82
      %p84 = scmp.ne.s32.totalorder %s76, %s78
      %p85 = scmp.eq.s32.totalorder %s26, 1
      %p86 = por %p84, %p85
      %p87 = scmp.ne.s32.totalorder %s78, %s79
      %p88 = scmp.eq.s32.totalorder %s26, 0
      %p89 = por %p87, %p88
      %p90 = scmp.ne.s32.totalorder %s78, %s79
      %p91 = scmp.eq.s32.totalorder %s27, 1
      %p92 = por %p90, %p91
      %p94 = scmp.ne.s32.totalorder %s79, %s93
      %p95 = scmp.eq.s32.totalorder %s27, 0
      %p96 = por %p94, %p95
      %s98 = sadd.s32 %s97, 1
      %p101 = scmp.eq.s32.totalorder %s21, 1
      %p102 = scmp.ne.s32.totalorder %s97, %s99
      %p103 = scmp.eq.s32.totalorder %s21, 0
      %p104 = por %p102, %p103
      %p105 = scmp.ne.s32.totalorder %s97, %s99
      %p106 = scmp.eq.s32.totalorder %s26, 1
      %p107 = por %p105, %p106
      %p108 = scmp.ne.s32.totalorder %s99, %s100
      %p109 = scmp.eq.s32.totalorder %s26, 0
      %p110 = por %p108, %p109
      %p111 = scmp.ne.s32.totalorder %s99, %s100
      %p112 = scmp.eq.s32.totalorder %s27, 1
      %p113 = por %p111, %p112
      %p115 = scmp.ne.s32.totalorder %s100, %s114
      %p116 = scmp.eq.s32.totalorder %s27, 0
      %p117 = por %p115, %p116
      %s119 = sadd.s32 %s118, 1
      %p122 = scmp.eq.s32.totalorder %s21, 1
      %p123 = scmp.ne.s32.totalorder %s118, %s120
      %p124 = scmp.eq.s32.totalorder %s21, 0
      %p125 = por %p123, %p124
      %p126 = scmp.ne.s32.totalorder %s118, %s120
      %p127 = scmp.eq.s32.totalorder %s26, 1
      %p128 = por %p126, %p127
      %p129 = scmp.ne.s32.totalorder %s120, %s121
      %p130 = scmp.eq.s32.totalorder %s26, 0
      %p131 = por %p129, %p130
      %p132 = scmp.ne.s32.totalorder %s120, %s121
      %p133 = scmp.eq.s32.totalorder %s27, 1
      %p134 = por %p132, %p133
      %p136 = scmp.ne.s32.totalorder %s121, %s135
      %p137 = scmp.eq.s32.totalorder %s27, 0
      %p138 = por %p136, %p137
      %s140 = sadd.s32 %s139, 1
      %p143 = scmp.eq.s32.totalorder %s21, 1
      %p144 = scmp.ne.s32.totalorder %s139, %s141
      %p145 = scmp.eq.s32.totalorder %s21, 0
      %p146 = por %p144, %p145
      %p147 = scmp.ne.s32.totalorder %s139, %s141
      %p148 = scmp.eq.s32.totalorder %s26, 1
      %p149 = por %p147, %p148
      %p150 = scmp.ne.s32.totalorder %s141, %s142
      %p151 = scmp.eq.s32.totalorder %s26, 0
      %p152 = por %p150, %p151
      %p153 = scmp.ne.s32.totalorder %s141, %s142
      %p154 = scmp.eq.s32.totalorder %s27, 1
      %p155 = por %p153, %p154
      %p157 = scmp.ne.s32.totalorder %s142, %s156
      %p158 = scmp.eq.s32.totalorder %s27, 0
      %p159 = por %p157, %p158
      %s161 = sadd.s32 %s160, 1
      %p164 = scmp.eq.s32.totalorder %s21, 1
      %p165 = scmp.ne.s32.totalorder %s160, %s162
      %p166 = scmp.eq.s32.totalorder %s21, 0
      %p167 = por %p165, %p166
      %p168 = scmp.ne.s32.totalorder %s160, %s162
      %p169 = scmp.eq.s32.totalorder %s26, 1
      %p170 = por %p168, %p169
      %p171 = scmp.ne.s32.totalorder %s162, %s163
      %p172 = scmp.eq.s32.totalorder %s26, 0
      %p173 = por %p171, %p172
      %p174 = scmp.ne.s32.totalorder %s162, %s163
      %p175 = scmp.eq.s32.totalorder %s27, 1
      %p176 = por %p174, %p175
      %p178 = scmp.ne.s32.totalorder %s163, %s177
      %p179 = scmp.eq.s32.totalorder %s27, 0
      %p180 = por %p178, %p179
      %s181 = ssub.s32 %s21, %s28
      %p182 = scmp.eq.s32.totalorder %s181, 0
      %s184 = sadd.s32 %s183, 1
      %s185 = scalar_select %p182, %s183, %s184
      %p188 = pneg %p182
      %p189 = scmp.eq.s32.totalorder %s21, 1
      %p190 = por %p188, %p189
      %p191 = scmp.ne.s32.totalorder %s183, %s186
      %p192 = scmp.eq.s32.totalorder %s21, 0
      %p193 = por %p191, %p192
      %p194 = scmp.ne.s32.totalorder %s183, %s186
      %p195 = scmp.eq.s32.totalorder %s26, 1
      %p196 = por %p194, %p195
      %p197 = scmp.ne.s32.totalorder %s186, %s187
      %p198 = scmp.eq.s32.totalorder %s26, 0
      %p199 = por %p197, %p198
      %p200 = scmp.ne.s32.totalorder %s186, %s187
      %p201 = scmp.eq.s32.totalorder %s27, 1
      %p202 = por %p200, %p201
      %p204 = scmp.ne.s32.totalorder %s187, %s203
      %p205 = scmp.eq.s32.totalorder %s27, 0
      %p206 = por %p204, %p205
      %p207 = scmp.le.s32.totalorder 1, %s21
      %p208 = scmp.lt.s32.totalorder %s21, 3
      %p209 = pnand %p207, %p208
      %p210 = pneg %p209
      // Predicated region
      $region9: #{tpu_custom_call.1} parent=5 // pred_check
        _
      $region10: #{tpu_custom_call.1} parent=5 // pred_check_branch
        %212 = sbr.rel (%p209) target = $region12
      $region11: #{tpu_custom_call.1} parent=5 // pred_region
        %s213 = ssub.s32 %s21, 1
        // Predicated region
        $region13: #{tpu_custom_call.1} parent=11 // pred_check
          %p214 = pneg %p68
        $region14: #{tpu_custom_call.1} parent=11 // pred_check_branch
          %216 = sbr.rel (%p214) target = $region16
        $region15: #{tpu_custom_call.1} parent=11 // pred_region
          %s218 = ssub.s32 9216, 9216
          %219 = vsyncadd [#allocation8], %s218
          %s220 = sshll.u32 [#allocation7], 4
          %s221 = int_to_ptr.vmem [resolvable:$true] %s220
          %226 = dma.hbm_to_vmem [thread:$0]  %s1, 9216, %s221, [#allocation8], 64, 64, 4
        $region16: #{tpu_custom_call.1} parent=11 // pred_fallthru
          _
        // Predicated region
        $region17: #{tpu_custom_call.1} parent=11 // pred_check
          %p227 = pneg %p89
        $region18: #{tpu_custom_call.1} parent=11 // pred_check_branch
          %229 = sbr.rel (%p227) target = $region20
        $region19: #{tpu_custom_call.1} parent=11 // pred_region
          _
        $region20: #{tpu_custom_call.1} parent=11 // pred_fallthru
          _
        // Predicated region
        $region21: #{tpu_custom_call.1} parent=11 // pred_check
          %p230 = pneg %p110
        $region22: #{tpu_custom_call.1} parent=11 // pred_check_branch
          %232 = sbr.rel (%p230) target = $region24
        $region23: #{tpu_custom_call.1} parent=11 // pred_region
          %s234 = ssub.s32 9216, 9216
          %235 = vsyncadd [#allocation8], %s234
          %s236 = sshll.u32 [#allocation9], 4
          %s237 = int_to_ptr.vmem [resolvable:$true] %s236
          %242 = dma.hbm_to_vmem [thread:$0]  %s3, 9216, %s237, [#allocation8], 64, 64, 4
        $region24: #{tpu_custom_call.1} parent=11 // pred_fallthru
          _
        // Predicated region
        $region25: #{tpu_custom_call.1} parent=11 // pred_check
          %p243 = pneg %p131
        $region26: #{tpu_custom_call.1} parent=11 // pred_check_branch
          %245 = sbr.rel (%p243) target = $region28
        $region27: #{tpu_custom_call.1} parent=11 // pred_region
          _
        $region28: #{tpu_custom_call.1} parent=11 // pred_fallthru
          _
        // Predicated region
        $region29: #{tpu_custom_call.1} parent=11 // pred_check
          %p246 = pneg %p152
        $region30: #{tpu_custom_call.1} parent=11 // pred_check_branch
          %248 = sbr.rel (%p246) target = $region32
        $region31: #{tpu_custom_call.1} parent=11 // pred_region
          %s250 = ssub.s32 2048, 2048
          %251 = vsyncadd [#allocation11], %s250
          %s252 = sshll.u32 [#allocation10], 4
          %s253 = int_to_ptr.vmem [resolvable:$true] %s252
          %258 = dma.hbm_to_vmem [thread:$0]  %s5, 2048, %s253, [#allocation11], 128, 128, 8
        $region32: #{tpu_custom_call.1} parent=11 // pred_fallthru
          _
        // Predicated region
        $region33: #{tpu_custom_call.1} parent=11 // pred_check
          %p259 = pneg %p173
        $region34: #{tpu_custom_call.1} parent=11 // pred_check_branch
          %261 = sbr.rel (%p259) target = $region36
        $region35: #{tpu_custom_call.1} parent=11 // pred_region
          %s263 = ssub.s32 2048, 2048
          %264 = vsyncadd [#allocation11], %s263
          %s265 = sshll.u32 [#allocation12], 4
          %s266 = int_to_ptr.vmem [resolvable:$true] %s265
          %271 = dma.hbm_to_vmem [thread:$0]  %s6, 2048, %s266, [#allocation11], 128, 128, 8
        $region36: #{tpu_custom_call.1} parent=11 // pred_fallthru
          _
      $region12: #{tpu_custom_call.1} parent=5 // pred_fallthru
        _
      %p272 = scmp.lt.s32.totalorder %s21, 2
      // Predicated region
      $region37: #{tpu_custom_call.1} parent=5 // pred_check
        %p273 = pneg %p272
      $region38: #{tpu_custom_call.1} parent=5 // pred_check_branch
        %275 = sbr.rel (%p273) target = $region40
      $region39: #{tpu_custom_call.1} parent=5 // pred_region
        // Predicated region
        $region41: #{tpu_custom_call.1} parent=39 // pred_check
          %p276 = pneg %p41
        $region42: #{tpu_custom_call.1} parent=39 // pred_check_branch
          %278 = sbr.rel (%p276) target = $region44
        $region43: #{tpu_custom_call.1} parent=39 // pred_region
          %s279 = sand.u32 %s31, 1
          %s280 = scalar_lea.sflag [#allocation5], %s279
          %s281 = sand.u32 %s31, 1
          %s282 = smul.addr %s281, 128
          %s283 = scalar_lea.vmem [#allocation4], %s282
          %s284 = smul.u32 2, %s21
          %s286 = ssub.s32 2048, 2048
          %287 = vsyncadd %s280, %s286
          %s288 = smul.addr %s284, 8
          %s289 = smul.addr %s288, 128
          %s290 = scalar_lea.hbm %s0, %s289
          %s291 = sshll.u32 %s283, 4
          %s292 = int_to_ptr.vmem [resolvable:$true] %s291
          %297 = dma.hbm_to_vmem [thread:$0]  %s290, 2048, %s292, %s280, 128, 128, 8
        $region44: #{tpu_custom_call.1} parent=39 // pred_fallthru
          _
      $region40: #{tpu_custom_call.1} parent=5 // pred_fallthru
        _
      %p298 = scmp.le.s32.totalorder 1, %s21
      %p299 = scmp.lt.s32.totalorder %s21, 3
      %p300 = pnand %p298, %p299
      %p301 = pneg %p300
      // Predicated region
      $region45: #{tpu_custom_call.1} parent=5 // pred_check
        _
      $region46: #{tpu_custom_call.1} parent=5 // pred_check_branch
        %303 = sbr.rel (%p300) target = $region48
      $region47: #{tpu_custom_call.1} parent=5 // pred_region
        %s304 = ssub.s32 %s21, 1
        %s305 = sand.u32 %s34, 1
        %s306 = scalar_lea.sflag [#allocation5], %s305
        %s307 = sand.u32 %s34, 1
        %s308 = smul.addr %s307, 128
        %s309 = scalar_lea.vmem [#allocation4], %s308
        // Predicated region
        $region49: #{tpu_custom_call.1} parent=47 // pred_check
          %p310 = pneg %p47
        $region50: #{tpu_custom_call.1} parent=47 // pred_check_branch
          %312 = sbr.rel (%p310) target = $region52
        $region51: #{tpu_custom_call.1} parent=47 // pred_region
          %313 = dma.done %s306, 2048
        $region52: #{tpu_custom_call.1} parent=47 // pred_fallthru
          _
        // Predicated region
        $region53: #{tpu_custom_call.1} parent=47 // pred_check
          %p314 = pneg %p68
        $region54: #{tpu_custom_call.1} parent=47 // pred_check_branch
          %316 = sbr.rel (%p314) target = $region56
        $region55: #{tpu_custom_call.1} parent=47 // pred_region
          %317 = dma.done [#allocation8], 9216
        $region56: #{tpu_custom_call.1} parent=47 // pred_fallthru
          _
        // Predicated region
        $region57: #{tpu_custom_call.1} parent=47 // pred_check
          %p318 = pneg %p110
        $region58: #{tpu_custom_call.1} parent=47 // pred_check_branch
          %320 = sbr.rel (%p318) target = $region60
        $region59: #{tpu_custom_call.1} parent=47 // pred_region
          %321 = dma.done [#allocation8], 9216
        $region60: #{tpu_custom_call.1} parent=47 // pred_fallthru
          _
        // Predicated region
        $region61: #{tpu_custom_call.1} parent=47 // pred_check
          %p322 = pneg %p152
        $region62: #{tpu_custom_call.1} parent=47 // pred_check_branch
          %324 = sbr.rel (%p322) target = $region64
        $region63: #{tpu_custom_call.1} parent=47 // pred_region
          %325 = dma.done [#allocation11], 2048
        $region64: #{tpu_custom_call.1} parent=47 // pred_fallthru
          _
        // Predicated region
        $region65: #{tpu_custom_call.1} parent=47 // pred_check
          %p326 = pneg %p173
        $region66: #{tpu_custom_call.1} parent=47 // pred_check_branch
          %328 = sbr.rel (%p326) target = $region68
        $region67: #{tpu_custom_call.1} parent=47 // pred_region
          %329 = dma.done [#allocation11], 2048
        $region68: #{tpu_custom_call.1} parent=47 // pred_fallthru
          _
        %s330 = sand.u32 %s34, 1
        %s331 = scalar_lea.sflag [#allocation5], %s330
        %s332 = sand.u32 %s34, 1
        %s333 = smul.addr %s332, 128
        %s334 = scalar_lea.vmem [#allocation4], %s333
        %p335 = pneg %p47
        %p336 = pneg %p44
        %p337 = pneg %p68
        %p338 = pneg %p65
        %p339 = pneg %p89
        %p340 = pneg %p86
        %p341 = pneg %p110
        %p342 = pneg %p107
        %p343 = pneg %p131
        %p344 = pneg %p128
        %p345 = pneg %p152
        %p346 = pneg %p149
        %p347 = pneg %p173
        %p348 = pneg %p170
        %p349 = pneg %p199
        %p350 = pneg %p196
        %s351 = sand.u32 %s186, 1
        %s352 = scalar_lea.sflag [#allocation6], %s351
        %s353 = sand.u32 %s186, 1
        %s354 = smul.addr %s353, 128
        %s355 = scalar_lea.vmem [#allocation13], %s354
        %s356 = smul.u32 2, %s26
        %s357 = smul.u32 2, %s26
        %v361 = vlaneseq
        %v362 = vshrl.u32 %v361, 7
        %v363 = vadd.s32 %v362, 8
        %v364 = vadd.s32 %v362, 16
        %v365 = vadd.s32 %v362, 24
        %v366 = vadd.s32 %v362, 32
        %v367 = vadd.s32 %v362, 40
        %v368 = vadd.s32 %v362, 48
        %v369 = vadd.s32 %v362, 56
        %vm370 = vcmp.lt.s32.totalorder %v362, 0
        %v371 = vsub.s32 0, %v362
        %v372 = vsel %vm370, %v371, %v362
        %v373 = vshrl.u32 %v372, 3
        %v374 = vand.u32 %v372, 7
        %v375 = vsub.s32 0, %v374
        %v376 = vsel %vm370, %v375, %v374
        %vm377 = vcmp.lt.s32.totalorder %v363, 0
        %v378 = vsub.s32 0, %v363
        %v379 = vsel %vm377, %v378, %v363
        %v380 = vshrl.u32 %v379, 3
        %v381 = vand.u32 %v379, 7
        %v382 = vsub.s32 0, %v381
        %v383 = vsel %vm377, %v382, %v381
        %vm384 = vcmp.lt.s32.totalorder %v364, 0
        %v385 = vsub.s32 0, %v364
        %v386 = vsel %vm384, %v385, %v364
        %v387 = vshrl.u32 %v386, 3
        %v388 = vand.u32 %v386, 7
        %v389 = vsub.s32 0, %v388
        %v390 = vsel %vm384, %v389, %v388
        %vm391 = vcmp.lt.s32.totalorder %v365, 0
        %v392 = vsub.s32 0, %v365
        %v393 = vsel %vm391, %v392, %v365
        %v394 = vshrl.u32 %v393, 3
        %v395 = vand.u32 %v393, 7
        %v396 = vsub.s32 0, %v395
        %v397 = vsel %vm391, %v396, %v395
        %vm398 = vcmp.lt.s32.totalorder %v366, 0
        %v399 = vsub.s32 0, %v366
        %v400 = vsel %vm398, %v399, %v366
        %v401 = vshrl.u32 %v400, 3
        %v402 = vand.u32 %v400, 7
        %v403 = vsub.s32 0, %v402
        %v404 = vsel %vm398, %v403, %v402
        %vm405 = vcmp.lt.s32.totalorder %v367, 0
        %v406 = vsub.s32 0, %v367
        %v407 = vsel %vm405, %v406, %v367
        %v408 = vshrl.u32 %v407, 3
        %v409 = vand.u32 %v407, 7
        %v410 = vsub.s32 0, %v409
        %v411 = vsel %vm405, %v410, %v409
        %vm412 = vcmp.lt.s32.totalorder %v368, 0
        %v413 = vsub.s32 0, %v368
        %v414 = vsel %vm412, %v413, %v368
        %v415 = vshrl.u32 %v414, 3
        %v416 = vand.u32 %v414, 7
        %v417 = vsub.s32 0, %v416
        %v418 = vsel %vm412, %v417, %v416
        %vm419 = vcmp.lt.s32.totalorder %v369, 0
        %v420 = vsub.s32 0, %v369
        %v421 = vsel %vm419, %v420, %v369
        %v422 = vshrl.u32 %v421, 3
        %v423 = vand.u32 %v421, 7
        %v424 = vsub.s32 0, %v423
        %v425 = vsel %vm419, %v424, %v423
        %vm426 = vcmp.ne.s32.totalorder %v376, 0
        %vm427 = vcmp.ne.s32.totalorder %v383, 0
        %vm428 = vcmp.ne.s32.totalorder %v390, 0
        %vm429 = vcmp.ne.s32.totalorder %v397, 0
        %vm430 = vcmp.ne.s32.totalorder %v404, 0
        %vm431 = vcmp.ne.s32.totalorder %v411, 0
        %vm432 = vcmp.ne.s32.totalorder %v418, 0
        %vm433 = vcmp.ne.s32.totalorder %v425, 0
        %vm434 = vcmp.lt.s32.totalorder %v376, 0
        %vm435 = vcmp.lt.s32.totalorder %v383, 0
        %vm436 = vcmp.lt.s32.totalorder %v390, 0
        %vm437 = vcmp.lt.s32.totalorder %v397, 0
        %vm438 = vcmp.lt.s32.totalorder %v404, 0
        %vm439 = vcmp.lt.s32.totalorder %v411, 0
        %vm440 = vcmp.lt.s32.totalorder %v418, 0
        %vm441 = vcmp.lt.s32.totalorder %v425, 0
        %vm442 = vmand %vm434, %vm426
        %vm443 = vmand %vm435, %vm427
        %vm444 = vmand %vm436, %vm428
        %vm445 = vmand %vm437, %vm429
        %vm446 = vmand %vm438, %vm430
        %vm447 = vmand %vm439, %vm431
        %vm448 = vmand %vm440, %vm432
        %vm449 = vmand %vm441, %vm433
        %v450 = vadd.s32 %v376, 8
        %v451 = vadd.s32 %v383, 8
        %v452 = vadd.s32 %v390, 8
        %v453 = vadd.s32 %v397, 8
        %v454 = vadd.s32 %v404, 8
        %v455 = vadd.s32 %v411, 8
        %v456 = vadd.s32 %v418, 8
        %v457 = vadd.s32 %v425, 8
        %v458 = vsel %vm442, %v450, %v376
        %v459 = vsel %vm443, %v451, %v383
        %v460 = vsel %vm444, %v452, %v390
        %v461 = vsel %vm445, %v453, %v397
        %v462 = vsel %vm446, %v454, %v404
        %v463 = vsel %vm447, %v455, %v411
        %v464 = vsel %vm448, %v456, %v418
        %v465 = vsel %vm449, %v457, %v425
        %vm466 = vcmp.ne.s32.totalorder %v458, 0
        %vm467 = vcmp.ne.s32.totalorder %v459, 0
        %vm468 = vcmp.ne.s32.totalorder %v460, 0
        %vm469 = vcmp.ne.s32.totalorder %v461, 0
        %vm470 = vcmp.ne.s32.totalorder %v462, 0
        %vm471 = vcmp.ne.s32.totalorder %v463, 0
        %vm472 = vcmp.ne.s32.totalorder %v464, 0
        %vm473 = vcmp.ne.s32.totalorder %v465, 0
        %vm474 = vcmp.ne.s32.totalorder %v458, 7
        %vm475 = vcmp.ne.s32.totalorder %v459, 7
        %vm476 = vcmp.ne.s32.totalorder %v460, 7
        %vm477 = vcmp.ne.s32.totalorder %v461, 7
        %vm478 = vcmp.ne.s32.totalorder %v462, 7
        %vm479 = vcmp.ne.s32.totalorder %v463, 7
        %vm480 = vcmp.ne.s32.totalorder %v464, 7
        %vm481 = vcmp.ne.s32.totalorder %v465, 7
        %482 = vst [vmem:[#allocation2] sm:$0xff] 0
        %483 = vst [vmem:[#allocation2 + $0x28] sm:$0xff] 0
        %v484 = vld [vmem:[%s309] sm:$0xff]
        %v485 = vld [vmem:[%s309 + $0x8] sm:$0xff]
        %v486 = vld [vmem:[%s309 + $0x10] sm:$0xff]
        %v487 = vld [vmem:[%s309 + $0x18] sm:$0xff]
        %v488 = vld [vmem:[%s309 + $0x20] sm:$0xff]
        %v489 = vld [vmem:[%s309 + $0x28] sm:$0xff]
        %v490 = vld [vmem:[%s309 + $0x30] sm:$0xff]
        %v491 = vld [vmem:[%s309 + $0x38] sm:$0xff]
        %v492 = vpack.c.bf16 %v485, %v484
        %v493 = vpack.c.bf16 %v487, %v486
        %v494 = vpack.c.bf16 %v489, %v488
        %v495 = vpack.c.bf16 %v491, %v490
        %496 = vst [vmem:[#allocation2 + $0x8] sm:$0xff] %v492
        %497 = vst [vmem:[#allocation2 + $0x10] sm:$0xff] %v493
        %498 = vst [vmem:[#allocation2 + $0x18] sm:$0xff] %v494
        %499 = vst [vmem:[#allocation2 + $0x20] sm:$0xff] %v495
        %s500 = scalar_lea.vmem [#allocation2], 48
        %501 = vst [vmem:[%s500] sm:$0xff] 0
        %502 = vst [vmem:[%s500 + $0x28] sm:$0xff] 0
        %s503 = scalar_lea.vmem %s309, 64 [#allocation4]
        %v504 = vld [vmem:[%s503] sm:$0xff]
        %v505 = vld [vmem:[%s503 + $0x8] sm:$0xff]
        %v506 = vld [vmem:[%s503 + $0x10] sm:$0xff]
        %v507 = vld [vmem:[%s503 + $0x18] sm:$0xff]
        %v508 = vld [vmem:[%s503 + $0x20] sm:$0xff]
        %v509 = vld [vmem:[%s503 + $0x28] sm:$0xff]
        %v510 = vld [vmem:[%s503 + $0x30] sm:$0xff]
        %v511 = vld [vmem:[%s503 + $0x38] sm:$0xff]
        %v512 = vpack.c.bf16 %v505, %v504
        %v513 = vpack.c.bf16 %v507, %v506
        %v514 = vpack.c.bf16 %v509, %v508
        %v515 = vpack.c.bf16 %v511, %v510
        %516 = vst [vmem:[%s500 + $0x8] sm:$0xff] %v512
        %517 = vst [vmem:[%s500 + $0x10] sm:$0xff] %v513
        %518 = vst [vmem:[%s500 + $0x18] sm:$0xff] %v514
        %519 = vst [vmem:[%s500 + $0x20] sm:$0xff] %v515
        %v520 = vld [vmem:[#allocation2] sm:$0xf8]
        %v521 = vld [vmem:[#allocation2 + $0x8] sm:$0xff]
        %v522 = vld [vmem:[#allocation2 + $0x10] sm:$0xff]
        %v523 = vld [vmem:[#allocation2 + $0x18] sm:$0xff]
        %v524 = vld [vmem:[#allocation2 + $0x20] sm:$0xf]
        %vm525 = vmpackc.low %vm466, %vm466
        %vm526 = vmpackc.low %vm467, %vm467
        %vm527 = vmpackc.low %vm468, %vm468
        %vm528 = vmpackc.low %vm469, %vm469
        %vm529 = vmpackc.low %vm470, %vm470
        %vm530 = vmpackc.low %vm471, %vm471
        %vm531 = vmpackc.low %vm472, %vm472
        %vm532 = vmpackc.low %vm473, %vm473
        %v533 = vsel %vm525, 65537, 0
        %v534 = vsel %vm526, 65537, 0
        %v535 = vsel %vm527, 65537, 0
        %v536 = vsel %vm528, 65537, 0
        %v537 = vsel %vm529, 65537, 0
        %v538 = vsel %vm530, 65537, 0
        %v539 = vsel %vm531, 65537, 0
        %v540 = vsel %vm532, 65537, 0
        %v541 = vunpack.c.l.b16 %v533
        %v542 = vunpack.c.l.b16 %v534
        %v543 = vunpack.c.l.b16 %v535
        %v544 = vunpack.c.l.b16 %v536
        %v545 = vunpack.c.l.b16 %v537
        %v546 = vunpack.c.l.b16 %v538
        %v547 = vunpack.c.l.b16 %v539
        %v548 = vunpack.c.l.b16 %v540
        %v549 = vpack.c.b16 %v542, %v541
        %v550 = vpack.c.b16 %v544, %v543
        %v551 = vpack.c.b16 %v546, %v545
        %v552 = vpack.c.b16 %v548, %v547
        %vm553 = vsmask.f32 3328
        %v555 = vshrl.u32 %v549, 16
        %v557 = vrot.slane %v555, 4
        %v558 = vshll.u32 %v549, 16
        %v560 = vrot.slane %v558, 5
        %v561 = vor.u32 %v557, %v560
        %v563 = vshrl.u32 %v550, 16
        %v565 = vrot.slane %v563, 4
        %v566 = vshll.u32 %v550, 16
        %v568 = vrot.slane %v566, 5
        %v569 = vor.u32 %v565, %v568
        %v570 = vsel %vm553, %v561, %v569
        %v572 = vshrl.u32 %v551, 16
        %v574 = vrot.slane %v572, 4
        %v575 = vshll.u32 %v551, 16
        %v577 = vrot.slane %v575, 5
        %v578 = vor.u32 %v574, %v577
        %v579 = vsel %vm553, %v569, %v578
        %v581 = vshrl.u32 %v552, 16
        %v583 = vrot.slane %v581, 4
        %v584 = vshll.u32 %v552, 16
        %v586 = vrot.slane %v584, 5
        %v587 = vor.u32 %v583, %v586
        %v588 = vsel %vm553, %v578, %v587
        %vm589 = vcmp.ne.s16.totalorder %v561, 0
        %vm590 = vcmp.ne.s16.totalorder %v570, 0
        %vm591 = vcmp.ne.s16.totalorder %v579, 0
        %vm592 = vcmp.ne.s16.totalorder %v588, 0
        %vm593 = vcmp.ne.s16.totalorder %v587, 0
        %v594 = vsel %vm589, %v520, 0
        %v595 = vsel %vm590, %v521, 0
        %v596 = vsel %vm591, %v522, 0
        %v597 = vsel %vm592, %v523, 0
        %v598 = vsel %vm593, %v524, 0
        %vm599 = vsmask.f32 4352
        %v601 = vshrl.u32 %v594, 16
        %v603 = vrot.slane %v601, 3
        %v604 = vshll.u32 %v594, 16
        %v606 = vrot.slane %v604, 4
        %v607 = vor.u32 %v603, %v606
        %v609 = vshrl.u32 %v595, 16
        %v611 = vrot.slane %v609, 3
        %v612 = vshll.u32 %v595, 16
        %v614 = vrot.slane %v612, 4
        %v615 = vor.u32 %v611, %v614
        %v616 = vsel %vm599, %v607, %v615
        %v618 = vshrl.u32 %v596, 16
        %v620 = vrot.slane %v618, 3
        %v621 = vshll.u32 %v596, 16
        %v623 = vrot.slane %v621, 4
        %v624 = vor.u32 %v620, %v623
        %v625 = vsel %vm599, %v615, %v624
        %v627 = vshrl.u32 %v597, 16
        %v629 = vrot.slane %v627, 3
        %v630 = vshll.u32 %v597, 16
        %v632 = vrot.slane %v630, 4
        %v633 = vor.u32 %v629, %v632
        %v634 = vsel %vm599, %v624, %v633
        %v636 = vshrl.u32 %v598, 16
        %v638 = vrot.slane %v636, 3
        %v639 = vshll.u32 %v598, 16
        %v641 = vrot.slane %v639, 4
        %v642 = vor.u32 %v638, %v641
        %v643 = vsel %vm599, %v633, %v642
        %648 = vst [vmem:[#allocation3] sm:$0xff] %v616
        %649 = vst [vmem:[#allocation3 + $0x48] sm:$0xff] %v625
        %650 = vst [vmem:[#allocation3 + $0x90] sm:$0xff] %v634
        %651 = vst [vmem:[#allocation3 + $0xd8] sm:$0xff] %v643
        %v652 = vld [vmem:[#allocation2] sm:$0xf0]
        %v653 = vld [vmem:[#allocation2 + $0x8] sm:$0xff]
        %v654 = vld [vmem:[#allocation2 + $0x10] sm:$0xff]
        %v655 = vld [vmem:[#allocation2 + $0x18] sm:$0xff]
        %v656 = vld [vmem:[#allocation2 + $0x20] sm:$0xf]
        %vm662 = vcmask 1043456
        %v663 = vrot.slane %v652, 4
        %v664 = vrot.slane %v653, 4
        %v665 = vsel %vm662, %v663, %v664
        %v666 = vrot.slane %v654, 4
        %v667 = vsel %vm662, %v664, %v666
        %v668 = vrot.slane %v655, 4
        %v669 = vsel %vm662, %v666, %v668
        %v670 = vrot.slane %v656, 4
        %v671 = vsel %vm662, %v668, %v670
        %676 = vst [vmem:[#allocation3 + $0x8] sm:$0xff] %v665
        %677 = vst [vmem:[#allocation3 + $0x50] sm:$0xff] %v667
        %678 = vst [vmem:[#allocation3 + $0x98] sm:$0xff] %v669
        %679 = vst [vmem:[#allocation3 + $0xe0] sm:$0xff] %v671
        %v680 = vld [vmem:[#allocation2] sm:$0xf0]
        %v681 = vld [vmem:[#allocation2 + $0x8] sm:$0xff]
        %v682 = vld [vmem:[#allocation2 + $0x10] sm:$0xff]
        %v683 = vld [vmem:[#allocation2 + $0x18] sm:$0xff]
        %v684 = vld [vmem:[#allocation2 + $0x20] sm:$0x1f]
        %vm685 = vmpackc.low %vm474, %vm474
        %vm686 = vmpackc.low %vm475, %vm475
        %vm687 = vmpackc.low %vm476, %vm476
        %vm688 = vmpackc.low %vm477, %vm477
        %vm689 = vmpackc.low %vm478, %vm478
        %vm690 = vmpackc.low %vm479, %vm479
        %vm691 = vmpackc.low %vm480, %vm480
        %vm692 = vmpackc.low %vm481, %vm481
        %v693 = vsel %vm685, 65537, 0
        %v694 = vsel %vm686, 65537, 0
        %v695 = vsel %vm687, 65537, 0
        %v696 = vsel %vm688, 65537, 0
        %v697 = vsel %vm689, 65537, 0
        %v698 = vsel %vm690, 65537, 0
        %v699 = vsel %vm691, 65537, 0
        %v700 = vsel %vm692, 65537, 0
        %v701 = vunpack.c.l.b16 %v693
        %v702 = vunpack.c.l.b16 %v694
        %v703 = vunpack.c.l.b16 %v695
        %v704 = vunpack.c.l.b16 %v696
        %v705 = vunpack.c.l.b16 %v697
        %v706 = vunpack.c.l.b16 %v698
        %v707 = vunpack.c.l.b16 %v699
        %v708 = vunpack.c.l.b16 %v700
        %v709 = vpack.c.b16 %v702, %v701
        %v710 = vpack.c.b16 %v704, %v703
        %v711 = vpack.c.b16 %v706, %v705
        %v712 = vpack.c.b16 %v708, %v707
        %v714 = vshrl.u32 %v709, 16
        %v716 = vrot.slane %v714, 3
        %v717 = vshll.u32 %v709, 16
        %v719 = vrot.slane %v717, 4
        %v720 = vor.u32 %v716, %v719
        %v722 = vshrl.u32 %v710, 16
        %v724 = vrot.slane %v722, 3
        %v725 = vshll.u32 %v710, 16
        %v727 = vrot.slane %v725, 4
        %v728 = vor.u32 %v724, %v727
        %v729 = vsel %vm599, %v720, %v728
        %v731 = vshrl.u32 %v711, 16
        %v733 = vrot.slane %v731, 3
        %v734 = vshll.u32 %v711, 16
        %v736 = vrot.slane %v734, 4
        %v737 = vor.u32 %v733, %v736
        %v738 = vsel %vm599, %v728, %v737
        %v740 = vshrl.u32 %v712, 16
        %v742 = vrot.slane %v740, 3
        %v743 = vshll.u32 %v712, 16
        %v745 = vrot.slane %v743, 4
        %v746 = vor.u32 %v742, %v745
        %v747 = vsel %vm599, %v737, %v746
        %vm748 = vcmp.ne.s16.totalorder %v720, 0
        %vm749 = vcmp.ne.s16.totalorder %v729, 0
        %vm750 = vcmp.ne.s16.totalorder %v738, 0
        %vm751 = vcmp.ne.s16.totalorder %v747, 0
        %vm752 = vcmp.ne.s16.totalorder %v746, 0
        %v753 = vsel %vm748, %v680, 0
        %v754 = vsel %vm749, %v681, 0
        %v755 = vsel %vm750, %v682, 0
        %v756 = vsel %vm751, %v683, 0
        %v757 = vsel %vm752, %v684, 0
        %v759 = vshrl.u32 %v753, 16
        %v761 = vrot.slane %v759, 4
        %v762 = vshll.u32 %v753, 16
        %v764 = vrot.slane %v762, 5
        %v765 = vor.u32 %v761, %v764
        %v767 = vshrl.u32 %v754, 16
        %v769 = vrot.slane %v767, 4
        %v770 = vshll.u32 %v754, 16
        %v772 = vrot.slane %v770, 5
        %v773 = vor.u32 %v769, %v772
        %v774 = vsel %vm553, %v765, %v773
        %v776 = vshrl.u32 %v755, 16
        %v778 = vrot.slane %v776, 4
        %v779 = vshll.u32 %v755, 16
        %v781 = vrot.slane %v779, 5
        %v782 = vor.u32 %v778, %v781
        %v783 = vsel %vm553, %v773, %v782
        %v785 = vshrl.u32 %v756, 16
        %v787 = vrot.slane %v785, 4
        %v788 = vshll.u32 %v756, 16
        %v790 = vrot.slane %v788, 5
        %v791 = vor.u32 %v787, %v790
        %v792 = vsel %vm553, %v782, %v791
        %v794 = vshrl.u32 %v757, 16
        %v796 = vrot.slane %v794, 4
        %v797 = vshll.u32 %v757, 16
        %v799 = vrot.slane %v797, 5
        %v800 = vor.u32 %v796, %v799
        %v801 = vsel %vm553, %v791, %v800
        %806 = vst [vmem:[#allocation3 + $0x10] sm:$0xff] %v774
        %807 = vst [vmem:[#allocation3 + $0x58] sm:$0xff] %v783
        %808 = vst [vmem:[#allocation3 + $0xa0] sm:$0xff] %v792
        %809 = vst [vmem:[#allocation3 + $0xe8] sm:$0xff] %v801
        %v810 = vld [vmem:[#allocation2] sm:$0x80]
        %v811 = vld [vmem:[#allocation2 + $0x8] sm:$0xff]
        %v812 = vld [vmem:[#allocation2 + $0x10] sm:$0xff]
        %v813 = vld [vmem:[#allocation2 + $0x18] sm:$0xff]
        %v814 = vld [vmem:[#allocation2 + $0x20] sm:$0xff]
        %vm815 = vsmask.f32 7424
        %v816 = vrot.slane %v558, 1
        %v817 = vor.u32 %v555, %v816
        %v818 = vrot.slane %v566, 1
        %v819 = vsel %vm815, %v817, %v818
        %v820 = vor.u32 %v563, %v818
        %v821 = vrot.slane %v575, 1
        %v822 = vsel %vm815, %v820, %v821
        %v823 = vor.u32 %v572, %v821
        %v824 = vrot.slane %v584, 1
        %v825 = vsel %vm815, %v823, %v824
        %v826 = vor.u32 %v581, %v824
        %vm827 = vcmp.ne.s16.totalorder %v816, 0
        %vm828 = vcmp.ne.s16.totalorder %v819, 0
        %vm829 = vcmp.ne.s16.totalorder %v822, 0
        %vm830 = vcmp.ne.s16.totalorder %v825, 0
        %vm831 = vcmp.ne.s16.totalorder %v826, 0
        %v832 = vsel %vm827, %v810, 0
        %v833 = vsel %vm828, %v811, 0
        %v834 = vsel %vm829, %v812, 0
        %v835 = vsel %vm830, %v813, 0
        %v836 = vsel %vm831, %v814, 0
        %vm837 = vsmask.f32 256
        %v839 = vshrl.u32 %v832, 16
        %v841 = vrot.slane %v839, 7
        %v843 = vshrl.u32 %v833, 16
        %v845 = vrot.slane %v843, 7
        %v846 = vshll.u32 %v833, 16
        %v848 = vor.u32 %v845, %v846
        %v849 = vsel %vm837, %v841, %v848
        %v851 = vshrl.u32 %v834, 16
        %v853 = vrot.slane %v851, 7
        %v854 = vshll.u32 %v834, 16
        %v856 = vor.u32 %v853, %v854
        %v857 = vsel %vm837, %v845, %v856
        %v859 = vshrl.u32 %v835, 16
        %v861 = vrot.slane %v859, 7
        %v862 = vshll.u32 %v835, 16
        %v864 = vor.u32 %v861, %v862
        %v865 = vsel %vm837, %v853, %v864
        %v867 = vshrl.u32 %v836, 16
        %v869 = vrot.slane %v867, 7
        %v870 = vshll.u32 %v836, 16
        %v872 = vor.u32 %v869, %v870
        %v873 = vsel %vm837, %v861, %v872
        %878 = vst [vmem:[#allocation3 + $0x18] sm:$0xff] %v849
        %879 = vst [vmem:[#allocation3 + $0x60] sm:$0xff] %v857
        %880 = vst [vmem:[#allocation3 + $0xa8] sm:$0xff] %v865
        %881 = vst [vmem:[#allocation3 + $0xf0] sm:$0xff] %v873
        %v882 = vld [vmem:[#allocation2 + $0x8] sm:$0xff]
        %v883 = vld [vmem:[#allocation2 + $0x10] sm:$0xff]
        %v884 = vld [vmem:[#allocation2 + $0x18] sm:$0xff]
        %v885 = vld [vmem:[#allocation2 + $0x20] sm:$0xff]
        %886 = vst [vmem:[#allocation3 + $0x20] sm:$0xff] %v882
        %887 = vst [vmem:[#allocation3 + $0x68] sm:$0xff] %v883
        %888 = vst [vmem:[#allocation3 + $0xb0] sm:$0xff] %v884
        %889 = vst [vmem:[#allocation3 + $0xf8] sm:$0xff] %v885
        %v890 = vld [vmem:[#allocation2 + $0x8] sm:$0xff]
        %v891 = vld [vmem:[#allocation2 + $0x10] sm:$0xff]
        %v892 = vld [vmem:[#allocation2 + $0x18] sm:$0xff]
        %v893 = vld [vmem:[#allocation2 + $0x20] sm:$0xff]
        %v894 = vld [vmem:[#allocation2 + $0x28] sm:$0x1]
        %v895 = vrot.slane %v714, 7
        %v896 = vor.u32 %v895, %v717
        %v897 = vrot.slane %v722, 7
        %v898 = vor.u32 %v897, %v725
        %v899 = vsel %vm837, %v895, %v898
        %v900 = vrot.slane %v731, 7
        %v901 = vor.u32 %v900, %v734
        %v902 = vsel %vm837, %v897, %v901
        %v903 = vrot.slane %v740, 7
        %v904 = vor.u32 %v903, %v743
        %v905 = vsel %vm837, %v900, %v904
        %vm906 = vcmp.ne.s16.totalorder %v896, 0
        %vm907 = vcmp.ne.s16.totalorder %v899, 0
        %vm908 = vcmp.ne.s16.totalorder %v902, 0
        %vm909 = vcmp.ne.s16.totalorder %v905, 0
        %vm910 = vcmp.ne.s16.totalorder %v903, 0
        %v911 = vsel %vm906, %v890, 0
        %v912 = vsel %vm907, %v891, 0
        %v913 = vsel %vm908, %v892, 0
        %v914 = vsel %vm909, %v893, 0
        %v915 = vsel %vm910, %v894, 0
        %v917 = vshrl.u32 %v911, 16
        %v919 = vshll.u32 %v911, 16
        %v921 = vrot.slane %v919, 1
        %v922 = vor.u32 %v917, %v921
        %v924 = vshll.u32 %v912, 16
        %v926 = vrot.slane %v924, 1
        %v927 = vsel %vm815, %v922, %v926
        %v928 = vshrl.u32 %v912, 16
        %v930 = vor.u32 %v928, %v926
        %v932 = vshll.u32 %v913, 16
        %v934 = vrot.slane %v932, 1
        %v935 = vsel %vm815, %v930, %v934
        %v936 = vshrl.u32 %v913, 16
        %v938 = vor.u32 %v936, %v934
        %v940 = vshll.u32 %v914, 16
        %v942 = vrot.slane %v940, 1
        %v943 = vsel %vm815, %v938, %v942
        %v944 = vshrl.u32 %v914, 16
        %v946 = vor.u32 %v944, %v942
        %v948 = vshll.u32 %v915, 16
        %v950 = vrot.slane %v948, 1
        %v951 = vsel %vm815, %v946, %v950
        %956 = vst [vmem:[#allocation3 + $0x28] sm:$0xff] %v927
        %957 = vst [vmem:[#allocation3 + $0x70] sm:$0xff] %v935
        %958 = vst [vmem:[#allocation3 + $0xb8] sm:$0xff] %v943
        %959 = vst [vmem:[#allocation3 + $0x100] sm:$0xff] %v951
        %v960 = vld [vmem:[#allocation2 + $0x8] sm:$0xf8]
        %v961 = vld [vmem:[#allocation2 + $0x10] sm:$0xff]
        %v962 = vld [vmem:[#allocation2 + $0x18] sm:$0xff]
        %v963 = vld [vmem:[#allocation2 + $0x20] sm:$0xff]
        %v964 = vld [vmem:[#allocation2 + $0x28] sm:$0xf]
        %v965 = vsel %vm589, %v960, 0
        %v966 = vsel %vm590, %v961, 0
        %v967 = vsel %vm591, %v962, 0
        %v968 = vsel %vm592, %v963, 0
        %v969 = vsel %vm593, %v964, 0
        %v971 = vshrl.u32 %v965, 16
        %v973 = vrot.slane %v971, 3
        %v974 = vshll.u32 %v965, 16
        %v976 = vrot.slane %v974, 4
        %v977 = vor.u32 %v973, %v976
        %v979 = vshrl.u32 %v966, 16
        %v981 = vrot.slane %v979, 3
        %v982 = vshll.u32 %v966, 16
        %v984 = vrot.slane %v982, 4
        %v985 = vor.u32 %v981, %v984
        %v986 = vsel %vm599, %v977, %v985
        %v988 = vshrl.u32 %v967, 16
        %v990 = vrot.slane %v988, 3
        %v991 = vshll.u32 %v967, 16
        %v993 = vrot.slane %v991, 4
        %v994 = vor.u32 %v990, %v993
        %v995 = vsel %vm599, %v985, %v994
        %v997 = vshrl.u32 %v968, 16
        %v999 = vrot.slane %v997, 3
        %v1000 = vshll.u32 %v968, 16
        %v1002 = vrot.slane %v1000, 4
        %v1003 = vor.u32 %v999, %v1002
        %v1004 = vsel %vm599, %v994, %v1003
        %v1006 = vshrl.u32 %v969, 16
        %v1008 = vrot.slane %v1006, 3
        %v1009 = vshll.u32 %v969, 16
        %v1011 = vrot.slane %v1009, 4
        %v1012 = vor.u32 %v1008, %v1011
        %v1013 = vsel %vm599, %v1003, %v1012
        %1018 = vst [vmem:[#allocation3 + $0x30] sm:$0xff] %v986
        %1019 = vst [vmem:[#allocation3 + $0x78] sm:$0xff] %v995
        %1020 = vst [vmem:[#allocation3 + $0xc0] sm:$0xff] %v1004
        %1021 = vst [vmem:[#allocation3 + $0x108] sm:$0xff] %v1013
        %v1022 = vld [vmem:[#allocation2 + $0x8] sm:$0xf0]
        %v1023 = vld [vmem:[#allocation2 + $0x10] sm:$0xff]
        %v1024 = vld [vmem:[#allocation2 + $0x18] sm:$0xff]
        %v1025 = vld [vmem:[#allocation2 + $0x20] sm:$0xff]
        %v1026 = vld [vmem:[#allocation2 + $0x28] sm:$0xf]
        %v1032 = vrot.slane %v1022, 4
        %v1033 = vrot.slane %v1023, 4
        %v1034 = vsel %vm662, %v1032, %v1033
        %v1035 = vrot.slane %v1024, 4
        %v1036 = vsel %vm662, %v1033, %v1035
        %v1037 = vrot.slane %v1025, 4
        %v1038 = vsel %vm662, %v1035, %v1037
        %v1039 = vrot.slane %v1026, 4
        %v1040 = vsel %vm662, %v1037, %v1039
        %1045 = vst [vmem:[#allocation3 + $0x38] sm:$0xff] %v1034
        %1046 = vst [vmem:[#allocation3 + $0x80] sm:$0xff] %v1036
        %1047 = vst [vmem:[#allocation3 + $0xc8] sm:$0xff] %v1038
        %1048 = vst [vmem:[#allocation3 + $0x110] sm:$0xff] %v1040
        %v1049 = vld [vmem:[#allocation2 + $0x8] sm:$0xf0]
        %v1050 = vld [vmem:[#allocation2 + $0x10] sm:$0xff]
        %v1051 = vld [vmem:[#allocation2 + $0x18] sm:$0xff]
        %v1052 = vld [vmem:[#allocation2 + $0x20] sm:$0xff]
        %v1053 = vld [vmem:[#allocation2 + $0x28] sm:$0x1f]
        %v1054 = vsel %vm748, %v1049, 0
        %v1055 = vsel %vm749, %v1050, 0
        %v1056 = vsel %vm750, %v1051, 0
        %v1057 = vsel %vm751, %v1052, 0
        %v1058 = vsel %vm752, %v1053, 0
        %v1060 = vshrl.u32 %v1054, 16
        %v1062 = vrot.slane %v1060, 4
        %v1063 = vshll.u32 %v1054, 16
        %v1065 = vrot.slane %v1063, 5
        %v1066 = vor.u32 %v1062, %v1065
        %v1068 = vshrl.u32 %v1055, 16
        %v1070 = vrot.slane %v1068, 4
        %v1071 = vshll.u32 %v1055, 16
        %v1073 = vrot.slane %v1071, 5
        %v1074 = vor.u32 %v1070, %v1073
        %v1075 = vsel %vm553, %v1066, %v1074
        %v1077 = vshrl.u32 %v1056, 16
        %v1079 = vrot.slane %v1077, 4
        %v1080 = vshll.u32 %v1056, 16
        %v1082 = vrot.slane %v1080, 5
        %v1083 = vor.u32 %v1079, %v1082
        %v1084 = vsel %vm553, %v1074, %v1083
        %v1086 = vshrl.u32 %v1057, 16
        %v1088 = vrot.slane %v1086, 4
        %v1089 = vshll.u32 %v1057, 16
        %v1091 = vrot.slane %v1089, 5
        %v1092 = vor.u32 %v1088, %v1091
        %v1093 = vsel %vm553, %v1083, %v1092
        %v1095 = vshrl.u32 %v1058, 16
        %v1097 = vrot.slane %v1095, 4
        %v1098 = vshll.u32 %v1058, 16
        %v1100 = vrot.slane %v1098, 5
        %v1101 = vor.u32 %v1097, %v1100
        %v1102 = vsel %vm553, %v1092, %v1101
        %1107 = vst [vmem:[#allocation3 + $0x40] sm:$0xff] %v1075
        %1108 = vst [vmem:[#allocation3 + $0x88] sm:$0xff] %v1084
        %1109 = vst [vmem:[#allocation3 + $0xd0] sm:$0xff] %v1093
        %1110 = vst [vmem:[#allocation3 + $0x118] sm:$0xff] %v1102
        %v1111 = vld [vmem:[%s500] sm:$0xf8]
        %v1112 = vld [vmem:[%s500 + $0x8] sm:$0xff]
        %v1113 = vld [vmem:[%s500 + $0x10] sm:$0xff]
        %v1114 = vld [vmem:[%s500 + $0x18] sm:$0xff]
        %v1115 = vld [vmem:[%s500 + $0x20] sm:$0xf]
        %v1116 = vsel %vm589, %v1111, 0
        %v1117 = vsel %vm590, %v1112, 0
        %v1118 = vsel %vm591, %v1113, 0
        %v1119 = vsel %vm592, %v1114, 0
        %v1120 = vsel %vm593, %v1115, 0
        %v1122 = vshrl.u32 %v1116, 16
        %v1124 = vrot.slane %v1122, 3
        %v1125 = vshll.u32 %v1116, 16
        %v1127 = vrot.slane %v1125, 4
        %v1128 = vor.u32 %v1124, %v1127
        %v1130 = vshrl.u32 %v1117, 16
        %v1132 = vrot.slane %v1130, 3
        %v1133 = vshll.u32 %v1117, 16
        %v1135 = vrot.slane %v1133, 4
        %v1136 = vor.u32 %v1132, %v1135
        %v1137 = vsel %vm599, %v1128, %v1136
        %v1139 = vshrl.u32 %v1118, 16
        %v1141 = vrot.slane %v1139, 3
        %v1142 = vshll.u32 %v1118, 16
        %v1144 = vrot.slane %v1142, 4
        %v1145 = vor.u32 %v1141, %v1144
        %v1146 = vsel %vm599, %v1136, %v1145
        %v1148 = vshrl.u32 %v1119, 16
        %v1150 = vrot.slane %v1148, 3
        %v1151 = vshll.u32 %v1119, 16
        %v1153 = vrot.slane %v1151, 4
        %v1154 = vor.u32 %v1150, %v1153
        %v1155 = vsel %vm599, %v1145, %v1154
        %v1157 = vshrl.u32 %v1120, 16
        %v1159 = vrot.slane %v1157, 3
        %v1160 = vshll.u32 %v1120, 16
        %v1162 = vrot.slane %v1160, 4
        %v1163 = vor.u32 %v1159, %v1162
        %v1164 = vsel %vm599, %v1154, %v1163
        %1169 = vst [vmem:[#allocation3 + $0x120] sm:$0xff] %v1137
        %1170 = vst [vmem:[#allocation3 + $0x168] sm:$0xff] %v1146
        %1171 = vst [vmem:[#allocation3 + $0x1b0] sm:$0xff] %v1155
        %1172 = vst [vmem:[#allocation3 + $0x1f8] sm:$0xff] %v1164
        %v1173 = vld [vmem:[%s500] sm:$0xf0]
        %v1174 = vld [vmem:[%s500 + $0x8] sm:$0xff]
        %v1175 = vld [vmem:[%s500 + $0x10] sm:$0xff]
        %v1176 = vld [vmem:[%s500 + $0x18] sm:$0xff]
        %v1177 = vld [vmem:[%s500 + $0x20] sm:$0xf]
        %v1183 = vrot.slane %v1173, 4
        %v1184 = vrot.slane %v1174, 4
        %v1185 = vsel %vm662, %v1183, %v1184
        %v1186 = vrot.slane %v1175, 4
        %v1187 = vsel %vm662, %v1184, %v1186
        %v1188 = vrot.slane %v1176, 4
        %v1189 = vsel %vm662, %v1186, %v1188
        %v1190 = vrot.slane %v1177, 4
        %v1191 = vsel %vm662, %v1188, %v1190
        %1196 = vst [vmem:[#allocation3 + $0x128] sm:$0xff] %v1185
        %1197 = vst [vmem:[#allocation3 + $0x170] sm:$0xff] %v1187
        %1198 = vst [vmem:[#allocation3 + $0x1b8] sm:$0xff] %v1189
        %1199 = vst [vmem:[#allocation3 + $0x200] sm:$0xff] %v1191
        %v1200 = vld [vmem:[%s500] sm:$0xf0]
        %v1201 = vld [vmem:[%s500 + $0x8] sm:$0xff]
        %v1202 = vld [vmem:[%s500 + $0x10] sm:$0xff]
        %v1203 = vld [vmem:[%s500 + $0x18] sm:$0xff]
        %v1204 = vld [vmem:[%s500 + $0x20] sm:$0x1f]
        %v1205 = vsel %vm748, %v1200, 0
        %v1206 = vsel %vm749, %v1201, 0
        %v1207 = vsel %vm750, %v1202, 0
        %v1208 = vsel %vm751, %v1203, 0
        %v1209 = vsel %vm752, %v1204, 0
        %v1211 = vshrl.u32 %v1205, 16
        %v1213 = vrot.slane %v1211, 4
        %v1214 = vshll.u32 %v1205, 16
        %v1216 = vrot.slane %v1214, 5
        %v1217 = vor.u32 %v1213, %v1216
        %v1219 = vshrl.u32 %v1206, 16
        %v1221 = vrot.slane %v1219, 4
        %v1222 = vshll.u32 %v1206, 16
        %v1224 = vrot.slane %v1222, 5
        %v1225 = vor.u32 %v1221, %v1224
        %v1226 = vsel %vm553, %v1217, %v1225
        %v1228 = vshrl.u32 %v1207, 16
        %v1230 = vrot.slane %v1228, 4
        %v1231 = vshll.u32 %v1207, 16
        %v1233 = vrot.slane %v1231, 5
        %v1234 = vor.u32 %v1230, %v1233
        %v1235 = vsel %vm553, %v1225, %v1234
        %v1237 = vshrl.u32 %v1208, 16
        %v1239 = vrot.slane %v1237, 4
        %v1240 = vshll.u32 %v1208, 16
        %v1242 = vrot.slane %v1240, 5
        %v1243 = vor.u32 %v1239, %v1242
        %v1244 = vsel %vm553, %v1234, %v1243
        %v1246 = vshrl.u32 %v1209, 16
        %v1248 = vrot.slane %v1246, 4
        %v1249 = vshll.u32 %v1209, 16
        %v1251 = vrot.slane %v1249, 5
        %v1252 = vor.u32 %v1248, %v1251
        %v1253 = vsel %vm553, %v1243, %v1252
        %1258 = vst [vmem:[#allocation3 + $0x130] sm:$0xff] %v1226
        %1259 = vst [vmem:[#allocation3 + $0x178] sm:$0xff] %v1235
        %1260 = vst [vmem:[#allocation3 + $0x1c0] sm:$0xff] %v1244
        %1261 = vst [vmem:[#allocation3 + $0x208] sm:$0xff] %v1253
        %v1262 = vld [vmem:[%s500] sm:$0x80]
        %v1263 = vld [vmem:[%s500 + $0x8] sm:$0xff]
        %v1264 = vld [vmem:[%s500 + $0x10] sm:$0xff]
        %v1265 = vld [vmem:[%s500 + $0x18] sm:$0xff]
        %v1266 = vld [vmem:[%s500 + $0x20] sm:$0xff]
        %v1267 = vsel %vm827, %v1262, 0
        %v1268 = vsel %vm828, %v1263, 0
        %v1269 = vsel %vm829, %v1264, 0
        %v1270 = vsel %vm830, %v1265, 0
        %v1271 = vsel %vm831, %v1266, 0
        %v1273 = vshrl.u32 %v1267, 16
        %v1275 = vrot.slane %v1273, 7
        %v1277 = vshrl.u32 %v1268, 16
        %v1279 = vrot.slane %v1277, 7
        %v1280 = vshll.u32 %v1268, 16
        %v1282 = vor.u32 %v1279, %v1280
        %v1283 = vsel %vm837, %v1275, %v1282
        %v1285 = vshrl.u32 %v1269, 16
        %v1287 = vrot.slane %v1285, 7
        %v1288 = vshll.u32 %v1269, 16
        %v1290 = vor.u32 %v1287, %v1288
        %v1291 = vsel %vm837, %v1279, %v1290
        %v1293 = vshrl.u32 %v1270, 16
        %v1295 = vrot.slane %v1293, 7
        %v1296 = vshll.u32 %v1270, 16
        %v1298 = vor.u32 %v1295, %v1296
        %v1299 = vsel %vm837, %v1287, %v1298
        %v1301 = vshrl.u32 %v1271, 16
        %v1303 = vrot.slane %v1301, 7
        %v1304 = vshll.u32 %v1271, 16
        %v1306 = vor.u32 %v1303, %v1304
        %v1307 = vsel %vm837, %v1295, %v1306
        %1312 = vst [vmem:[#allocation3 + $0x138] sm:$0xff] %v1283
        %1313 = vst [vmem:[#allocation3 + $0x180] sm:$0xff] %v1291
        %1314 = vst [vmem:[#allocation3 + $0x1c8] sm:$0xff] %v1299
        %1315 = vst [vmem:[#allocation3 + $0x210] sm:$0xff] %v1307
        %v1316 = vld [vmem:[%s500 + $0x8] sm:$0xff]
        %v1317 = vld [vmem:[%s500 + $0x10] sm:$0xff]
        %v1318 = vld [vmem:[%s500 + $0x18] sm:$0xff]
        %v1319 = vld [vmem:[%s500 + $0x20] sm:$0xff]
        %1320 = vst [vmem:[#allocation3 + $0x140] sm:$0xff] %v1316
        %1321 = vst [vmem:[#allocation3 + $0x188] sm:$0xff] %v1317
        %1322 = vst [vmem:[#allocation3 + $0x1d0] sm:$0xff] %v1318
        %1323 = vst [vmem:[#allocation3 + $0x218] sm:$0xff] %v1319
        %v1324 = vld [vmem:[%s500 + $0x8] sm:$0xff]
        %v1325 = vld [vmem:[%s500 + $0x10] sm:$0xff]
        %v1326 = vld [vmem:[%s500 + $0x18] sm:$0xff]
        %v1327 = vld [vmem:[%s500 + $0x20] sm:$0xff]
        %v1328 = vld [vmem:[%s500 + $0x28] sm:$0x1]
        %v1329 = vsel %vm906, %v1324, 0
        %v1330 = vsel %vm907, %v1325, 0
        %v1331 = vsel %vm908, %v1326, 0
        %v1332 = vsel %vm909, %v1327, 0
        %v1333 = vsel %vm910, %v1328, 0
        %v1335 = vshrl.u32 %v1329, 16
        %v1337 = vshll.u32 %v1329, 16
        %v1339 = vrot.slane %v1337, 1
        %v1340 = vor.u32 %v1335, %v1339
        %v1342 = vshll.u32 %v1330, 16
        %v1344 = vrot.slane %v1342, 1
        %v1345 = vsel %vm815, %v1340, %v1344
        %v1346 = vshrl.u32 %v1330, 16
        %v1348 = vor.u32 %v1346, %v1344
        %v1350 = vshll.u32 %v1331, 16
        %v1352 = vrot.slane %v1350, 1
        %v1353 = vsel %vm815, %v1348, %v1352
        %v1354 = vshrl.u32 %v1331, 16
        %v1356 = vor.u32 %v1354, %v1352
        %v1358 = vshll.u32 %v1332, 16
        %v1360 = vrot.slane %v1358, 1
        %v1361 = vsel %vm815, %v1356, %v1360
        %v1362 = vshrl.u32 %v1332, 16
        %v1364 = vor.u32 %v1362, %v1360
        %v1366 = vshll.u32 %v1333, 16
        %v1368 = vrot.slane %v1366, 1
        %v1369 = vsel %vm815, %v1364, %v1368
        %1374 = vst [vmem:[#allocation3 + $0x148] sm:$0xff] %v1345
        %1375 = vst [vmem:[#allocation3 + $0x190] sm:$0xff] %v1353
        %1376 = vst [vmem:[#allocation3 + $0x1d8] sm:$0xff] %v1361
        %1377 = vst [vmem:[#allocation3 + $0x220] sm:$0xff] %v1369
        %v1378 = vld [vmem:[%s500 + $0x8] sm:$0xf8]
        %v1379 = vld [vmem:[%s500 + $0x10] sm:$0xff]
        %v1380 = vld [vmem:[%s500 + $0x18] sm:$0xff]
        %v1381 = vld [vmem:[%s500 + $0x20] sm:$0xff]
        %v1382 = vld [vmem:[%s500 + $0x28] sm:$0xf]
        %v1383 = vsel %vm589, %v1378, 0
        %v1384 = vsel %vm590, %v1379, 0
        %v1385 = vsel %vm591, %v1380, 0
        %v1386 = vsel %vm592, %v1381, 0
        %v1387 = vsel %vm593, %v1382, 0
        %v1389 = vshrl.u32 %v1383, 16
        %v1391 = vrot.slane %v1389, 3
        %v1392 = vshll.u32 %v1383, 16
        %v1394 = vrot.slane %v1392, 4
        %v1395 = vor.u32 %v1391, %v1394
        %v1397 = vshrl.u32 %v1384, 16
        %v1399 = vrot.slane %v1397, 3
        %v1400 = vshll.u32 %v1384, 16
        %v1402 = vrot.slane %v1400, 4
        %v1403 = vor.u32 %v1399, %v1402
        %v1404 = vsel %vm599, %v1395, %v1403
        %v1406 = vshrl.u32 %v1385, 16
        %v1408 = vrot.slane %v1406, 3
        %v1409 = vshll.u32 %v1385, 16
        %v1411 = vrot.slane %v1409, 4
        %v1412 = vor.u32 %v1408, %v1411
        %v1413 = vsel %vm599, %v1403, %v1412
        %v1415 = vshrl.u32 %v1386, 16
        %v1417 = vrot.slane %v1415, 3
        %v1418 = vshll.u32 %v1386, 16
        %v1420 = vrot.slane %v1418, 4
        %v1421 = vor.u32 %v1417, %v1420
        %v1422 = vsel %vm599, %v1412, %v1421
        %v1424 = vshrl.u32 %v1387, 16
        %v1426 = vrot.slane %v1424, 3
        %v1427 = vshll.u32 %v1387, 16
        %v1429 = vrot.slane %v1427, 4
        %v1430 = vor.u32 %v1426, %v1429
        %v1431 = vsel %vm599, %v1421, %v1430
        %1436 = vst [vmem:[#allocation3 + $0x150] sm:$0xff] %v1404
        %1437 = vst [vmem:[#allocation3 + $0x198] sm:$0xff] %v1413
        %1438 = vst [vmem:[#allocation3 + $0x1e0] sm:$0xff] %v1422
        %1439 = vst [vmem:[#allocation3 + $0x228] sm:$0xff] %v1431
        %v1440 = vld [vmem:[%s500 + $0x8] sm:$0xf0]
        %v1441 = vld [vmem:[%s500 + $0x10] sm:$0xff]
        %v1442 = vld [vmem:[%s500 + $0x18] sm:$0xff]
        %v1443 = vld [vmem:[%s500 + $0x20] sm:$0xff]
        %v1444 = vld [vmem:[%s500 + $0x28] sm:$0xf]
        %v1450 = vrot.slane %v1440, 4
        %v1451 = vrot.slane %v1441, 4
        %v1452 = vsel %vm662, %v1450, %v1451
        %v1453 = vrot.slane %v1442, 4
        %v1454 = vsel %vm662, %v1451, %v1453
        %v1455 = vrot.slane %v1443, 4
        %v1456 = vsel %vm662, %v1453, %v1455
        %v1457 = vrot.slane %v1444, 4
        %v1458 = vsel %vm662, %v1455, %v1457
        %1463 = vst [vmem:[#allocation3 + $0x158] sm:$0xff] %v1452
        %1464 = vst [vmem:[#allocation3 + $0x1a0] sm:$0xff] %v1454
        %1465 = vst [vmem:[#allocation3 + $0x1e8] sm:$0xff] %v1456
        %1466 = vst [vmem:[#allocation3 + $0x230] sm:$0xff] %v1458
        %v1467 = vld [vmem:[%s500 + $0x8] sm:$0xf0]
        %v1468 = vld [vmem:[%s500 + $0x10] sm:$0xff]
        %v1469 = vld [vmem:[%s500 + $0x18] sm:$0xff]
        %v1470 = vld [vmem:[%s500 + $0x20] sm:$0xff]
        %v1471 = vld [vmem:[%s500 + $0x28] sm:$0x1f]
        %v1472 = vsel %vm748, %v1467, 0
        %v1473 = vsel %vm749, %v1468, 0
        %v1474 = vsel %vm750, %v1469, 0
        %v1475 = vsel %vm751, %v1470, 0
        %v1476 = vsel %vm752, %v1471, 0
        %v1478 = vshrl.u32 %v1472, 16
        %v1480 = vrot.slane %v1478, 4
        %v1481 = vshll.u32 %v1472, 16
        %v1483 = vrot.slane %v1481, 5
        %v1484 = vor.u32 %v1480, %v1483
        %v1486 = vshrl.u32 %v1473, 16
        %v1488 = vrot.slane %v1486, 4
        %v1489 = vshll.u32 %v1473, 16
        %v1491 = vrot.slane %v1489, 5
        %v1492 = vor.u32 %v1488, %v1491
        %v1493 = vsel %vm553, %v1484, %v1492
        %v1495 = vshrl.u32 %v1474, 16
        %v1497 = vrot.slane %v1495, 4
        %v1498 = vshll.u32 %v1474, 16
        %v1500 = vrot.slane %v1498, 5
        %v1501 = vor.u32 %v1497, %v1500
        %v1502 = vsel %vm553, %v1492, %v1501
        %v1504 = vshrl.u32 %v1475, 16
        %v1506 = vrot.slane %v1504, 4
        %v1507 = vshll.u32 %v1475, 16
        %v1509 = vrot.slane %v1507, 5
        %v1510 = vor.u32 %v1506, %v1509
        %v1511 = vsel %vm553, %v1501, %v1510
        %v1513 = vshrl.u32 %v1476, 16
        %v1515 = vrot.slane %v1513, 4
        %v1516 = vshll.u32 %v1476, 16
        %v1518 = vrot.slane %v1516, 5
        %v1519 = vor.u32 %v1515, %v1518
        %v1520 = vsel %vm553, %v1510, %v1519
        %1525 = vst [vmem:[#allocation3 + $0x160] sm:$0xff] %v1493
        %1526 = vst [vmem:[#allocation3 + $0x1a8] sm:$0xff] %v1502
        %1527 = vst [vmem:[#allocation3 + $0x1f0] sm:$0xff] %v1511
        %1528 = vst [vmem:[#allocation3 + $0x238] sm:$0xff] %v1520
        %v1529 = vld [vmem:[#allocation3] sm:$0xff]
        %v1530 = vld [vmem:[#allocation3 + $0x8] sm:$0xff]
        %v1531 = vld [vmem:[#allocation3 + $0x10] sm:$0xff]
        %v1532 = vld [vmem:[#allocation3 + $0x18] sm:$0xff]
        %v1533 = vld [vmem:[#allocation3 + $0x20] sm:$0xff]
        %v1534 = vld [vmem:[#allocation3 + $0x28] sm:$0xff]
        %v1535 = vld [vmem:[#allocation3 + $0x30] sm:$0xff]
        %v1536 = vld [vmem:[#allocation3 + $0x38] sm:$0xff]
        %v1537 = vld [vmem:[#allocation3 + $0x40] sm:$0xff]
        %v1538 = vld [vmem:[#allocation3 + $0x48] sm:$0xff]
        %v1539 = vld [vmem:[#allocation3 + $0x50] sm:$0xff]
        %v1540 = vld [vmem:[#allocation3 + $0x58] sm:$0xff]
        %v1541 = vld [vmem:[#allocation3 + $0x60] sm:$0xff]
        %v1542 = vld [vmem:[#allocation3 + $0x68] sm:$0xff]
        %v1543 = vld [vmem:[#allocation3 + $0x70] sm:$0xff]
        %v1544 = vld [vmem:[#allocation3 + $0x78] sm:$0xff]
        %v1545 = vld [vmem:[#allocation3 + $0x80] sm:$0xff]
        %v1546 = vld [vmem:[#allocation3 + $0x88] sm:$0xff]
        %v1547 = vld [vmem:[#allocation3 + $0x90] sm:$0xff]
        %v1548 = vld [vmem:[#allocation3 + $0x98] sm:$0xff]
        %v1549 = vld [vmem:[#allocation3 + $0xa0] sm:$0xff]
        %v1550 = vld [vmem:[#allocation3 + $0xa8] sm:$0xff]
        %v1551 = vld [vmem:[#allocation3 + $0xb0] sm:$0xff]
        %v1552 = vld [vmem:[#allocation3 + $0xb8] sm:$0xff]
        %v1553 = vld [vmem:[#allocation3 + $0xc0] sm:$0xff]
        %v1554 = vld [vmem:[#allocation3 + $0xc8] sm:$0xff]
        %v1555 = vld [vmem:[#allocation3 + $0xd0] sm:$0xff]
        %v1556 = vld [vmem:[#allocation3 + $0xd8] sm:$0xff]
        %v1557 = vld [vmem:[#allocation3 + $0xe0] sm:$0xff]
        %v1558 = vld [vmem:[#allocation3 + $0xe8] sm:$0xff]
        %v1559 = vld [vmem:[#allocation3 + $0xf0] sm:$0xff]
        %v1560 = vld [vmem:[#allocation3 + $0xf8] sm:$0xff]
        %v1561 = vld [vmem:[#allocation3 + $0x100] sm:$0xff]
        %v1562 = vld [vmem:[#allocation3 + $0x108] sm:$0xff]
        %v1563 = vld [vmem:[#allocation3 + $0x110] sm:$0xff]
        %v1564 = vld [vmem:[#allocation3 + $0x118] sm:$0xff]
        %v1565 = vld [vmem:[#allocation3 + $0x120] sm:$0xff]
        %v1566 = vld [vmem:[#allocation3 + $0x128] sm:$0xff]
        %v1567 = vld [vmem:[#allocation3 + $0x130] sm:$0xff]
        %v1568 = vld [vmem:[#allocation3 + $0x138] sm:$0xff]
        %v1569 = vld [vmem:[#allocation3 + $0x140] sm:$0xff]
        %v1570 = vld [vmem:[#allocation3 + $0x148] sm:$0xff]
        %v1571 = vld [vmem:[#allocation3 + $0x150] sm:$0xff]
        %v1572 = vld [vmem:[#allocation3 + $0x158] sm:$0xff]
        %v1573 = vld [vmem:[#allocation3 + $0x160] sm:$0xff]
        %v1574 = vld [vmem:[#allocation3 + $0x168] sm:$0xff]
        %v1575 = vld [vmem:[#allocation3 + $0x170] sm:$0xff]
        %v1576 = vld [vmem:[#allocation3 + $0x178] sm:$0xff]
        %v1577 = vld [vmem:[#allocation3 + $0x180] sm:$0xff]
        %v1578 = vld [vmem:[#allocation3 + $0x188] sm:$0xff]
        %v1579 = vld [vmem:[#allocation3 + $0x190] sm:$0xff]
        %v1580 = vld [vmem:[#allocation3 + $0x198] sm:$0xff]
        %v1581 = vld [vmem:[#allocation3 + $0x1a0] sm:$0xff]
        %v1582 = vld [vmem:[#allocation3 + $0x1a8] sm:$0xff]
        %v1583 = vld [vmem:[#allocation3 + $0x1b0] sm:$0xff]
        %v1584 = vld [vmem:[#allocation3 + $0x1b8] sm:$0xff]
        %v1585 = vld [vmem:[#allocation3 + $0x1c0] sm:$0xff]
        %v1586 = vld [vmem:[#allocation3 + $0x1c8] sm:$0xff]
        %v1587 = vld [vmem:[#allocation3 + $0x1d0] sm:$0xff]
        %v1588 = vld [vmem:[#allocation3 + $0x1d8] sm:$0xff]
        %v1589 = vld [vmem:[#allocation3 + $0x1e0] sm:$0xff]
        %v1590 = vld [vmem:[#allocation3 + $0x1e8] sm:$0xff]
        %v1591 = vld [vmem:[#allocation3 + $0x1f0] sm:$0xff]
        %v1592 = vld [vmem:[#allocation3 + $0x1f8] sm:$0xff]
        %v1593 = vld [vmem:[#allocation3 + $0x200] sm:$0xff]
        %v1594 = vld [vmem:[#allocation3 + $0x208] sm:$0xff]
        %v1595 = vld [vmem:[#allocation3 + $0x210] sm:$0xff]
        %v1596 = vld [vmem:[#allocation3 + $0x218] sm:$0xff]
        %v1597 = vld [vmem:[#allocation3 + $0x220] sm:$0xff]
        %v1598 = vld [vmem:[#allocation3 + $0x228] sm:$0xff]
        %v1599 = vld [vmem:[#allocation3 + $0x230] sm:$0xff]
        %v1600 = vld [vmem:[#allocation3 + $0x238] sm:$0xff]
        %v1601 = vld [vmem:[#allocation7] sm:$0xf]
        %v1602 = vld [vmem:[#allocation7 + $0x4] sm:$0xf]
        %v1603 = vld [vmem:[#allocation7 + $0x8] sm:$0xf]
        %v1604 = vld [vmem:[#allocation7 + $0xc] sm:$0xf]
        %v1605 = vld [vmem:[#allocation7 + $0x10] sm:$0xf]
        %v1606 = vld [vmem:[#allocation7 + $0x14] sm:$0xf]
        %v1607 = vld [vmem:[#allocation7 + $0x18] sm:$0xf]
        %v1608 = vld [vmem:[#allocation7 + $0x1c] sm:$0xf]
        %v1609 = vld [vmem:[#allocation7 + $0x20] sm:$0xf]
        %v1610 = vld [vmem:[#allocation7 + $0x24] sm:$0xf]
        %v1611 = vld [vmem:[#allocation7 + $0x28] sm:$0xf]
        %v1612 = vld [vmem:[#allocation7 + $0x2c] sm:$0xf]
        %v1613 = vld [vmem:[#allocation7 + $0x30] sm:$0xf]
        %v1614 = vld [vmem:[#allocation7 + $0x34] sm:$0xf]
        %v1615 = vld [vmem:[#allocation7 + $0x38] sm:$0xf]
        %v1616 = vld [vmem:[#allocation7 + $0x3c] sm:$0xf]
        %v1617 = vld [vmem:[#allocation7 + $0x40] sm:$0xf]
        %v1618 = vld [vmem:[#allocation7 + $0x44] sm:$0xf]
        %v1619 = vld [vmem:[#allocation7 + $0x48] sm:$0xf]
        %v1620 = vld [vmem:[#allocation7 + $0x4c] sm:$0xf]
        %v1621 = vld [vmem:[#allocation7 + $0x50] sm:$0xf]
        %v1622 = vld [vmem:[#allocation7 + $0x54] sm:$0xf]
        %v1623 = vld [vmem:[#allocation7 + $0x58] sm:$0xf]
        %v1624 = vld [vmem:[#allocation7 + $0x5c] sm:$0xf]
        %v1625 = vld [vmem:[#allocation7 + $0x60] sm:$0xf]
        %v1626 = vld [vmem:[#allocation7 + $0x64] sm:$0xf]
        %v1627 = vld [vmem:[#allocation7 + $0x68] sm:$0xf]
        %v1628 = vld [vmem:[#allocation7 + $0x6c] sm:$0xf]
        %v1629 = vld [vmem:[#allocation7 + $0x70] sm:$0xf]
        %v1630 = vld [vmem:[#allocation7 + $0x74] sm:$0xf]
        %v1631 = vld [vmem:[#allocation7 + $0x78] sm:$0xf]
        %v1632 = vld [vmem:[#allocation7 + $0x7c] sm:$0xf]
        %v1633 = vld [vmem:[#allocation7 + $0x80] sm:$0xf]
        %v1634 = vld [vmem:[#allocation7 + $0x84] sm:$0xf]
        %v1635 = vld [vmem:[#allocation7 + $0x88] sm:$0xf]
        %v1636 = vld [vmem:[#allocation7 + $0x8c] sm:$0xf]
        %v1637 = vld [vmem:[#allocation7 + $0x90] sm:$0xf]
        %v1638 = vld [vmem:[#allocation7 + $0x94] sm:$0xf]
        %v1639 = vld [vmem:[#allocation7 + $0x98] sm:$0xf]
        %v1640 = vld [vmem:[#allocation7 + $0x9c] sm:$0xf]
        %v1641 = vld [vmem:[#allocation7 + $0xa0] sm:$0xf]
        %v1642 = vld [vmem:[#allocation7 + $0xa4] sm:$0xf]
        %v1643 = vld [vmem:[#allocation7 + $0xa8] sm:$0xf]
        %v1644 = vld [vmem:[#allocation7 + $0xac] sm:$0xf]
        %v1645 = vld [vmem:[#allocation7 + $0xb0] sm:$0xf]
        %v1646 = vld [vmem:[#allocation7 + $0xb4] sm:$0xf]
        %v1647 = vld [vmem:[#allocation7 + $0xb8] sm:$0xf]
        %v1648 = vld [vmem:[#allocation7 + $0xbc] sm:$0xf]
        %v1649 = vld [vmem:[#allocation7 + $0xc0] sm:$0xf]
        %v1650 = vld [vmem:[#allocation7 + $0xc4] sm:$0xf]
        %v1651 = vld [vmem:[#allocation7 + $0xc8] sm:$0xf]
        %v1652 = vld [vmem:[#allocation7 + $0xcc] sm:$0xf]
        %v1653 = vld [vmem:[#allocation7 + $0xd0] sm:$0xf]
        %v1654 = vld [vmem:[#allocation7 + $0xd4] sm:$0xf]
        %v1655 = vld [vmem:[#allocation7 + $0xd8] sm:$0xf]
        %v1656 = vld [vmem:[#allocation7 + $0xdc] sm:$0xf]
        %v1657 = vld [vmem:[#allocation7 + $0xe0] sm:$0xf]
        %v1658 = vld [vmem:[#allocation7 + $0xe4] sm:$0xf]
        %v1659 = vld [vmem:[#allocation7 + $0xe8] sm:$0xf]
        %v1660 = vld [vmem:[#allocation7 + $0xec] sm:$0xf]
        %v1661 = vld [vmem:[#allocation7 + $0xf0] sm:$0xf]
        %v1662 = vld [vmem:[#allocation7 + $0xf4] sm:$0xf]
        %v1663 = vld [vmem:[#allocation7 + $0xf8] sm:$0xf]
        %v1664 = vld [vmem:[#allocation7 + $0xfc] sm:$0xf]
        %v1665 = vld [vmem:[#allocation7 + $0x100] sm:$0xf]
        %v1666 = vld [vmem:[#allocation7 + $0x104] sm:$0xf]
        %v1667 = vld [vmem:[#allocation7 + $0x108] sm:$0xf]
        %v1668 = vld [vmem:[#allocation7 + $0x10c] sm:$0xf]
        %v1669 = vld [vmem:[#allocation7 + $0x110] sm:$0xf]
        %v1670 = vld [vmem:[#allocation7 + $0x114] sm:$0xf]
        %v1671 = vld [vmem:[#allocation7 + $0x118] sm:$0xf]
        %v1672 = vld [vmem:[#allocation7 + $0x11c] sm:$0xf]
        %v1673 = vld [vmem:[#allocation7 + $0x120] sm:$0xf]
        %v1674 = vld [vmem:[#allocation7 + $0x124] sm:$0xf]
        %v1675 = vld [vmem:[#allocation7 + $0x128] sm:$0xf]
        %v1676 = vld [vmem:[#allocation7 + $0x12c] sm:$0xf]
        %v1677 = vld [vmem:[#allocation7 + $0x130] sm:$0xf]
        %v1678 = vld [vmem:[#allocation7 + $0x134] sm:$0xf]
        %v1679 = vld [vmem:[#allocation7 + $0x138] sm:$0xf]
        %v1680 = vld [vmem:[#allocation7 + $0x13c] sm:$0xf]
        %v1681 = vld [vmem:[#allocation7 + $0x140] sm:$0xf]
        %v1682 = vld [vmem:[#allocation7 + $0x144] sm:$0xf]
        %v1683 = vld [vmem:[#allocation7 + $0x148] sm:$0xf]
        %v1684 = vld [vmem:[#allocation7 + $0x14c] sm:$0xf]
        %v1685 = vld [vmem:[#allocation7 + $0x150] sm:$0xf]
        %v1686 = vld [vmem:[#allocation7 + $0x154] sm:$0xf]
        %v1687 = vld [vmem:[#allocation7 + $0x158] sm:$0xf]
        %v1688 = vld [vmem:[#allocation7 + $0x15c] sm:$0xf]
        %v1689 = vld [vmem:[#allocation7 + $0x160] sm:$0xf]
        %v1690 = vld [vmem:[#allocation7 + $0x164] sm:$0xf]
        %v1691 = vld [vmem:[#allocation7 + $0x168] sm:$0xf]
        %v1692 = vld [vmem:[#allocation7 + $0x16c] sm:$0xf]
        %v1693 = vld [vmem:[#allocation7 + $0x170] sm:$0xf]
        %v1694 = vld [vmem:[#allocation7 + $0x174] sm:$0xf]
        %v1695 = vld [vmem:[#allocation7 + $0x178] sm:$0xf]
        %v1696 = vld [vmem:[#allocation7 + $0x17c] sm:$0xf]
        %v1697 = vld [vmem:[#allocation7 + $0x180] sm:$0xf]
        %v1698 = vld [vmem:[#allocation7 + $0x184] sm:$0xf]
        %v1699 = vld [vmem:[#allocation7 + $0x188] sm:$0xf]
        %v1700 = vld [vmem:[#allocation7 + $0x18c] sm:$0xf]
        %v1701 = vld [vmem:[#allocation7 + $0x190] sm:$0xf]
        %v1702 = vld [vmem:[#allocation7 + $0x194] sm:$0xf]
        %v1703 = vld [vmem:[#allocation7 + $0x198] sm:$0xf]
        %v1704 = vld [vmem:[#allocation7 + $0x19c] sm:$0xf]
        %v1705 = vld [vmem:[#allocation7 + $0x1a0] sm:$0xf]
        %v1706 = vld [vmem:[#allocation7 + $0x1a4] sm:$0xf]
        %v1707 = vld [vmem:[#allocation7 + $0x1a8] sm:$0xf]
        %v1708 = vld [vmem:[#allocation7 + $0x1ac] sm:$0xf]
        %v1709 = vld [vmem:[#allocation7 + $0x1b0] sm:$0xf]
        %v1710 = vld [vmem:[#allocation7 + $0x1b4] sm:$0xf]
        %v1711 = vld [vmem:[#allocation7 + $0x1b8] sm:$0xf]
        %v1712 = vld [vmem:[#allocation7 + $0x1bc] sm:$0xf]
        %v1713 = vld [vmem:[#allocation7 + $0x1c0] sm:$0xf]
        %v1714 = vld [vmem:[#allocation7 + $0x1c4] sm:$0xf]
        %v1715 = vld [vmem:[#allocation7 + $0x1c8] sm:$0xf]
        %v1716 = vld [vmem:[#allocation7 + $0x1cc] sm:$0xf]
        %v1717 = vld [vmem:[#allocation7 + $0x1d0] sm:$0xf]
        %v1718 = vld [vmem:[#allocation7 + $0x1d4] sm:$0xf]
        %v1719 = vld [vmem:[#allocation7 + $0x1d8] sm:$0xf]
        %v1720 = vld [vmem:[#allocation7 + $0x1dc] sm:$0xf]
        %v1721 = vld [vmem:[#allocation7 + $0x1e0] sm:$0xf]
        %v1722 = vld [vmem:[#allocation7 + $0x1e4] sm:$0xf]
        %v1723 = vld [vmem:[#allocation7 + $0x1e8] sm:$0xf]
        %v1724 = vld [vmem:[#allocation7 + $0x1ec] sm:$0xf]
        %v1725 = vld [vmem:[#allocation7 + $0x1f0] sm:$0xf]
        %v1726 = vld [vmem:[#allocation7 + $0x1f4] sm:$0xf]
        %v1727 = vld [vmem:[#allocation7 + $0x1f8] sm:$0xf]
        %v1728 = vld [vmem:[#allocation7 + $0x1fc] sm:$0xf]
        %v1729 = vld [vmem:[#allocation7 + $0x200] sm:$0xf]
        %v1730 = vld [vmem:[#allocation7 + $0x204] sm:$0xf]
        %v1731 = vld [vmem:[#allocation7 + $0x208] sm:$0xf]
        %v1732 = vld [vmem:[#allocation7 + $0x20c] sm:$0xf]
        %v1733 = vld [vmem:[#allocation7 + $0x210] sm:$0xf]
        %v1734 = vld [vmem:[#allocation7 + $0x214] sm:$0xf]
        %v1735 = vld [vmem:[#allocation7 + $0x218] sm:$0xf]
        %v1736 = vld [vmem:[#allocation7 + $0x21c] sm:$0xf]
        %v1737 = vld [vmem:[#allocation7 + $0x220] sm:$0xf]
        %v1738 = vld [vmem:[#allocation7 + $0x224] sm:$0xf]
        %v1739 = vld [vmem:[#allocation7 + $0x228] sm:$0xf]
        %v1740 = vld [vmem:[#allocation7 + $0x22c] sm:$0xf]
        %v1741 = vld [vmem:[#allocation7 + $0x230] sm:$0xf]
        %v1742 = vld [vmem:[#allocation7 + $0x234] sm:$0xf]
        %v1743 = vld [vmem:[#allocation7 + $0x238] sm:$0xf]
        %v1744 = vld [vmem:[#allocation7 + $0x23c] sm:$0xf]
        %v1745 = vld [vmem:[%s2] sm:$0x1]
        %v1747 = vlaneseq
        %v1748 = vshrl.u32 %v1747, 7
        %v1749 = vsub.s32 0, %v1748
        %v1750 = vrot.slane %v1745, %v1749
        %v1896 = vunpack.c.l.b16 %v1601
        %v1897 = vunpack.c.l.b16 %v1602
        %v1898 = vunpack.c.l.b16 %v1603
        %v1899 = vunpack.c.l.b16 %v1604
        %v1900 = vunpack.c.l.b16 %v1605
        %v1901 = vunpack.c.l.b16 %v1606
        %v1902 = vunpack.c.l.b16 %v1607
        %v1903 = vunpack.c.l.b16 %v1608
        %v1904 = vunpack.c.l.b16 %v1609
        %v1905 = vunpack.c.l.b16 %v1610
        %v1906 = vunpack.c.l.b16 %v1611
        %v1907 = vunpack.c.l.b16 %v1612
        %v1908 = vunpack.c.l.b16 %v1613
        %v1909 = vunpack.c.l.b16 %v1614
        %v1910 = vunpack.c.l.b16 %v1615
        %v1911 = vunpack.c.l.b16 %v1616
        %v1912 = vunpack.c.l.b16 %v1617
        %v1913 = vunpack.c.l.b16 %v1618
        %v1914 = vunpack.c.l.b16 %v1619
        %v1915 = vunpack.c.l.b16 %v1620
        %v1916 = vunpack.c.l.b16 %v1621
        %v1917 = vunpack.c.l.b16 %v1622
        %v1918 = vunpack.c.l.b16 %v1623
        %v1919 = vunpack.c.l.b16 %v1624
        %v1920 = vunpack.c.l.b16 %v1625
        %v1921 = vunpack.c.l.b16 %v1626
        %v1922 = vunpack.c.l.b16 %v1627
        %v1923 = vunpack.c.l.b16 %v1628
        %v1924 = vunpack.c.l.b16 %v1629
        %v1925 = vunpack.c.l.b16 %v1630
        %v1926 = vunpack.c.l.b16 %v1631
        %v1927 = vunpack.c.l.b16 %v1632
        %v1928 = vunpack.c.l.b16 %v1633
        %v1929 = vunpack.c.l.b16 %v1634
        %v1930 = vunpack.c.l.b16 %v1635
        %v1931 = vunpack.c.l.b16 %v1636
        %v1932 = vunpack.c.l.b16 %v1637
        %v1933 = vunpack.c.l.b16 %v1638
        %v1934 = vunpack.c.l.b16 %v1639
        %v1935 = vunpack.c.l.b16 %v1640
        %v1936 = vunpack.c.l.b16 %v1641
        %v1937 = vunpack.c.l.b16 %v1642
        %v1938 = vunpack.c.l.b16 %v1643
        %v1939 = vunpack.c.l.b16 %v1644
        %v1940 = vunpack.c.l.b16 %v1645
        %v1941 = vunpack.c.l.b16 %v1646
        %v1942 = vunpack.c.l.b16 %v1647
        %v1943 = vunpack.c.l.b16 %v1648
        %v1944 = vunpack.c.l.b16 %v1649
        %v1945 = vunpack.c.l.b16 %v1650
        %v1946 = vunpack.c.l.b16 %v1651
        %v1947 = vunpack.c.l.b16 %v1652
        %v1948 = vunpack.c.l.b16 %v1653
        %v1949 = vunpack.c.l.b16 %v1654
        %v1950 = vunpack.c.l.b16 %v1655
        %v1951 = vunpack.c.l.b16 %v1656
        %v1952 = vunpack.c.l.b16 %v1657
        %v1953 = vunpack.c.l.b16 %v1658
        %v1954 = vunpack.c.l.b16 %v1659
        %v1955 = vunpack.c.l.b16 %v1660
        %v1956 = vunpack.c.l.b16 %v1661
        %v1957 = vunpack.c.l.b16 %v1662
        %v1958 = vunpack.c.l.b16 %v1663
        %v1959 = vunpack.c.l.b16 %v1664
        %v1960 = vunpack.c.l.b16 %v1665
        %v1961 = vunpack.c.l.b16 %v1666
        %v1962 = vunpack.c.l.b16 %v1667
        %v1963 = vunpack.c.l.b16 %v1668
        %v1964 = vunpack.c.l.b16 %v1669
        %v1965 = vunpack.c.l.b16 %v1670
        %v1966 = vunpack.c.l.b16 %v1671
        %v1967 = vunpack.c.l.b16 %v1672
        %v1968 = vunpack.c.l.b16 %v1673
        %v1969 = vunpack.c.l.b16 %v1674
        %v1970 = vunpack.c.l.b16 %v1675
        %v1971 = vunpack.c.l.b16 %v1676
        %v1972 = vunpack.c.l.b16 %v1677
        %v1973 = vunpack.c.l.b16 %v1678
        %v1974 = vunpack.c.l.b16 %v1679
        %v1975 = vunpack.c.l.b16 %v1680
        %v1976 = vunpack.c.l.b16 %v1681
        %v1977 = vunpack.c.l.b16 %v1682
        %v1978 = vunpack.c.l.b16 %v1683
        %v1979 = vunpack.c.l.b16 %v1684
        %v1980 = vunpack.c.l.b16 %v1685
        %v1981 = vunpack.c.l.b16 %v1686
        %v1982 = vunpack.c.l.b16 %v1687
        %v1983 = vunpack.c.l.b16 %v1688
        %v1984 = vunpack.c.l.b16 %v1689
        %v1985 = vunpack.c.l.b16 %v1690
        %v1986 = vunpack.c.l.b16 %v1691
        %v1987 = vunpack.c.l.b16 %v1692
        %v1988 = vunpack.c.l.b16 %v1693
        %v1989 = vunpack.c.l.b16 %v1694
        %v1990 = vunpack.c.l.b16 %v1695
        %v1991 = vunpack.c.l.b16 %v1696
        %v1992 = vunpack.c.l.b16 %v1697
        %v1993 = vunpack.c.l.b16 %v1698
        %v1994 = vunpack.c.l.b16 %v1699
        %v1995 = vunpack.c.l.b16 %v1700
        %v1996 = vunpack.c.l.b16 %v1701
        %v1997 = vunpack.c.l.b16 %v1702
        %v1998 = vunpack.c.l.b16 %v1703
        %v1999 = vunpack.c.l.b16 %v1704
        %v2000 = vunpack.c.l.b16 %v1705
        %v2001 = vunpack.c.l.b16 %v1706
        %v2002 = vunpack.c.l.b16 %v1707
        %v2003 = vunpack.c.l.b16 %v1708
        %v2004 = vunpack.c.l.b16 %v1709
        %v2005 = vunpack.c.l.b16 %v1710
        %v2006 = vunpack.c.l.b16 %v1711
        %v2007 = vunpack.c.l.b16 %v1712
        %v2008 = vunpack.c.l.b16 %v1713
        %v2009 = vunpack.c.l.b16 %v1714
        %v2010 = vunpack.c.l.b16 %v1715
        %v2011 = vunpack.c.l.b16 %v1716
        %v2012 = vunpack.c.l.b16 %v1717
        %v2013 = vunpack.c.l.b16 %v1718
        %v2014 = vunpack.c.l.b16 %v1719
        %v2015 = vunpack.c.l.b16 %v1720
        %v2016 = vunpack.c.l.b16 %v1721
        %v2017 = vunpack.c.l.b16 %v1722
        %v2018 = vunpack.c.l.b16 %v1723
        %v2019 = vunpack.c.l.b16 %v1724
        %v2020 = vunpack.c.l.b16 %v1725
        %v2021 = vunpack.c.l.b16 %v1726
        %v2022 = vunpack.c.l.b16 %v1727
        %v2023 = vunpack.c.l.b16 %v1728
        %v2024 = vunpack.c.l.b16 %v1729
        %v2025 = vunpack.c.l.b16 %v1730
        %v2026 = vunpack.c.l.b16 %v1731
        %v2027 = vunpack.c.l.b16 %v1732
        %v2028 = vunpack.c.l.b16 %v1733
        %v2029 = vunpack.c.l.b16 %v1734
        %v2030 = vunpack.c.l.b16 %v1735
        %v2031 = vunpack.c.l.b16 %v1736
        %v2032 = vunpack.c.l.b16 %v1737
        %v2033 = vunpack.c.l.b16 %v1738
        %v2034 = vunpack.c.l.b16 %v1739
        %v2035 = vunpack.c.l.b16 %v1740
        %v2036 = vunpack.c.l.b16 %v1741
        %v2037 = vunpack.c.l.b16 %v1742
        %v2038 = vunpack.c.l.b16 %v1743
        %v2039 = vunpack.c.l.b16 %v1744
        %v2040 = vpack.c.b16 %v1897, %v1896
        %v2041 = vpack.c.b16 %v1899, %v1898
        %v2042 = vpack.c.b16 %v1901, %v1900
        %v2043 = vpack.c.b16 %v1903, %v1902
        %v2044 = vpack.c.b16 %v1905, %v1904
        %v2045 = vpack.c.b16 %v1907, %v1906
        %v2046 = vpack.c.b16 %v1909, %v1908
        %v2047 = vpack.c.b16 %v1911, %v1910
        %v2048 = vpack.c.b16 %v1913, %v1912
        %v2049 = vpack.c.b16 %v1915, %v1914
        %v2050 = vpack.c.b16 %v1917, %v1916
        %v2051 = vpack.c.b16 %v1919, %v1918
        %v2052 = vpack.c.b16 %v1921, %v1920
        %v2053 = vpack.c.b16 %v1923, %v1922
        %v2054 = vpack.c.b16 %v1925, %v1924
        %v2055 = vpack.c.b16 %v1927, %v1926
        %v2056 = vpack.c.b16 %v1929, %v1928
        %v2057 = vpack.c.b16 %v1931, %v1930
        %v2058 = vpack.c.b16 %v1933, %v1932
        %v2059 = vpack.c.b16 %v1935, %v1934
        %v2060 = vpack.c.b16 %v1937, %v1936
        %v2061 = vpack.c.b16 %v1939, %v1938
        %v2062 = vpack.c.b16 %v1941, %v1940
        %v2063 = vpack.c.b16 %v1943, %v1942
        %v2064 = vpack.c.b16 %v1945, %v1944
        %v2065 = vpack.c.b16 %v1947, %v1946
        %v2066 = vpack.c.b16 %v1949, %v1948
        %v2067 = vpack.c.b16 %v1951, %v1950
        %v2068 = vpack.c.b16 %v1953, %v1952
        %v2069 = vpack.c.b16 %v1955, %v1954
        %v2070 = vpack.c.b16 %v1957, %v1956
        %v2071 = vpack.c.b16 %v1959, %v1958
        %v2072 = vpack.c.b16 %v1961, %v1960
        %v2073 = vpack.c.b16 %v1963, %v1962
        %v2074 = vpack.c.b16 %v1965, %v1964
        %v2075 = vpack.c.b16 %v1967, %v1966
        %v2076 = vpack.c.b16 %v1969, %v1968
        %v2077 = vpack.c.b16 %v1971, %v1970
        %v2078 = vpack.c.b16 %v1973, %v1972
        %v2079 = vpack.c.b16 %v1975, %v1974
        %v2080 = vpack.c.b16 %v1977, %v1976
        %v2081 = vpack.c.b16 %v1979, %v1978
        %v2082 = vpack.c.b16 %v1981, %v1980
        %v2083 = vpack.c.b16 %v1983, %v1982
        %v2084 = vpack.c.b16 %v1985, %v1984
        %v2085 = vpack.c.b16 %v1987, %v1986
        %v2086 = vpack.c.b16 %v1989, %v1988
        %v2087 = vpack.c.b16 %v1991, %v1990
        %v2088 = vpack.c.b16 %v1993, %v1992
        %v2089 = vpack.c.b16 %v1995, %v1994
        %v2090 = vpack.c.b16 %v1997, %v1996
        %v2091 = vpack.c.b16 %v1999, %v1998
        %v2092 = vpack.c.b16 %v2001, %v2000
        %v2093 = vpack.c.b16 %v2003, %v2002
        %v2094 = vpack.c.b16 %v2005, %v2004
        %v2095 = vpack.c.b16 %v2007, %v2006
        %v2096 = vpack.c.b16 %v2009, %v2008
        %v2097 = vpack.c.b16 %v2011, %v2010
        %v2098 = vpack.c.b16 %v2013, %v2012
        %v2099 = vpack.c.b16 %v2015, %v2014
        %v2100 = vpack.c.b16 %v2017, %v2016
        %v2101 = vpack.c.b16 %v2019, %v2018
        %v2102 = vpack.c.b16 %v2021, %v2020
        %v2103 = vpack.c.b16 %v2023, %v2022
        %v2104 = vpack.c.b16 %v2025, %v2024
        %v2105 = vpack.c.b16 %v2027, %v2026
        %v2106 = vpack.c.b16 %v2029, %v2028
        %v2107 = vpack.c.b16 %v2031, %v2030
        %v2108 = vpack.c.b16 %v2033, %v2032
        %v2109 = vpack.c.b16 %v2035, %v2034
        %v2110 = vpack.c.b16 %v2037, %v2036
        %v2111 = vpack.c.b16 %v2039, %v2038
        %2184 = vmatprep.subr.bf16.mxu0 0
        %2185 = vmatpush1.bf16.msra.mxu0 %v2040
        %2186 = vmatprep.subr.bf16.mxu0 0
        %2187 = vmatpush1.bf16.msra.mxu0 %v2041
        %2188 = vmatprep.subr.bf16.mxu0 0
        %2189 = vmatpush1.bf16.msra.mxu0 %v2042
        %2190 = vmatprep.subr.bf16.mxu0 0
        %2191 = vmatpush1.bf16.msra.mxu0 %v2043
        %2192 = vmatprep.subr.bf16.mxu0 0
        %2193 = vmatpush1.bf16.msra.mxu0 %v2044
        %2194 = vmatprep.subr.bf16.mxu0 0
        %2195 = vmatpush1.bf16.msra.mxu0 %v2045
        %2196 = vmatprep.subr.bf16.mxu0 0
        %2197 = vmatpush1.bf16.msra.mxu0 %v2046
        %2198 = vmatprep.subr.bf16.mxu0 0
        %2199 = vmatpush1.bf16.msra.mxu0 %v2047
        %2200 = vmatprep.subr.bf16.mxu0 0
        %2201 = vmatpush1.bf16.msra.mxu0 %v2048
        %2202 = vmatprep.subr.bf16.mxu0 0
        %2203 = vmatpush1.bf16.msra.mxu0 %v2049
        %2204 = vmatprep.subr.bf16.mxu0 0
        %2205 = vmatpush1.bf16.msra.mxu0 %v2050
        %2206 = vmatprep.subr.bf16.mxu0 0
        %2207 = vmatpush1.bf16.msra.mxu0 %v2051
        %2208 = vmatprep.subr.bf16.mxu0 0
        %2209 = vmatpush1.bf16.msra.mxu0 %v2052
        %2210 = vmatprep.subr.bf16.mxu0 0
        %2211 = vmatpush1.bf16.msra.mxu0 %v2053
        %2212 = vmatprep.subr.bf16.mxu0 0
        %2213 = vmatpush1.bf16.msra.mxu0 %v2054
        %2214 = vmatprep.subr.bf16.mxu0 0
        %2215 = vmatpush1.bf16.msra.mxu0 %v2055
        %2216 = vmatprep.mubr.bf16.mxu0 %v1530
        %2217 = vmatmul.mubr.bf16.gmra.mrb[0].mxu0 %v1529
        %v2218 = vpop.f32.mrb[0].mxu0
        %v2219 = vadd.f32 %v1750, %v2218
        %v2220 = vpop.f32.mrb[0].mxu0
        %v2221 = vpop.f32.mrb[0].mxu0
        %v2222 = vadd.f32 %v1750, %v2221
        %v2223 = vpop.f32.mrb[0].mxu0
        %2224 = vmatprep.mubr.bf16.mxu0 %v1539
        %2225 = vmatmul.mubr.bf16.gmra.mrb[0].mxu0 %v1538
        %v2226 = vpop.f32.mrb[0].mxu0
        %v2227 = vadd.f32 %v1750, %v2226
        %v2228 = vpop.f32.mrb[0].mxu0
        %v2229 = vpop.f32.mrb[0].mxu0
        %v2230 = vadd.f32 %v1750, %v2229
        %v2231 = vpop.f32.mrb[0].mxu0
        %2232 = vmatprep.mubr.bf16.mxu0 %v1548
        %2233 = vmatmul.mubr.bf16.gmra.mrb[0].mxu0 %v1547
        %v2234 = vpop.f32.mrb[0].mxu0
        %v2235 = vadd.f32 %v1750, %v2234
        %v2236 = vpop.f32.mrb[0].mxu0
        %v2237 = vpop.f32.mrb[0].mxu0
        %v2238 = vadd.f32 %v1750, %v2237
        %v2239 = vpop.f32.mrb[0].mxu0
        %2240 = vmatprep.mubr.bf16.mxu0 %v1557
        %2241 = vmatmul.mubr.bf16.gmra.mrb[0].mxu0 %v1556
        %v2242 = vpop.f32.mrb[0].mxu0
        %v2243 = vadd.f32 %v1750, %v2242
        %v2244 = vpop.f32.mrb[0].mxu0
        %v2245 = vpop.f32.mrb[0].mxu0
        %v2246 = vadd.f32 %v1750, %v2245
        %v2247 = vpop.f32.mrb[0].mxu0
        %2248 = vmatprep.mubr.bf16.mxu0 %v1566
        %2249 = vmatmul.mubr.bf16.gmra.mrb[0].mxu0 %v1565
        %v2250 = vpop.f32.mrb[0].mxu0
        %v2251 = vadd.f32 %v1750, %v2250
        %v2252 = vpop.f32.mrb[0].mxu0
        %v2253 = vpop.f32.mrb[0].mxu0
        %v2254 = vadd.f32 %v1750, %v2253
        %v2255 = vpop.f32.mrb[0].mxu0
        %2256 = vmatprep.mubr.bf16.mxu0 %v1575
        %2257 = vmatmul.mubr.bf16.gmra.mrb[0].mxu0 %v1574
        %v2258 = vpop.f32.mrb[0].mxu0
        %v2259 = vadd.f32 %v1750, %v2258
        %v2260 = vpop.f32.mrb[0].mxu0
        %v2261 = vpop.f32.mrb[0].mxu0
        %v2262 = vadd.f32 %v1750, %v2261
        %v2263 = vpop.f32.mrb[0].mxu0
        %2264 = vmatprep.mubr.bf16.mxu0 %v1584
        %2265 = vmatmul.mubr.bf16.gmra.mrb[0].mxu0 %v1583
        %v2266 = vpop.f32.mrb[0].mxu0
        %v2267 = vadd.f32 %v1750, %v2266
        %v2268 = vpop.f32.mrb[0].mxu0
        %v2269 = vpop.f32.mrb[0].mxu0
        %v2270 = vadd.f32 %v1750, %v2269
        %v2271 = vpop.f32.mrb[0].mxu0
        %2272 = vmatprep.mubr.bf16.mxu0 %v1593
        %2273 = vmatmul.mubr.bf16.gmra.mrb[0].mxu0 %v1592
        %v2274 = vpop.f32.mrb[0].mxu0
        %v2275 = vadd.f32 %v1750, %v2274
        %v2276 = vpop.f32.mrb[0].mxu0
        %v2277 = vpop.f32.mrb[0].mxu0
        %v2278 = vadd.f32 %v1750, %v2277
        %v2279 = vpop.f32.mrb[0].mxu0
        %2280 = vdwg.mxu0
        %2281 = vmatprep.subr.bf16.mxu0 0
        %2282 = vmatpush1.bf16.msra.mxu0 %v2056
        %2283 = vmatprep.subr.bf16.mxu0 0
        %2284 = vmatpush1.bf16.msra.mxu0 %v2057
        %2285 = vmatprep.subr.bf16.mxu0 0
        %2286 = vmatpush1.bf16.msra.mxu0 %v2058
        %2287 = vmatprep.subr.bf16.mxu0 0
        %2288 = vmatpush1.bf16.msra.mxu0 %v2059
        %2289 = vmatprep.subr.bf16.mxu0 0
        %2290 = vmatpush1.bf16.msra.mxu0 %v2060
        %2291 = vmatprep.subr.bf16.mxu0 0
        %2292 = vmatpush1.bf16.msra.mxu0 %v2061
        %2293 = vmatprep.subr.bf16.mxu0 0
        %2294 = vmatpush1.bf16.msra.mxu0 %v2062
        %2295 = vmatprep.subr.bf16.mxu0 0
        %2296 = vmatpush1.bf16.msra.mxu0 %v2063
        %2297 = vmatprep.subr.bf16.mxu0 0
        %2298 = vmatpush1.bf16.msra.mxu0 %v2064
        %2299 = vmatprep.subr.bf16.mxu0 0
        %2300 = vmatpush1.bf16.msra.mxu0 %v2065
        %2301 = vmatprep.subr.bf16.mxu0 0
        %2302 = vmatpush1.bf16.msra.mxu0 %v2066
        %2303 = vmatprep.subr.bf16.mxu0 0
        %2304 = vmatpush1.bf16.msra.mxu0 %v2067
        %2305 = vmatprep.subr.bf16.mxu0 0
        %2306 = vmatpush1.bf16.msra.mxu0 %v2068
        %2307 = vmatprep.subr.bf16.mxu0 0
        %2308 = vmatpush1.bf16.msra.mxu0 %v2069
        %2309 = vmatprep.subr.bf16.mxu0 0
        %2310 = vmatpush1.bf16.msra.mxu0 %v2070
        %2311 = vmatprep.subr.bf16.mxu0 0
        %2312 = vmatpush1.bf16.msra.mxu0 %v2071
        %2313 = vmatprep.mubr.bf16.mxu0 %v1532
        %2314 = vmatmul.mubr.bf16.gmra.mrb[0].mxu0 %v1531
        %v2315 = vpop.f32.mrb[0].mxu0
        %v2316 = vadd.f32 %v2219, %v2315
        %v2317 = vpop.f32.mrb[0].mxu0
        %v2318 = vpop.f32.mrb[0].mxu0
        %v2319 = vadd.f32 %v2222, %v2318
        %v2320 = vpop.f32.mrb[0].mxu0
        %2321 = vmatprep.mubr.bf16.mxu0 %v1541
        %2322 = vmatmul.mubr.bf16.gmra.mrb[0].mxu0 %v1540
        %v2323 = vpop.f32.mrb[0].mxu0
        %v2324 = vadd.f32 %v2227, %v2323
        %v2325 = vpop.f32.mrb[0].mxu0
        %v2326 = vpop.f32.mrb[0].mxu0
        %v2327 = vadd.f32 %v2230, %v2326
        %v2328 = vpop.f32.mrb[0].mxu0
        %2329 = vmatprep.mubr.bf16.mxu0 %v1550
        %2330 = vmatmul.mubr.bf16.gmra.mrb[0].mxu0 %v1549
        %v2331 = vpop.f32.mrb[0].mxu0
        %v2332 = vadd.f32 %v2235, %v2331
        %v2333 = vpop.f32.mrb[0].mxu0
        %v2334 = vpop.f32.mrb[0].mxu0
        %v2335 = vadd.f32 %v2238, %v2334
        %v2336 = vpop.f32.mrb[0].mxu0
        %2337 = vmatprep.mubr.bf16.mxu0 %v1559
        %2338 = vmatmul.mubr.bf16.gmra.mrb[0].mxu0 %v1558
        %v2339 = vpop.f32.mrb[0].mxu0
        %v2340 = vadd.f32 %v2243, %v2339
        %v2341 = vpop.f32.mrb[0].mxu0
        %v2342 = vpop.f32.mrb[0].mxu0
        %v2343 = vadd.f32 %v2246, %v2342
        %v2344 = vpop.f32.mrb[0].mxu0
        %2345 = vmatprep.mubr.bf16.mxu0 %v1568
        %2346 = vmatmul.mubr.bf16.gmra.mrb[0].mxu0 %v1567
        %v2347 = vpop.f32.mrb[0].mxu0
        %v2348 = vadd.f32 %v2251, %v2347
        %v2349 = vpop.f32.mrb[0].mxu0
        %v2350 = vpop.f32.mrb[0].mxu0
        %v2351 = vadd.f32 %v2254, %v2350
        %v2352 = vpop.f32.mrb[0].mxu0
        %2353 = vmatprep.mubr.bf16.mxu0 %v1577
        %2354 = vmatmul.mubr.bf16.gmra.mrb[0].mxu0 %v1576
        %v2355 = vpop.f32.mrb[0].mxu0
        %v2356 = vadd.f32 %v2259, %v2355
        %v2357 = vpop.f32.mrb[0].mxu0
        %v2358 = vpop.f32.mrb[0].mxu0
        %v2359 = vadd.f32 %v2262, %v2358
        %v2360 = vpop.f32.mrb[0].mxu0
        %2361 = vmatprep.mubr.bf16.mxu0 %v1586
        %2362 = vmatmul.mubr.bf16.gmra.mrb[0].mxu0 %v1585
        %v2363 = vpop.f32.mrb[0].mxu0
        %v2364 = vadd.f32 %v2267, %v2363
        %v2365 = vpop.f32.mrb[0].mxu0
        %v2366 = vpop.f32.mrb[0].mxu0
        %v2367 = vadd.f32 %v2270, %v2366
        %v2368 = vpop.f32.mrb[0].mxu0
        %2369 = vmatprep.mubr.bf16.mxu0 %v1595
        %2370 = vmatmul.mubr.bf16.gmra.mrb[0].mxu0 %v1594
        %v2371 = vpop.f32.mrb[0].mxu0
        %v2372 = vadd.f32 %v2275, %v2371
        %v2373 = vpop.f32.mrb[0].mxu0
        %v2374 = vpop.f32.mrb[0].mxu0
        %v2375 = vadd.f32 %v2278, %v2374
        %v2376 = vpop.f32.mrb[0].mxu0
        %2377 = vdwg.mxu0
        %2378 = vmatprep.subr.bf16.mxu0 0
        %2379 = vmatpush1.bf16.msra.mxu0 %v2072
        %2380 = vmatprep.subr.bf16.mxu0 0
        %2381 = vmatpush1.bf16.msra.mxu0 %v2073
        %2382 = vmatprep.subr.bf16.mxu0 0
        %2383 = vmatpush1.bf16.msra.mxu0 %v2074
        %2384 = vmatprep.subr.bf16.mxu0 0
        %2385 = vmatpush1.bf16.msra.mxu0 %v2075
        %2386 = vmatprep.subr.bf16.mxu0 0
        %2387 = vmatpush1.bf16.msra.mxu0 %v2076
        %2388 = vmatprep.subr.bf16.mxu0 0
        %2389 = vmatpush1.bf16.msra.mxu0 %v2077
        %2390 = vmatprep.subr.bf16.mxu0 0
        %2391 = vmatpush1.bf16.msra.mxu0 %v2078
        %2392 = vmatprep.subr.bf16.mxu0 0
        %2393 = vmatpush1.bf16.msra.mxu0 %v2079
        %2394 = vmatprep.subr.bf16.mxu0 0
        %2395 = vmatpush1.bf16.msra.mxu0 %v2080
        %2396 = vmatprep.subr.bf16.mxu0 0
        %2397 = vmatpush1.bf16.msra.mxu0 %v2081
        %2398 = vmatprep.subr.bf16.mxu0 0
        %2399 = vmatpush1.bf16.msra.mxu0 %v2082
        %2400 = vmatprep.subr.bf16.mxu0 0
        %2401 = vmatpush1.bf16.msra.mxu0 %v2083
        %2402 = vmatprep.subr.bf16.mxu0 0
        %2403 = vmatpush1.bf16.msra.mxu0 %v2084
        %2404 = vmatprep.subr.bf16.mxu0 0
        %2405 = vmatpush1.bf16.msra.mxu0 %v2085
        %2406 = vmatprep.subr.bf16.mxu0 0
        %2407 = vmatpush1.bf16.msra.mxu0 %v2086
        %2408 = vmatprep.subr.bf16.mxu0 0
        %2409 = vmatpush1.bf16.msra.mxu0 %v2087
        %2410 = vmatprep.mubr.bf16.mxu0 %v1534
        %2411 = vmatmul.mubr.bf16.gmra.mrb[0].mxu0 %v1533
        %v2412 = vpop.f32.mrb[0].mxu0
        %v2413 = vadd.f32 %v2316, %v2412
        %v2414 = vpop.f32.mrb[0].mxu0
        %v2415 = vpop.f32.mrb[0].mxu0
        %v2416 = vadd.f32 %v2319, %v2415
        %v2417 = vpop.f32.mrb[0].mxu0
        %2418 = vmatprep.mubr.bf16.mxu0 %v1543
        %2419 = vmatmul.mubr.bf16.gmra.mrb[0].mxu0 %v1542
        %v2420 = vpop.f32.mrb[0].mxu0
        %v2421 = vadd.f32 %v2324, %v2420
        %v2422 = vpop.f32.mrb[0].mxu0
        %v2423 = vpop.f32.mrb[0].mxu0
        %v2424 = vadd.f32 %v2327, %v2423
        %v2425 = vpop.f32.mrb[0].mxu0
        %2426 = vmatprep.mubr.bf16.mxu0 %v1552
        %2427 = vmatmul.mubr.bf16.gmra.mrb[0].mxu0 %v1551
        %v2428 = vpop.f32.mrb[0].mxu0
        %v2429 = vadd.f32 %v2332, %v2428
        %v2430 = vpop.f32.mrb[0].mxu0
        %v2431 = vpop.f32.mrb[0].mxu0
        %v2432 = vadd.f32 %v2335, %v2431
        %v2433 = vpop.f32.mrb[0].mxu0
        %2434 = vmatprep.mubr.bf16.mxu0 %v1561
        %2435 = vmatmul.mubr.bf16.gmra.mrb[0].mxu0 %v1560
        %v2436 = vpop.f32.mrb[0].mxu0
        %v2437 = vadd.f32 %v2340, %v2436
        %v2438 = vpop.f32.mrb[0].mxu0
        %v2439 = vpop.f32.mrb[0].mxu0
        %v2440 = vadd.f32 %v2343, %v2439
        %v2441 = vpop.f32.mrb[0].mxu0
        %2442 = vmatprep.mubr.bf16.mxu0 %v1570
        %2443 = vmatmul.mubr.bf16.gmra.mrb[0].mxu0 %v1569
        %v2444 = vpop.f32.mrb[0].mxu0
        %v2445 = vadd.f32 %v2348, %v2444
        %v2446 = vpop.f32.mrb[0].mxu0
        %v2447 = vpop.f32.mrb[0].mxu0
        %v2448 = vadd.f32 %v2351, %v2447
        %v2449 = vpop.f32.mrb[0].mxu0
        %2450 = vmatprep.mubr.bf16.mxu0 %v1579
        %2451 = vmatmul.mubr.bf16.gmra.mrb[0].mxu0 %v1578
        %v2452 = vpop.f32.mrb[0].mxu0
        %v2453 = vadd.f32 %v2356, %v2452
        %v2454 = vpop.f32.mrb[0].mxu0
        %v2455 = vpop.f32.mrb[0].mxu0
        %v2456 = vadd.f32 %v2359, %v2455
        %v2457 = vpop.f32.mrb[0].mxu0
        %2458 = vmatprep.mubr.bf16.mxu0 %v1588
        %2459 = vmatmul.mubr.bf16.gmra.mrb[0].mxu0 %v1587
        %v2460 = vpop.f32.mrb[0].mxu0
        %v2461 = vadd.f32 %v2364, %v2460
        %v2462 = vpop.f32.mrb[0].mxu0
        %v2463 = vpop.f32.mrb[0].mxu0
        %v2464 = vadd.f32 %v2367, %v2463
        %v2465 = vpop.f32.mrb[0].mxu0
        %2466 = vmatprep.mubr.bf16.mxu0 %v1597
        %2467 = vmatmul.mubr.bf16.gmra.mrb[0].mxu0 %v1596
        %v2468 = vpop.f32.mrb[0].mxu0
        %v2469 = vadd.f32 %v2372, %v2468
        %v2470 = vpop.f32.mrb[0].mxu0
        %v2471 = vpop.f32.mrb[0].mxu0
        %v2472 = vadd.f32 %v2375, %v2471
        %v2473 = vpop.f32.mrb[0].mxu0
        %2474 = vdwg.mxu0
        %2475 = vmatprep.subr.bf16.mxu0 0
        %2476 = vmatpush1.bf16.msra.mxu0 %v2088
        %2477 = vmatprep.subr.bf16.mxu0 0
        %2478 = vmatpush1.bf16.msra.mxu0 %v2089
        %2479 = vmatprep.subr.bf16.mxu0 0
        %2480 = vmatpush1.bf16.msra.mxu0 %v2090
        %2481 = vmatprep.subr.bf16.mxu0 0
        %2482 = vmatpush1.bf16.msra.mxu0 %v2091
        %2483 = vmatprep.subr.bf16.mxu0 0
        %2484 = vmatpush1.bf16.msra.mxu0 %v2092
        %2485 = vmatprep.subr.bf16.mxu0 0
        %2486 = vmatpush1.bf16.msra.mxu0 %v2093
        %2487 = vmatprep.subr.bf16.mxu0 0
        %2488 = vmatpush1.bf16.msra.mxu0 %v2094
        %2489 = vmatprep.subr.bf16.mxu0 0
        %2490 = vmatpush1.bf16.msra.mxu0 %v2095
        %2491 = vmatprep.subr.bf16.mxu0 0
        %2492 = vmatpush1.bf16.msra.mxu0 %v2096
        %2493 = vmatprep.subr.bf16.mxu0 0
        %2494 = vmatpush1.bf16.msra.mxu0 %v2097
        %2495 = vmatprep.subr.bf16.mxu0 0
        %2496 = vmatpush1.bf16.msra.mxu0 %v2098
        %2497 = vmatprep.subr.bf16.mxu0 0
        %2498 = vmatpush1.bf16.msra.mxu0 %v2099
        %2499 = vmatprep.subr.bf16.mxu0 0
        %2500 = vmatpush1.bf16.msra.mxu0 %v2100
        %2501 = vmatprep.subr.bf16.mxu0 0
        %2502 = vmatpush1.bf16.msra.mxu0 %v2101
        %2503 = vmatprep.subr.bf16.mxu0 0
        %2504 = vmatpush1.bf16.msra.mxu0 %v2102
        %2505 = vmatprep.subr.bf16.mxu0 0
        %2506 = vmatpush1.bf16.msra.mxu0 %v2103
        %2507 = vmatprep.mubr.bf16.mxu0 %v1536
        %2508 = vmatmul.mubr.bf16.gmra.mrb[0].mxu0 %v1535
        %v2509 = vpop.f32.mrb[0].mxu0
        %v2510 = vadd.f32 %v2413, %v2509
        %v2511 = vpop.f32.mrb[0].mxu0
        %v2512 = vpop.f32.mrb[0].mxu0
        %v2513 = vadd.f32 %v2416, %v2512
        %v2514 = vpop.f32.mrb[0].mxu0
        %2515 = vmatprep.mubr.bf16.mxu0 %v1545
        %2516 = vmatmul.mubr.bf16.gmra.mrb[0].mxu0 %v1544
        %v2517 = vpop.f32.mrb[0].mxu0
        %v2518 = vadd.f32 %v2421, %v2517
        %v2519 = vpop.f32.mrb[0].mxu0
        %v2520 = vpop.f32.mrb[0].mxu0
        %v2521 = vadd.f32 %v2424, %v2520
        %v2522 = vpop.f32.mrb[0].mxu0
        %2523 = vmatprep.mubr.bf16.mxu0 %v1554
        %2524 = vmatmul.mubr.bf16.gmra.mrb[0].mxu0 %v1553
        %v2525 = vpop.f32.mrb[0].mxu0
        %v2526 = vadd.f32 %v2429, %v2525
        %v2527 = vpop.f32.mrb[0].mxu0
        %v2528 = vpop.f32.mrb[0].mxu0
        %v2529 = vadd.f32 %v2432, %v2528
        %v2530 = vpop.f32.mrb[0].mxu0
        %2531 = vmatprep.mubr.bf16.mxu0 %v1563
        %2532 = vmatmul.mubr.bf16.gmra.mrb[0].mxu0 %v1562
        %v2533 = vpop.f32.mrb[0].mxu0
        %v2534 = vadd.f32 %v2437, %v2533
        %v2535 = vpop.f32.mrb[0].mxu0
        %v2536 = vpop.f32.mrb[0].mxu0
        %v2537 = vadd.f32 %v2440, %v2536
        %v2538 = vpop.f32.mrb[0].mxu0
        %2539 = vmatprep.mubr.bf16.mxu0 %v1572
        %2540 = vmatmul.mubr.bf16.gmra.mrb[0].mxu0 %v1571
        %v2541 = vpop.f32.mrb[0].mxu0
        %v2542 = vadd.f32 %v2445, %v2541
        %v2543 = vpop.f32.mrb[0].mxu0
        %v2544 = vpop.f32.mrb[0].mxu0
        %v2545 = vadd.f32 %v2448, %v2544
        %v2546 = vpop.f32.mrb[0].mxu0
        %2547 = vmatprep.mubr.bf16.mxu0 %v1581
        %2548 = vmatmul.mubr.bf16.gmra.mrb[0].mxu0 %v1580
        %v2549 = vpop.f32.mrb[0].mxu0
        %v2550 = vadd.f32 %v2453, %v2549
        %v2551 = vpop.f32.mrb[0].mxu0
        %v2552 = vpop.f32.mrb[0].mxu0
        %v2553 = vadd.f32 %v2456, %v2552
        %v2554 = vpop.f32.mrb[0].mxu0
        %2555 = vmatprep.mubr.bf16.mxu0 %v1590
        %2556 = vmatmul.mubr.bf16.gmra.mrb[0].mxu0 %v1589
        %v2557 = vpop.f32.mrb[0].mxu0
        %v2558 = vadd.f32 %v2461, %v2557
        %v2559 = vpop.f32.mrb[0].mxu0
        %v2560 = vpop.f32.mrb[0].mxu0
        %v2561 = vadd.f32 %v2464, %v2560
        %v2562 = vpop.f32.mrb[0].mxu0
        %2563 = vmatprep.mubr.bf16.mxu0 %v1599
        %2564 = vmatmul.mubr.bf16.gmra.mrb[0].mxu0 %v1598
        %v2565 = vpop.f32.mrb[0].mxu0
        %v2566 = vadd.f32 %v2469, %v2565
        %v2567 = vpop.f32.mrb[0].mxu0
        %v2568 = vpop.f32.mrb[0].mxu0
        %v2569 = vadd.f32 %v2472, %v2568
        %v2570 = vpop.f32.mrb[0].mxu0
        %2571 = vdwg.mxu0
        %2572 = vmatprep.subr.bf16.mxu0 0
        %2573 = vmatpush1.bf16.msra.mxu0 %v2104
        %2574 = vmatprep.subr.bf16.mxu0 0
        %2575 = vmatpush1.bf16.msra.mxu0 %v2105
        %2576 = vmatprep.subr.bf16.mxu0 0
        %2577 = vmatpush1.bf16.msra.mxu0 %v2106
        %2578 = vmatprep.subr.bf16.mxu0 0
        %2579 = vmatpush1.bf16.msra.mxu0 %v2107
        %2580 = vmatprep.subr.bf16.mxu0 0
        %2581 = vmatpush1.bf16.msra.mxu0 %v2108
        %2582 = vmatprep.subr.bf16.mxu0 0
        %2583 = vmatpush1.bf16.msra.mxu0 %v2109
        %2584 = vmatprep.subr.bf16.mxu0 0
        %2585 = vmatpush1.bf16.msra.mxu0 %v2110
        %2586 = vmatprep.subr.bf16.mxu0 0
        %2587 = vmatpush1.bf16.msra.mxu0 %v2111
        %2588 = vmatprep.subr.bf16.mxu0 0
        %2589 = vmatpush1.bf16.msra.mxu0 0
        %2590 = vmatprep.subr.bf16.mxu0 0
        %2591 = vmatpush1.bf16.msra.mxu0 0
        %2592 = vmatprep.subr.bf16.mxu0 0
        %2593 = vmatpush1.bf16.msra.mxu0 0
        %2594 = vmatprep.subr.bf16.mxu0 0
        %2595 = vmatpush1.bf16.msra.mxu0 0
        %2596 = vmatprep.subr.bf16.mxu0 0
        %2597 = vmatpush1.bf16.msra.mxu0 0
        %2598 = vmatprep.subr.bf16.mxu0 0
        %2599 = vmatpush1.bf16.msra.mxu0 0
        %2600 = vmatprep.subr.bf16.mxu0 0
        %2601 = vmatpush1.bf16.msra.mxu0 0
        %2602 = vmatprep.subr.bf16.mxu0 0
        %2603 = vmatpush1.bf16.msra.mxu0 0
        %2604 = vmatprep.mubr.bf16.mxu0 0
        %2605 = vmatmul.mubr.bf16.gmra.mrb[0].mxu0 %v1537
        %v2606 = vpop.f32.mrb[0].mxu0
        %v2607 = vadd.f32 %v2510, %v2606
        %v2608 = vpop.f32.mrb[0].mxu0
        %v2609 = vpop.f32.mrb[0].mxu0
        %v2610 = vadd.f32 %v2513, %v2609
        %v2611 = vpop.f32.mrb[0].mxu0
        %2612 = vmatprep.mubr.bf16.mxu0 0
        %2613 = vmatmul.mubr.bf16.gmra.mrb[0].mxu0 %v1546
        %v2614 = vpop.f32.mrb[0].mxu0
        %v2615 = vadd.f32 %v2518, %v2614
        %v2616 = vpop.f32.mrb[0].mxu0
        %v2617 = vpop.f32.mrb[0].mxu0
        %v2618 = vadd.f32 %v2521, %v2617
        %v2619 = vpop.f32.mrb[0].mxu0
        %2620 = vmatprep.mubr.bf16.mxu0 0
        %2621 = vmatmul.mubr.bf16.gmra.mrb[0].mxu0 %v1555
        %v2622 = vpop.f32.mrb[0].mxu0
        %v2623 = vadd.f32 %v2526, %v2622
        %v2624 = vpop.f32.mrb[0].mxu0
        %v2625 = vpop.f32.mrb[0].mxu0
        %v2626 = vadd.f32 %v2529, %v2625
        %v2627 = vpop.f32.mrb[0].mxu0
        %2628 = vmatprep.mubr.bf16.mxu0 0
        %2629 = vmatmul.mubr.bf16.gmra.mrb[0].mxu0 %v1564
        %v2630 = vpop.f32.mrb[0].mxu0
        %v2631 = vadd.f32 %v2534, %v2630
        %v2632 = vpop.f32.mrb[0].mxu0
        %v2633 = vpop.f32.mrb[0].mxu0
        %v2634 = vadd.f32 %v2537, %v2633
        %v2635 = vpop.f32.mrb[0].mxu0
        %2636 = vmatprep.mubr.bf16.mxu0 0
        %2637 = vmatmul.mubr.bf16.gmra.mrb[0].mxu0 %v1573
        %v2638 = vpop.f32.mrb[0].mxu0
        %v2639 = vadd.f32 %v2542, %v2638
        %v2640 = vpop.f32.mrb[0].mxu0
        %v2641 = vpop.f32.mrb[0].mxu0
        %v2642 = vadd.f32 %v2545, %v2641
        %v2643 = vpop.f32.mrb[0].mxu0
        %2644 = vmatprep.mubr.bf16.mxu0 0
        %2645 = vmatmul.mubr.bf16.gmra.mrb[0].mxu0 %v1582
        %v2646 = vpop.f32.mrb[0].mxu0
        %v2647 = vadd.f32 %v2550, %v2646
        %v2648 = vpop.f32.mrb[0].mxu0
        %v2649 = vpop.f32.mrb[0].mxu0
        %v2650 = vadd.f32 %v2553, %v2649
        %v2651 = vpop.f32.mrb[0].mxu0
        %2652 = vmatprep.mubr.bf16.mxu0 0
        %2653 = vmatmul.mubr.bf16.gmra.mrb[0].mxu0 %v1591
        %v2654 = vpop.f32.mrb[0].mxu0
        %v2655 = vadd.f32 %v2558, %v2654
        %v2656 = vpop.f32.mrb[0].mxu0
        %v2657 = vpop.f32.mrb[0].mxu0
        %v2658 = vadd.f32 %v2561, %v2657
        %v2659 = vpop.f32.mrb[0].mxu0
        %2660 = vmatprep.mubr.bf16.mxu0 0
        %2661 = vmatmul.mubr.bf16.gmra.mrb[0].mxu0 %v1600
        %v2662 = vpop.f32.mrb[0].mxu0
        %v2663 = vadd.f32 %v2566, %v2662
        %v2664 = vpop.f32.mrb[0].mxu0
        %v2665 = vpop.f32.mrb[0].mxu0
        %v2666 = vadd.f32 %v2569, %v2665
        %v2667 = vpop.f32.mrb[0].mxu0
        %2668 = vdwg.mxu0
        %v2669 = vmax.f32 %v2607, 0.0
        %v2670 = vmax.f32 %v2610, 0.0
        %v2671 = vmax.f32 %v2615, 0.0
        %v2672 = vmax.f32 %v2618, 0.0
        %v2673 = vmax.f32 %v2623, 0.0
        %v2674 = vmax.f32 %v2626, 0.0
        %v2675 = vmax.f32 %v2631, 0.0
        %v2676 = vmax.f32 %v2634, 0.0
        %v2677 = vmax.f32 %v2639, 0.0
        %v2678 = vmax.f32 %v2642, 0.0
        %v2679 = vmax.f32 %v2647, 0.0
        %v2680 = vmax.f32 %v2650, 0.0
        %v2681 = vmax.f32 %v2655, 0.0
        %v2682 = vmax.f32 %v2658, 0.0
        %v2683 = vmax.f32 %v2663, 0.0
        %v2684 = vmax.f32 %v2666, 0.0
        %v2685 = vpack.c.bf16 %v2670, %v2669
        %v2686 = vpack.c.bf16 %v2672, %v2671
        %v2687 = vpack.c.bf16 %v2674, %v2673
        %v2688 = vpack.c.bf16 %v2676, %v2675
        %v2689 = vpack.c.bf16 %v2678, %v2677
        %v2690 = vpack.c.bf16 %v2680, %v2679
        %v2691 = vpack.c.bf16 %v2682, %v2681
        %v2692 = vpack.c.bf16 %v2684, %v2683
        %2693 = vst [vmem:[#allocation2 + $0x8] sm:$0xff] %v2685
        %2694 = vst [vmem:[#allocation2 + $0x10] sm:$0xff] %v2686
        %2695 = vst [vmem:[#allocation2 + $0x18] sm:$0xff] %v2687
        %2696 = vst [vmem:[#allocation2 + $0x20] sm:$0xff] %v2688
        %2697 = vst [vmem:[%s500 + $0x8] sm:$0xff] %v2689
        %2698 = vst [vmem:[%s500 + $0x10] sm:$0xff] %v2690
        %2699 = vst [vmem:[%s500 + $0x18] sm:$0xff] %v2691
        %2700 = vst [vmem:[%s500 + $0x20] sm:$0xff] %v2692
        %v2701 = vld [vmem:[#allocation2] sm:$0xf8]
        %v2702 = vld [vmem:[#allocation2 + $0x8] sm:$0xff]
        %v2703 = vld [vmem:[#allocation2 + $0x10] sm:$0xff]
        %v2704 = vld [vmem:[#allocation2 + $0x18] sm:$0xff]
        %v2705 = vld [vmem:[#allocation2 + $0x20] sm:$0xf]
        %v2706 = vsel %vm589, %v2701, 0
        %v2707 = vsel %vm590, %v2702, 0
        %v2708 = vsel %vm591, %v2703, 0
        %v2709 = vsel %vm592, %v2704, 0
        %v2710 = vsel %vm593, %v2705, 0
        %v2712 = vshrl.u32 %v2706, 16
        %v2714 = vrot.slane %v2712, 3
        %v2715 = vshll.u32 %v2706, 16
        %v2717 = vrot.slane %v2715, 4
        %v2718 = vor.u32 %v2714, %v2717
        %v2720 = vshrl.u32 %v2707, 16
        %v2722 = vrot.slane %v2720, 3
        %v2723 = vshll.u32 %v2707, 16
        %v2725 = vrot.slane %v2723, 4
        %v2726 = vor.u32 %v2722, %v2725
        %v2727 = vsel %vm599, %v2718, %v2726
        %v2729 = vshrl.u32 %v2708, 16
        %v2731 = vrot.slane %v2729, 3
        %v2732 = vshll.u32 %v2708, 16
        %v2734 = vrot.slane %v2732, 4
        %v2735 = vor.u32 %v2731, %v2734
        %v2736 = vsel %vm599, %v2726, %v2735
        %v2738 = vshrl.u32 %v2709, 16
        %v2740 = vrot.slane %v2738, 3
        %v2741 = vshll.u32 %v2709, 16
        %v2743 = vrot.slane %v2741, 4
        %v2744 = vor.u32 %v2740, %v2743
        %v2745 = vsel %vm599, %v2735, %v2744
        %v2747 = vshrl.u32 %v2710, 16
        %v2749 = vrot.slane %v2747, 3
        %v2750 = vshll.u32 %v2710, 16
        %v2752 = vrot.slane %v2750, 4
        %v2753 = vor.u32 %v2749, %v2752
        %v2754 = vsel %vm599, %v2744, %v2753
        %2759 = vst [vmem:[#allocation3] sm:$0xff] %v2727
        %2760 = vst [vmem:[#allocation3 + $0x48] sm:$0xff] %v2736
        %2761 = vst [vmem:[#allocation3 + $0x90] sm:$0xff] %v2745
        %2762 = vst [vmem:[#allocation3 + $0xd8] sm:$0xff] %v2754
        %v2763 = vld [vmem:[#allocation2] sm:$0xf0]
        %v2764 = vld [vmem:[#allocation2 + $0x8] sm:$0xff]
        %v2765 = vld [vmem:[#allocation2 + $0x10] sm:$0xff]
        %v2766 = vld [vmem:[#allocation2 + $0x18] sm:$0xff]
        %v2767 = vld [vmem:[#allocation2 + $0x20] sm:$0xf]
        %v2773 = vrot.slane %v2763, 4
        %v2774 = vrot.slane %v2764, 4
        %v2775 = vsel %vm662, %v2773, %v2774
        %v2776 = vrot.slane %v2765, 4
        %v2777 = vsel %vm662, %v2774, %v2776
        %v2778 = vrot.slane %v2766, 4
        %v2779 = vsel %vm662, %v2776, %v2778
        %v2780 = vrot.slane %v2767, 4
        %v2781 = vsel %vm662, %v2778, %v2780
        %2786 = vst [vmem:[#allocation3 + $0x8] sm:$0xff] %v2775
        %2787 = vst [vmem:[#allocation3 + $0x50] sm:$0xff] %v2777
        %2788 = vst [vmem:[#allocation3 + $0x98] sm:$0xff] %v2779
        %2789 = vst [vmem:[#allocation3 + $0xe0] sm:$0xff] %v2781
        %v2790 = vld [vmem:[#allocation2] sm:$0xf0]
        %v2791 = vld [vmem:[#allocation2 + $0x8] sm:$0xff]
        %v2792 = vld [vmem:[#allocation2 + $0x10] sm:$0xff]
        %v2793 = vld [vmem:[#allocation2 + $0x18] sm:$0xff]
        %v2794 = vld [vmem:[#allocation2 + $0x20] sm:$0x1f]
        %v2795 = vsel %vm748, %v2790, 0
        %v2796 = vsel %vm749, %v2791, 0
        %v2797 = vsel %vm750, %v2792, 0
        %v2798 = vsel %vm751, %v2793, 0
        %v2799 = vsel %vm752, %v2794, 0
        %v2801 = vshrl.u32 %v2795, 16
        %v2803 = vrot.slane %v2801, 4
        %v2804 = vshll.u32 %v2795, 16
        %v2806 = vrot.slane %v2804, 5
        %v2807 = vor.u32 %v2803, %v2806
        %v2809 = vshrl.u32 %v2796, 16
        %v2811 = vrot.slane %v2809, 4
        %v2812 = vshll.u32 %v2796, 16
        %v2814 = vrot.slane %v2812, 5
        %v2815 = vor.u32 %v2811, %v2814
        %v2816 = vsel %vm553, %v2807, %v2815
        %v2818 = vshrl.u32 %v2797, 16
        %v2820 = vrot.slane %v2818, 4
        %v2821 = vshll.u32 %v2797, 16
        %v2823 = vrot.slane %v2821, 5
        %v2824 = vor.u32 %v2820, %v2823
        %v2825 = vsel %vm553, %v2815, %v2824
        %v2827 = vshrl.u32 %v2798, 16
        %v2829 = vrot.slane %v2827, 4
        %v2830 = vshll.u32 %v2798, 16
        %v2832 = vrot.slane %v2830, 5
        %v2833 = vor.u32 %v2829, %v2832
        %v2834 = vsel %vm553, %v2824, %v2833
        %v2836 = vshrl.u32 %v2799, 16
        %v2838 = vrot.slane %v2836, 4
        %v2839 = vshll.u32 %v2799, 16
        %v2841 = vrot.slane %v2839, 5
        %v2842 = vor.u32 %v2838, %v2841
        %v2843 = vsel %vm553, %v2833, %v2842
        %2848 = vst [vmem:[#allocation3 + $0x10] sm:$0xff] %v2816
        %2849 = vst [vmem:[#allocation3 + $0x58] sm:$0xff] %v2825
        %2850 = vst [vmem:[#allocation3 + $0xa0] sm:$0xff] %v2834
        %2851 = vst [vmem:[#allocation3 + $0xe8] sm:$0xff] %v2843
        %v2852 = vld [vmem:[#allocation2] sm:$0x80]
        %v2853 = vld [vmem:[#allocation2 + $0x8] sm:$0xff]
        %v2854 = vld [vmem:[#allocation2 + $0x10] sm:$0xff]
        %v2855 = vld [vmem:[#allocation2 + $0x18] sm:$0xff]
        %v2856 = vld [vmem:[#allocation2 + $0x20] sm:$0xff]
        %v2857 = vsel %vm827, %v2852, 0
        %v2858 = vsel %vm828, %v2853, 0
        %v2859 = vsel %vm829, %v2854, 0
        %v2860 = vsel %vm830, %v2855, 0
        %v2861 = vsel %vm831, %v2856, 0
        %v2863 = vshrl.u32 %v2857, 16
        %v2865 = vrot.slane %v2863, 7
        %v2867 = vshrl.u32 %v2858, 16
        %v2869 = vrot.slane %v2867, 7
        %v2870 = vshll.u32 %v2858, 16
        %v2872 = vor.u32 %v2869, %v2870
        %v2873 = vsel %vm837, %v2865, %v2872
        %v2875 = vshrl.u32 %v2859, 16
        %v2877 = vrot.slane %v2875, 7
        %v2878 = vshll.u32 %v2859, 16
        %v2880 = vor.u32 %v2877, %v2878
        %v2881 = vsel %vm837, %v2869, %v2880
        %v2883 = vshrl.u32 %v2860, 16
        %v2885 = vrot.slane %v2883, 7
        %v2886 = vshll.u32 %v2860, 16
        %v2888 = vor.u32 %v2885, %v2886
        %v2889 = vsel %vm837, %v2877, %v2888
        %v2891 = vshrl.u32 %v2861, 16
        %v2893 = vrot.slane %v2891, 7
        %v2894 = vshll.u32 %v2861, 16
        %v2896 = vor.u32 %v2893, %v2894
        %v2897 = vsel %vm837, %v2885, %v2896
        %2902 = vst [vmem:[#allocation3 + $0x18] sm:$0xff] %v2873
        %2903 = vst [vmem:[#allocation3 + $0x60] sm:$0xff] %v2881
        %2904 = vst [vmem:[#allocation3 + $0xa8] sm:$0xff] %v2889
        %2905 = vst [vmem:[#allocation3 + $0xf0] sm:$0xff] %v2897
        %v2906 = vld [vmem:[#allocation2 + $0x8] sm:$0xff]
        %v2907 = vld [vmem:[#allocation2 + $0x10] sm:$0xff]
        %v2908 = vld [vmem:[#allocation2 + $0x18] sm:$0xff]
        %v2909 = vld [vmem:[#allocation2 + $0x20] sm:$0xff]
        %2910 = vst [vmem:[#allocation3 + $0x20] sm:$0xff] %v2906
        %2911 = vst [vmem:[#allocation3 + $0x68] sm:$0xff] %v2907
        %2912 = vst [vmem:[#allocation3 + $0xb0] sm:$0xff] %v2908
        %2913 = vst [vmem:[#allocation3 + $0xf8] sm:$0xff] %v2909
        %v2914 = vld [vmem:[#allocation2 + $0x8] sm:$0xff]
        %v2915 = vld [vmem:[#allocation2 + $0x10] sm:$0xff]
        %v2916 = vld [vmem:[#allocation2 + $0x18] sm:$0xff]
        %v2917 = vld [vmem:[#allocation2 + $0x20] sm:$0xff]
        %v2918 = vld [vmem:[#allocation2 + $0x28] sm:$0x1]
        %v2919 = vsel %vm906, %v2914, 0
        %v2920 = vsel %vm907, %v2915, 0
        %v2921 = vsel %vm908, %v2916, 0
        %v2922 = vsel %vm909, %v2917, 0
        %v2923 = vsel %vm910, %v2918, 0
        %v2925 = vshrl.u32 %v2919, 16
        %v2927 = vshll.u32 %v2919, 16
        %v2929 = vrot.slane %v2927, 1
        %v2930 = vor.u32 %v2925, %v2929
        %v2932 = vshll.u32 %v2920, 16
        %v2934 = vrot.slane %v2932, 1
        %v2935 = vsel %vm815, %v2930, %v2934
        %v2936 = vshrl.u32 %v2920, 16
        %v2938 = vor.u32 %v2936, %v2934
        %v2940 = vshll.u32 %v2921, 16
        %v2942 = vrot.slane %v2940, 1
        %v2943 = vsel %vm815, %v2938, %v2942
        %v2944 = vshrl.u32 %v2921, 16
        %v2946 = vor.u32 %v2944, %v2942
        %v2948 = vshll.u32 %v2922, 16
        %v2950 = vrot.slane %v2948, 1
        %v2951 = vsel %vm815, %v2946, %v2950
        %v2952 = vshrl.u32 %v2922, 16
        %v2954 = vor.u32 %v2952, %v2950
        %v2956 = vshll.u32 %v2923, 16
        %v2958 = vrot.slane %v2956, 1
        %v2959 = vsel %vm815, %v2954, %v2958
        %2964 = vst [vmem:[#allocation3 + $0x28] sm:$0xff] %v2935
        %2965 = vst [vmem:[#allocation3 + $0x70] sm:$0xff] %v2943
        %2966 = vst [vmem:[#allocation3 + $0xb8] sm:$0xff] %v2951
        %2967 = vst [vmem:[#allocation3 + $0x100] sm:$0xff] %v2959
        %v2968 = vld [vmem:[#allocation2 + $0x8] sm:$0xf8]
        %v2969 = vld [vmem:[#allocation2 + $0x10] sm:$0xff]
        %v2970 = vld [vmem:[#allocation2 + $0x18] sm:$0xff]
        %v2971 = vld [vmem:[#allocation2 + $0x20] sm:$0xff]
        %v2972 = vld [vmem:[#allocation2 + $0x28] sm:$0xf]
        %v2973 = vsel %vm589, %v2968, 0
        %v2974 = vsel %vm590, %v2969, 0
        %v2975 = vsel %vm591, %v2970, 0
        %v2976 = vsel %vm592, %v2971, 0
        %v2977 = vsel %vm593, %v2972, 0
        %v2979 = vshrl.u32 %v2973, 16
        %v2981 = vrot.slane %v2979, 3
        %v2982 = vshll.u32 %v2973, 16
        %v2984 = vrot.slane %v2982, 4
        %v2985 = vor.u32 %v2981, %v2984
        %v2987 = vshrl.u32 %v2974, 16
        %v2989 = vrot.slane %v2987, 3
        %v2990 = vshll.u32 %v2974, 16
        %v2992 = vrot.slane %v2990, 4
        %v2993 = vor.u32 %v2989, %v2992
        %v2994 = vsel %vm599, %v2985, %v2993
        %v2996 = vshrl.u32 %v2975, 16
        %v2998 = vrot.slane %v2996, 3
        %v2999 = vshll.u32 %v2975, 16
        %v3001 = vrot.slane %v2999, 4
        %v3002 = vor.u32 %v2998, %v3001
        %v3003 = vsel %vm599, %v2993, %v3002
        %v3005 = vshrl.u32 %v2976, 16
        %v3007 = vrot.slane %v3005, 3
        %v3008 = vshll.u32 %v2976, 16
        %v3010 = vrot.slane %v3008, 4
        %v3011 = vor.u32 %v3007, %v3010
        %v3012 = vsel %vm599, %v3002, %v3011
        %v3014 = vshrl.u32 %v2977, 16
        %v3016 = vrot.slane %v3014, 3
        %v3017 = vshll.u32 %v2977, 16
        %v3019 = vrot.slane %v3017, 4
        %v3020 = vor.u32 %v3016, %v3019
        %v3021 = vsel %vm599, %v3011, %v3020
        %3026 = vst [vmem:[#allocation3 + $0x30] sm:$0xff] %v2994
        %3027 = vst [vmem:[#allocation3 + $0x78] sm:$0xff] %v3003
        %3028 = vst [vmem:[#allocation3 + $0xc0] sm:$0xff] %v3012
        %3029 = vst [vmem:[#allocation3 + $0x108] sm:$0xff] %v3021
        %v3030 = vld [vmem:[#allocation2 + $0x8] sm:$0xf0]
        %v3031 = vld [vmem:[#allocation2 + $0x10] sm:$0xff]
        %v3032 = vld [vmem:[#allocation2 + $0x18] sm:$0xff]
        %v3033 = vld [vmem:[#allocation2 + $0x20] sm:$0xff]
        %v3034 = vld [vmem:[#allocation2 + $0x28] sm:$0xf]
        %v3040 = vrot.slane %v3030, 4
        %v3041 = vrot.slane %v3031, 4
        %v3042 = vsel %vm662, %v3040, %v3041
        %v3043 = vrot.slane %v3032, 4
        %v3044 = vsel %vm662, %v3041, %v3043
        %v3045 = vrot.slane %v3033, 4
        %v3046 = vsel %vm662, %v3043, %v3045
        %v3047 = vrot.slane %v3034, 4
        %v3048 = vsel %vm662, %v3045, %v3047
        %3053 = vst [vmem:[#allocation3 + $0x38] sm:$0xff] %v3042
        %3054 = vst [vmem:[#allocation3 + $0x80] sm:$0xff] %v3044
        %3055 = vst [vmem:[#allocation3 + $0xc8] sm:$0xff] %v3046
        %3056 = vst [vmem:[#allocation3 + $0x110] sm:$0xff] %v3048
        %v3057 = vld [vmem:[#allocation2 + $0x8] sm:$0xf0]
        %v3058 = vld [vmem:[#allocation2 + $0x10] sm:$0xff]
        %v3059 = vld [vmem:[#allocation2 + $0x18] sm:$0xff]
        %v3060 = vld [vmem:[#allocation2 + $0x20] sm:$0xff]
        %v3061 = vld [vmem:[#allocation2 + $0x28] sm:$0x1f]
        %v3062 = vsel %vm748, %v3057, 0
        %v3063 = vsel %vm749, %v3058, 0
        %v3064 = vsel %vm750, %v3059, 0
        %v3065 = vsel %vm751, %v3060, 0
        %v3066 = vsel %vm752, %v3061, 0
        %v3068 = vshrl.u32 %v3062, 16
        %v3070 = vrot.slane %v3068, 4
        %v3071 = vshll.u32 %v3062, 16
        %v3073 = vrot.slane %v3071, 5
        %v3074 = vor.u32 %v3070, %v3073
        %v3076 = vshrl.u32 %v3063, 16
        %v3078 = vrot.slane %v3076, 4
        %v3079 = vshll.u32 %v3063, 16
        %v3081 = vrot.slane %v3079, 5
        %v3082 = vor.u32 %v3078, %v3081
        %v3083 = vsel %vm553, %v3074, %v3082
        %v3085 = vshrl.u32 %v3064, 16
        %v3087 = vrot.slane %v3085, 4
        %v3088 = vshll.u32 %v3064, 16
        %v3090 = vrot.slane %v3088, 5
        %v3091 = vor.u32 %v3087, %v3090
        %v3092 = vsel %vm553, %v3082, %v3091
        %v3094 = vshrl.u32 %v3065, 16
        %v3096 = vrot.slane %v3094, 4
        %v3097 = vshll.u32 %v3065, 16
        %v3099 = vrot.slane %v3097, 5
        %v3100 = vor.u32 %v3096, %v3099
        %v3101 = vsel %vm553, %v3091, %v3100
        %v3103 = vshrl.u32 %v3066, 16
        %v3105 = vrot.slane %v3103, 4
        %v3106 = vshll.u32 %v3066, 16
        %v3108 = vrot.slane %v3106, 5
        %v3109 = vor.u32 %v3105, %v3108
        %v3110 = vsel %vm553, %v3100, %v3109
        %3115 = vst [vmem:[#allocation3 + $0x40] sm:$0xff] %v3083
        %3116 = vst [vmem:[#allocation3 + $0x88] sm:$0xff] %v3092
        %3117 = vst [vmem:[#allocation3 + $0xd0] sm:$0xff] %v3101
        %3118 = vst [vmem:[#allocation3 + $0x118] sm:$0xff] %v3110
        %v3119 = vld [vmem:[%s500] sm:$0xf8]
        %v3120 = vld [vmem:[%s500 + $0x8] sm:$0xff]
        %v3121 = vld [vmem:[%s500 + $0x10] sm:$0xff]
        %v3122 = vld [vmem:[%s500 + $0x18] sm:$0xff]
        %v3123 = vld [vmem:[%s500 + $0x20] sm:$0xf]
        %v3124 = vsel %vm589, %v3119, 0
        %v3125 = vsel %vm590, %v3120, 0
        %v3126 = vsel %vm591, %v3121, 0
        %v3127 = vsel %vm592, %v3122, 0
        %v3128 = vsel %vm593, %v3123, 0
        %v3130 = vshrl.u32 %v3124, 16
        %v3132 = vrot.slane %v3130, 3
        %v3133 = vshll.u32 %v3124, 16
        %v3135 = vrot.slane %v3133, 4
        %v3136 = vor.u32 %v3132, %v3135
        %v3138 = vshrl.u32 %v3125, 16
        %v3140 = vrot.slane %v3138, 3
        %v3141 = vshll.u32 %v3125, 16
        %v3143 = vrot.slane %v3141, 4
        %v3144 = vor.u32 %v3140, %v3143
        %v3145 = vsel %vm599, %v3136, %v3144
        %v3147 = vshrl.u32 %v3126, 16
        %v3149 = vrot.slane %v3147, 3
        %v3150 = vshll.u32 %v3126, 16
        %v3152 = vrot.slane %v3150, 4
        %v3153 = vor.u32 %v3149, %v3152
        %v3154 = vsel %vm599, %v3144, %v3153
        %v3156 = vshrl.u32 %v3127, 16
        %v3158 = vrot.slane %v3156, 3
        %v3159 = vshll.u32 %v3127, 16
        %v3161 = vrot.slane %v3159, 4
        %v3162 = vor.u32 %v3158, %v3161
        %v3163 = vsel %vm599, %v3153, %v3162
        %v3165 = vshrl.u32 %v3128, 16
        %v3167 = vrot.slane %v3165, 3
        %v3168 = vshll.u32 %v3128, 16
        %v3170 = vrot.slane %v3168, 4
        %v3171 = vor.u32 %v3167, %v3170
        %v3172 = vsel %vm599, %v3162, %v3171
        %3177 = vst [vmem:[#allocation3 + $0x120] sm:$0xff] %v3145
        %3178 = vst [vmem:[#allocation3 + $0x168] sm:$0xff] %v3154
        %3179 = vst [vmem:[#allocation3 + $0x1b0] sm:$0xff] %v3163
        %3180 = vst [vmem:[#allocation3 + $0x1f8] sm:$0xff] %v3172
        %v3181 = vld [vmem:[%s500] sm:$0xf0]
        %v3182 = vld [vmem:[%s500 + $0x8] sm:$0xff]
        %v3183 = vld [vmem:[%s500 + $0x10] sm:$0xff]
        %v3184 = vld [vmem:[%s500 + $0x18] sm:$0xff]
        %v3185 = vld [vmem:[%s500 + $0x20] sm:$0xf]
        %v3191 = vrot.slane %v3181, 4
        %v3192 = vrot.slane %v3182, 4
        %v3193 = vsel %vm662, %v3191, %v3192
        %v3194 = vrot.slane %v3183, 4
        %v3195 = vsel %vm662, %v3192, %v3194
        %v3196 = vrot.slane %v3184, 4
        %v3197 = vsel %vm662, %v3194, %v3196
        %v3198 = vrot.slane %v3185, 4
        %v3199 = vsel %vm662, %v3196, %v3198
        %3204 = vst [vmem:[#allocation3 + $0x128] sm:$0xff] %v3193
        %3205 = vst [vmem:[#allocation3 + $0x170] sm:$0xff] %v3195
        %3206 = vst [vmem:[#allocation3 + $0x1b8] sm:$0xff] %v3197
        %3207 = vst [vmem:[#allocation3 + $0x200] sm:$0xff] %v3199
        %v3208 = vld [vmem:[%s500] sm:$0xf0]
        %v3209 = vld [vmem:[%s500 + $0x8] sm:$0xff]
        %v3210 = vld [vmem:[%s500 + $0x10] sm:$0xff]
        %v3211 = vld [vmem:[%s500 + $0x18] sm:$0xff]
        %v3212 = vld [vmem:[%s500 + $0x20] sm:$0x1f]
        %v3213 = vsel %vm748, %v3208, 0
        %v3214 = vsel %vm749, %v3209, 0
        %v3215 = vsel %vm750, %v3210, 0
        %v3216 = vsel %vm751, %v3211, 0
        %v3217 = vsel %vm752, %v3212, 0
        %v3219 = vshrl.u32 %v3213, 16
        %v3221 = vrot.slane %v3219, 4
        %v3222 = vshll.u32 %v3213, 16
        %v3224 = vrot.slane %v3222, 5
        %v3225 = vor.u32 %v3221, %v3224
        %v3227 = vshrl.u32 %v3214, 16
        %v3229 = vrot.slane %v3227, 4
        %v3230 = vshll.u32 %v3214, 16
        %v3232 = vrot.slane %v3230, 5
        %v3233 = vor.u32 %v3229, %v3232
        %v3234 = vsel %vm553, %v3225, %v3233
        %v3236 = vshrl.u32 %v3215, 16
        %v3238 = vrot.slane %v3236, 4
        %v3239 = vshll.u32 %v3215, 16
        %v3241 = vrot.slane %v3239, 5
        %v3242 = vor.u32 %v3238, %v3241
        %v3243 = vsel %vm553, %v3233, %v3242
        %v3245 = vshrl.u32 %v3216, 16
        %v3247 = vrot.slane %v3245, 4
        %v3248 = vshll.u32 %v3216, 16
        %v3250 = vrot.slane %v3248, 5
        %v3251 = vor.u32 %v3247, %v3250
        %v3252 = vsel %vm553, %v3242, %v3251
        %v3254 = vshrl.u32 %v3217, 16
        %v3256 = vrot.slane %v3254, 4
        %v3257 = vshll.u32 %v3217, 16
        %v3259 = vrot.slane %v3257, 5
        %v3260 = vor.u32 %v3256, %v3259
        %v3261 = vsel %vm553, %v3251, %v3260
        %3266 = vst [vmem:[#allocation3 + $0x130] sm:$0xff] %v3234
        %3267 = vst [vmem:[#allocation3 + $0x178] sm:$0xff] %v3243
        %3268 = vst [vmem:[#allocation3 + $0x1c0] sm:$0xff] %v3252
        %3269 = vst [vmem:[#allocation3 + $0x208] sm:$0xff] %v3261
        %v3270 = vld [vmem:[%s500] sm:$0x80]
        %v3271 = vld [vmem:[%s500 + $0x8] sm:$0xff]
        %v3272 = vld [vmem:[%s500 + $0x10] sm:$0xff]
        %v3273 = vld [vmem:[%s500 + $0x18] sm:$0xff]
        %v3274 = vld [vmem:[%s500 + $0x20] sm:$0xff]
        %v3275 = vsel %vm827, %v3270, 0
        %v3276 = vsel %vm828, %v3271, 0
        %v3277 = vsel %vm829, %v3272, 0
        %v3278 = vsel %vm830, %v3273, 0
        %v3279 = vsel %vm831, %v3274, 0
        %v3281 = vshrl.u32 %v3275, 16
        %v3283 = vrot.slane %v3281, 7
        %v3285 = vshrl.u32 %v3276, 16
        %v3287 = vrot.slane %v3285, 7
        %v3288 = vshll.u32 %v3276, 16
        %v3290 = vor.u32 %v3287, %v3288
        %v3291 = vsel %vm837, %v3283, %v3290
        %v3293 = vshrl.u32 %v3277, 16
        %v3295 = vrot.slane %v3293, 7
        %v3296 = vshll.u32 %v3277, 16
        %v3298 = vor.u32 %v3295, %v3296
        %v3299 = vsel %vm837, %v3287, %v3298
        %v3301 = vshrl.u32 %v3278, 16
        %v3303 = vrot.slane %v3301, 7
        %v3304 = vshll.u32 %v3278, 16
        %v3306 = vor.u32 %v3303, %v3304
        %v3307 = vsel %vm837, %v3295, %v3306
        %v3309 = vshrl.u32 %v3279, 16
        %v3311 = vrot.slane %v3309, 7
        %v3312 = vshll.u32 %v3279, 16
        %v3314 = vor.u32 %v3311, %v3312
        %v3315 = vsel %vm837, %v3303, %v3314
        %3320 = vst [vmem:[#allocation3 + $0x138] sm:$0xff] %v3291
        %3321 = vst [vmem:[#allocation3 + $0x180] sm:$0xff] %v3299
        %3322 = vst [vmem:[#allocation3 + $0x1c8] sm:$0xff] %v3307
        %3323 = vst [vmem:[#allocation3 + $0x210] sm:$0xff] %v3315
        %v3324 = vld [vmem:[%s500 + $0x8] sm:$0xff]
        %v3325 = vld [vmem:[%s500 + $0x10] sm:$0xff]
        %v3326 = vld [vmem:[%s500 + $0x18] sm:$0xff]
        %v3327 = vld [vmem:[%s500 + $0x20] sm:$0xff]
        %3328 = vst [vmem:[#allocation3 + $0x140] sm:$0xff] %v3324
        %3329 = vst [vmem:[#allocation3 + $0x188] sm:$0xff] %v3325
        %3330 = vst [vmem:[#allocation3 + $0x1d0] sm:$0xff] %v3326
        %3331 = vst [vmem:[#allocation3 + $0x218] sm:$0xff] %v3327
        %v3332 = vld [vmem:[%s500 + $0x8] sm:$0xff]
        %v3333 = vld [vmem:[%s500 + $0x10] sm:$0xff]
        %v3334 = vld [vmem:[%s500 + $0x18] sm:$0xff]
        %v3335 = vld [vmem:[%s500 + $0x20] sm:$0xff]
        %v3336 = vld [vmem:[%s500 + $0x28] sm:$0x1]
        %v3337 = vsel %vm906, %v3332, 0
        %v3338 = vsel %vm907, %v3333, 0
        %v3339 = vsel %vm908, %v3334, 0
        %v3340 = vsel %vm909, %v3335, 0
        %v3341 = vsel %vm910, %v3336, 0
        %v3343 = vshrl.u32 %v3337, 16
        %v3345 = vshll.u32 %v3337, 16
        %v3347 = vrot.slane %v3345, 1
        %v3348 = vor.u32 %v3343, %v3347
        %v3350 = vshll.u32 %v3338, 16
        %v3352 = vrot.slane %v3350, 1
        %v3353 = vsel %vm815, %v3348, %v3352
        %v3354 = vshrl.u32 %v3338, 16
        %v3356 = vor.u32 %v3354, %v3352
        %v3358 = vshll.u32 %v3339, 16
        %v3360 = vrot.slane %v3358, 1
        %v3361 = vsel %vm815, %v3356, %v3360
        %v3362 = vshrl.u32 %v3339, 16
        %v3364 = vor.u32 %v3362, %v3360
        %v3366 = vshll.u32 %v3340, 16
        %v3368 = vrot.slane %v3366, 1
        %v3369 = vsel %vm815, %v3364, %v3368
        %v3370 = vshrl.u32 %v3340, 16
        %v3372 = vor.u32 %v3370, %v3368
        %v3374 = vshll.u32 %v3341, 16
        %v3376 = vrot.slane %v3374, 1
        %v3377 = vsel %vm815, %v3372, %v3376
        %3382 = vst [vmem:[#allocation3 + $0x148] sm:$0xff] %v3353
        %3383 = vst [vmem:[#allocation3 + $0x190] sm:$0xff] %v3361
        %3384 = vst [vmem:[#allocation3 + $0x1d8] sm:$0xff] %v3369
        %3385 = vst [vmem:[#allocation3 + $0x220] sm:$0xff] %v3377
        %v3386 = vld [vmem:[%s500 + $0x8] sm:$0xf8]
        %v3387 = vld [vmem:[%s500 + $0x10] sm:$0xff]
        %v3388 = vld [vmem:[%s500 + $0x18] sm:$0xff]
        %v3389 = vld [vmem:[%s500 + $0x20] sm:$0xff]
        %v3390 = vld [vmem:[%s500 + $0x28] sm:$0xf]
        %v3391 = vsel %vm589, %v3386, 0
        %v3392 = vsel %vm590, %v3387, 0
        %v3393 = vsel %vm591, %v3388, 0
        %v3394 = vsel %vm592, %v3389, 0
        %v3395 = vsel %vm593, %v3390, 0
        %v3397 = vshrl.u32 %v3391, 16
        %v3399 = vrot.slane %v3397, 3
        %v3400 = vshll.u32 %v3391, 16
        %v3402 = vrot.slane %v3400, 4
        %v3403 = vor.u32 %v3399, %v3402
        %v3405 = vshrl.u32 %v3392, 16
        %v3407 = vrot.slane %v3405, 3
        %v3408 = vshll.u32 %v3392, 16
        %v3410 = vrot.slane %v3408, 4
        %v3411 = vor.u32 %v3407, %v3410
        %v3412 = vsel %vm599, %v3403, %v3411
        %v3414 = vshrl.u32 %v3393, 16
        %v3416 = vrot.slane %v3414, 3
        %v3417 = vshll.u32 %v3393, 16
        %v3419 = vrot.slane %v3417, 4
        %v3420 = vor.u32 %v3416, %v3419
        %v3421 = vsel %vm599, %v3411, %v3420
        %v3423 = vshrl.u32 %v3394, 16
        %v3425 = vrot.slane %v3423, 3
        %v3426 = vshll.u32 %v3394, 16
        %v3428 = vrot.slane %v3426, 4
        %v3429 = vor.u32 %v3425, %v3428
        %v3430 = vsel %vm599, %v3420, %v3429
        %v3432 = vshrl.u32 %v3395, 16
        %v3434 = vrot.slane %v3432, 3
        %v3435 = vshll.u32 %v3395, 16
        %v3437 = vrot.slane %v3435, 4
        %v3438 = vor.u32 %v3434, %v3437
        %v3439 = vsel %vm599, %v3429, %v3438
        %3444 = vst [vmem:[#allocation3 + $0x150] sm:$0xff] %v3412
        %3445 = vst [vmem:[#allocation3 + $0x198] sm:$0xff] %v3421
        %3446 = vst [vmem:[#allocation3 + $0x1e0] sm:$0xff] %v3430
        %3447 = vst [vmem:[#allocation3 + $0x228] sm:$0xff] %v3439
        %v3448 = vld [vmem:[%s500 + $0x8] sm:$0xf0]
        %v3449 = vld [vmem:[%s500 + $0x10] sm:$0xff]
        %v3450 = vld [vmem:[%s500 + $0x18] sm:$0xff]
        %v3451 = vld [vmem:[%s500 + $0x20] sm:$0xff]
        %v3452 = vld [vmem:[%s500 + $0x28] sm:$0xf]
        %v3458 = vrot.slane %v3448, 4
        %v3459 = vrot.slane %v3449, 4
        %v3460 = vsel %vm662, %v3458, %v3459
        %v3461 = vrot.slane %v3450, 4
        %v3462 = vsel %vm662, %v3459, %v3461
        %v3463 = vrot.slane %v3451, 4
        %v3464 = vsel %vm662, %v3461, %v3463
        %v3465 = vrot.slane %v3452, 4
        %v3466 = vsel %vm662, %v3463, %v3465
        %3471 = vst [vmem:[#allocation3 + $0x158] sm:$0xff] %v3460
        %3472 = vst [vmem:[#allocation3 + $0x1a0] sm:$0xff] %v3462
        %3473 = vst [vmem:[#allocation3 + $0x1e8] sm:$0xff] %v3464
        %3474 = vst [vmem:[#allocation3 + $0x230] sm:$0xff] %v3466
        %v3475 = vld [vmem:[%s500 + $0x8] sm:$0xf0]
        %v3476 = vld [vmem:[%s500 + $0x10] sm:$0xff]
        %v3477 = vld [vmem:[%s500 + $0x18] sm:$0xff]
        %v3478 = vld [vmem:[%s500 + $0x20] sm:$0xff]
        %v3479 = vld [vmem:[%s500 + $0x28] sm:$0x1f]
        %v3480 = vsel %vm748, %v3475, 0
        %v3481 = vsel %vm749, %v3476, 0
        %v3482 = vsel %vm750, %v3477, 0
        %v3483 = vsel %vm751, %v3478, 0
        %v3484 = vsel %vm752, %v3479, 0
        %v3486 = vshrl.u32 %v3480, 16
        %v3488 = vrot.slane %v3486, 4
        %v3489 = vshll.u32 %v3480, 16
        %v3491 = vrot.slane %v3489, 5
        %v3492 = vor.u32 %v3488, %v3491
        %v3494 = vshrl.u32 %v3481, 16
        %v3496 = vrot.slane %v3494, 4
        %v3497 = vshll.u32 %v3481, 16
        %v3499 = vrot.slane %v3497, 5
        %v3500 = vor.u32 %v3496, %v3499
        %v3501 = vsel %vm553, %v3492, %v3500
        %v3503 = vshrl.u32 %v3482, 16
        %v3505 = vrot.slane %v3503, 4
        %v3506 = vshll.u32 %v3482, 16
        %v3508 = vrot.slane %v3506, 5
        %v3509 = vor.u32 %v3505, %v3508
        %v3510 = vsel %vm553, %v3500, %v3509
        %v3512 = vshrl.u32 %v3483, 16
        %v3514 = vrot.slane %v3512, 4
        %v3515 = vshll.u32 %v3483, 16
        %v3517 = vrot.slane %v3515, 5
        %v3518 = vor.u32 %v3514, %v3517
        %v3519 = vsel %vm553, %v3509, %v3518
        %v3521 = vshrl.u32 %v3484, 16
        %v3523 = vrot.slane %v3521, 4
        %v3524 = vshll.u32 %v3484, 16
        %v3526 = vrot.slane %v3524, 5
        %v3527 = vor.u32 %v3523, %v3526
        %v3528 = vsel %vm553, %v3518, %v3527
        %3533 = vst [vmem:[#allocation3 + $0x160] sm:$0xff] %v3501
        %3534 = vst [vmem:[#allocation3 + $0x1a8] sm:$0xff] %v3510
        %3535 = vst [vmem:[#allocation3 + $0x1f0] sm:$0xff] %v3519
        %3536 = vst [vmem:[#allocation3 + $0x238] sm:$0xff] %v3528
        %v3537 = vld [vmem:[#allocation3] sm:$0xff]
        %v3538 = vld [vmem:[#allocation3 + $0x8] sm:$0xff]
        %v3539 = vld [vmem:[#allocation3 + $0x10] sm:$0xff]
        %v3540 = vld [vmem:[#allocation3 + $0x18] sm:$0xff]
        %v3541 = vld [vmem:[#allocation3 + $0x20] sm:$0xff]
        %v3542 = vld [vmem:[#allocation3 + $0x28] sm:$0xff]
        %v3543 = vld [vmem:[#allocation3 + $0x30] sm:$0xff]
        %v3544 = vld [vmem:[#allocation3 + $0x38] sm:$0xff]
        %v3545 = vld [vmem:[#allocation3 + $0x40] sm:$0xff]
        %v3546 = vld [vmem:[#allocation3 + $0x48] sm:$0xff]
        %v3547 = vld [vmem:[#allocation3 + $0x50] sm:$0xff]
        %v3548 = vld [vmem:[#allocation3 + $0x58] sm:$0xff]
        %v3549 = vld [vmem:[#allocation3 + $0x60] sm:$0xff]
        %v3550 = vld [vmem:[#allocation3 + $0x68] sm:$0xff]
        %v3551 = vld [vmem:[#allocation3 + $0x70] sm:$0xff]
        %v3552 = vld [vmem:[#allocation3 + $0x78] sm:$0xff]
        %v3553 = vld [vmem:[#allocation3 + $0x80] sm:$0xff]
        %v3554 = vld [vmem:[#allocation3 + $0x88] sm:$0xff]
        %v3555 = vld [vmem:[#allocation3 + $0x90] sm:$0xff]
        %v3556 = vld [vmem:[#allocation3 + $0x98] sm:$0xff]
        %v3557 = vld [vmem:[#allocation3 + $0xa0] sm:$0xff]
        %v3558 = vld [vmem:[#allocation3 + $0xa8] sm:$0xff]
        %v3559 = vld [vmem:[#allocation3 + $0xb0] sm:$0xff]
        %v3560 = vld [vmem:[#allocation3 + $0xb8] sm:$0xff]
        %v3561 = vld [vmem:[#allocation3 + $0xc0] sm:$0xff]
        %v3562 = vld [vmem:[#allocation3 + $0xc8] sm:$0xff]
        %v3563 = vld [vmem:[#allocation3 + $0xd0] sm:$0xff]
        %v3564 = vld [vmem:[#allocation3 + $0xd8] sm:$0xff]
        %v3565 = vld [vmem:[#allocation3 + $0xe0] sm:$0xff]
        %v3566 = vld [vmem:[#allocation3 + $0xe8] sm:$0xff]
        %v3567 = vld [vmem:[#allocation3 + $0xf0] sm:$0xff]
        %v3568 = vld [vmem:[#allocation3 + $0xf8] sm:$0xff]
        %v3569 = vld [vmem:[#allocation3 + $0x100] sm:$0xff]
        %v3570 = vld [vmem:[#allocation3 + $0x108] sm:$0xff]
        %v3571 = vld [vmem:[#allocation3 + $0x110] sm:$0xff]
        %v3572 = vld [vmem:[#allocation3 + $0x118] sm:$0xff]
        %v3573 = vld [vmem:[#allocation3 + $0x120] sm:$0xff]
        %v3574 = vld [vmem:[#allocation3 + $0x128] sm:$0xff]
        %v3575 = vld [vmem:[#allocation3 + $0x130] sm:$0xff]
        %v3576 = vld [vmem:[#allocation3 + $0x138] sm:$0xff]
        %v3577 = vld [vmem:[#allocation3 + $0x140] sm:$0xff]
        %v3578 = vld [vmem:[#allocation3 + $0x148] sm:$0xff]
        %v3579 = vld [vmem:[#allocation3 + $0x150] sm:$0xff]
        %v3580 = vld [vmem:[#allocation3 + $0x158] sm:$0xff]
        %v3581 = vld [vmem:[#allocation3 + $0x160] sm:$0xff]
        %v3582 = vld [vmem:[#allocation3 + $0x168] sm:$0xff]
        %v3583 = vld [vmem:[#allocation3 + $0x170] sm:$0xff]
        %v3584 = vld [vmem:[#allocation3 + $0x178] sm:$0xff]
        %v3585 = vld [vmem:[#allocation3 + $0x180] sm:$0xff]
        %v3586 = vld [vmem:[#allocation3 + $0x188] sm:$0xff]
        %v3587 = vld [vmem:[#allocation3 + $0x190] sm:$0xff]
        %v3588 = vld [vmem:[#allocation3 + $0x198] sm:$0xff]
        %v3589 = vld [vmem:[#allocation3 + $0x1a0] sm:$0xff]
        %v3590 = vld [vmem:[#allocation3 + $0x1a8] sm:$0xff]
        %v3591 = vld [vmem:[#allocation3 + $0x1b0] sm:$0xff]
        %v3592 = vld [vmem:[#allocation3 + $0x1b8] sm:$0xff]
        %v3593 = vld [vmem:[#allocation3 + $0x1c0] sm:$0xff]
        %v3594 = vld [vmem:[#allocation3 + $0x1c8] sm:$0xff]
        %v3595 = vld [vmem:[#allocation3 + $0x1d0] sm:$0xff]
        %v3596 = vld [vmem:[#allocation3 + $0x1d8] sm:$0xff]
        %v3597 = vld [vmem:[#allocation3 + $0x1e0] sm:$0xff]
        %v3598 = vld [vmem:[#allocation3 + $0x1e8] sm:$0xff]
        %v3599 = vld [vmem:[#allocation3 + $0x1f0] sm:$0xff]
        %v3600 = vld [vmem:[#allocation3 + $0x1f8] sm:$0xff]
        %v3601 = vld [vmem:[#allocation3 + $0x200] sm:$0xff]
        %v3602 = vld [vmem:[#allocation3 + $0x208] sm:$0xff]
        %v3603 = vld [vmem:[#allocation3 + $0x210] sm:$0xff]
        %v3604 = vld [vmem:[#allocation3 + $0x218] sm:$0xff]
        %v3605 = vld [vmem:[#allocation3 + $0x220] sm:$0xff]
        %v3606 = vld [vmem:[#allocation3 + $0x228] sm:$0xff]
        %v3607 = vld [vmem:[#allocation3 + $0x230] sm:$0xff]
        %v3608 = vld [vmem:[#allocation3 + $0x238] sm:$0xff]
        %v3609 = vld [vmem:[#allocation9] sm:$0xf]
        %v3610 = vld [vmem:[#allocation9 + $0x4] sm:$0xf]
        %v3611 = vld [vmem:[#allocation9 + $0x8] sm:$0xf]
        %v3612 = vld [vmem:[#allocation9 + $0xc] sm:$0xf]
        %v3613 = vld [vmem:[#allocation9 + $0x10] sm:$0xf]
        %v3614 = vld [vmem:[#allocation9 + $0x14] sm:$0xf]
        %v3615 = vld [vmem:[#allocation9 + $0x18] sm:$0xf]
        %v3616 = vld [vmem:[#allocation9 + $0x1c] sm:$0xf]
        %v3617 = vld [vmem:[#allocation9 + $0x20] sm:$0xf]
        %v3618 = vld [vmem:[#allocation9 + $0x24] sm:$0xf]
        %v3619 = vld [vmem:[#allocation9 + $0x28] sm:$0xf]
        %v3620 = vld [vmem:[#allocation9 + $0x2c] sm:$0xf]
        %v3621 = vld [vmem:[#allocation9 + $0x30] sm:$0xf]
        %v3622 = vld [vmem:[#allocation9 + $0x34] sm:$0xf]
        %v3623 = vld [vmem:[#allocation9 + $0x38] sm:$0xf]
        %v3624 = vld [vmem:[#allocation9 + $0x3c] sm:$0xf]
        %v3625 = vld [vmem:[#allocation9 + $0x40] sm:$0xf]
        %v3626 = vld [vmem:[#allocation9 + $0x44] sm:$0xf]
        %v3627 = vld [vmem:[#allocation9 + $0x48] sm:$0xf]
        %v3628 = vld [vmem:[#allocation9 + $0x4c] sm:$0xf]
        %v3629 = vld [vmem:[#allocation9 + $0x50] sm:$0xf]
        %v3630 = vld [vmem:[#allocation9 + $0x54] sm:$0xf]
        %v3631 = vld [vmem:[#allocation9 + $0x58] sm:$0xf]
        %v3632 = vld [vmem:[#allocation9 + $0x5c] sm:$0xf]
        %v3633 = vld [vmem:[#allocation9 + $0x60] sm:$0xf]
        %v3634 = vld [vmem:[#allocation9 + $0x64] sm:$0xf]
        %v3635 = vld [vmem:[#allocation9 + $0x68] sm:$0xf]
        %v3636 = vld [vmem:[#allocation9 + $0x6c] sm:$0xf]
        %v3637 = vld [vmem:[#allocation9 + $0x70] sm:$0xf]
        %v3638 = vld [vmem:[#allocation9 + $0x74] sm:$0xf]
        %v3639 = vld [vmem:[#allocation9 + $0x78] sm:$0xf]
        %v3640 = vld [vmem:[#allocation9 + $0x7c] sm:$0xf]
        %v3641 = vld [vmem:[#allocation9 + $0x80] sm:$0xf]
        %v3642 = vld [vmem:[#allocation9 + $0x84] sm:$0xf]
        %v3643 = vld [vmem:[#allocation9 + $0x88] sm:$0xf]
        %v3644 = vld [vmem:[#allocation9 + $0x8c] sm:$0xf]
        %v3645 = vld [vmem:[#allocation9 + $0x90] sm:$0xf]
        %v3646 = vld [vmem:[#allocation9 + $0x94] sm:$0xf]
        %v3647 = vld [vmem:[#allocation9 + $0x98] sm:$0xf]
        %v3648 = vld [vmem:[#allocation9 + $0x9c] sm:$0xf]
        %v3649 = vld [vmem:[#allocation9 + $0xa0] sm:$0xf]
        %v3650 = vld [vmem:[#allocation9 + $0xa4] sm:$0xf]
        %v3651 = vld [vmem:[#allocation9 + $0xa8] sm:$0xf]
        %v3652 = vld [vmem:[#allocation9 + $0xac] sm:$0xf]
        %v3653 = vld [vmem:[#allocation9 + $0xb0] sm:$0xf]
        %v3654 = vld [vmem:[#allocation9 + $0xb4] sm:$0xf]
        %v3655 = vld [vmem:[#allocation9 + $0xb8] sm:$0xf]
        %v3656 = vld [vmem:[#allocation9 + $0xbc] sm:$0xf]
        %v3657 = vld [vmem:[#allocation9 + $0xc0] sm:$0xf]
        %v3658 = vld [vmem:[#allocation9 + $0xc4] sm:$0xf]
        %v3659 = vld [vmem:[#allocation9 + $0xc8] sm:$0xf]
        %v3660 = vld [vmem:[#allocation9 + $0xcc] sm:$0xf]
        %v3661 = vld [vmem:[#allocation9 + $0xd0] sm:$0xf]
        %v3662 = vld [vmem:[#allocation9 + $0xd4] sm:$0xf]
        %v3663 = vld [vmem:[#allocation9 + $0xd8] sm:$0xf]
        %v3664 = vld [vmem:[#allocation9 + $0xdc] sm:$0xf]
        %v3665 = vld [vmem:[#allocation9 + $0xe0] sm:$0xf]
        %v3666 = vld [vmem:[#allocation9 + $0xe4] sm:$0xf]
        %v3667 = vld [vmem:[#allocation9 + $0xe8] sm:$0xf]
        %v3668 = vld [vmem:[#allocation9 + $0xec] sm:$0xf]
        %v3669 = vld [vmem:[#allocation9 + $0xf0] sm:$0xf]
        %v3670 = vld [vmem:[#allocation9 + $0xf4] sm:$0xf]
        %v3671 = vld [vmem:[#allocation9 + $0xf8] sm:$0xf]
        %v3672 = vld [vmem:[#allocation9 + $0xfc] sm:$0xf]
        %v3673 = vld [vmem:[#allocation9 + $0x100] sm:$0xf]
        %v3674 = vld [vmem:[#allocation9 + $0x104] sm:$0xf]
        %v3675 = vld [vmem:[#allocation9 + $0x108] sm:$0xf]
        %v3676 = vld [vmem:[#allocation9 + $0x10c] sm:$0xf]
        %v3677 = vld [vmem:[#allocation9 + $0x110] sm:$0xf]
        %v3678 = vld [vmem:[#allocation9 + $0x114] sm:$0xf]
        %v3679 = vld [vmem:[#allocation9 + $0x118] sm:$0xf]
        %v3680 = vld [vmem:[#allocation9 + $0x11c] sm:$0xf]
        %v3681 = vld [vmem:[#allocation9 + $0x120] sm:$0xf]
        %v3682 = vld [vmem:[#allocation9 + $0x124] sm:$0xf]
        %v3683 = vld [vmem:[#allocation9 + $0x128] sm:$0xf]
        %v3684 = vld [vmem:[#allocation9 + $0x12c] sm:$0xf]
        %v3685 = vld [vmem:[#allocation9 + $0x130] sm:$0xf]
        %v3686 = vld [vmem:[#allocation9 + $0x134] sm:$0xf]
        %v3687 = vld [vmem:[#allocation9 + $0x138] sm:$0xf]
        %v3688 = vld [vmem:[#allocation9 + $0x13c] sm:$0xf]
        %v3689 = vld [vmem:[#allocation9 + $0x140] sm:$0xf]
        %v3690 = vld [vmem:[#allocation9 + $0x144] sm:$0xf]
        %v3691 = vld [vmem:[#allocation9 + $0x148] sm:$0xf]
        %v3692 = vld [vmem:[#allocation9 + $0x14c] sm:$0xf]
        %v3693 = vld [vmem:[#allocation9 + $0x150] sm:$0xf]
        %v3694 = vld [vmem:[#allocation9 + $0x154] sm:$0xf]
        %v3695 = vld [vmem:[#allocation9 + $0x158] sm:$0xf]
        %v3696 = vld [vmem:[#allocation9 + $0x15c] sm:$0xf]
        %v3697 = vld [vmem:[#allocation9 + $0x160] sm:$0xf]
        %v3698 = vld [vmem:[#allocation9 + $0x164] sm:$0xf]
        %v3699 = vld [vmem:[#allocation9 + $0x168] sm:$0xf]
        %v3700 = vld [vmem:[#allocation9 + $0x16c] sm:$0xf]
        %v3701 = vld [vmem:[#allocation9 + $0x170] sm:$0xf]
        %v3702 = vld [vmem:[#allocation9 + $0x174] sm:$0xf]
        %v3703 = vld [vmem:[#allocation9 + $0x178] sm:$0xf]
        %v3704 = vld [vmem:[#allocation9 + $0x17c] sm:$0xf]
        %v3705 = vld [vmem:[#allocation9 + $0x180] sm:$0xf]
        %v3706 = vld [vmem:[#allocation9 + $0x184] sm:$0xf]
        %v3707 = vld [vmem:[#allocation9 + $0x188] sm:$0xf]
        %v3708 = vld [vmem:[#allocation9 + $0x18c] sm:$0xf]
        %v3709 = vld [vmem:[#allocation9 + $0x190] sm:$0xf]
        %v3710 = vld [vmem:[#allocation9 + $0x194] sm:$0xf]
        %v3711 = vld [vmem:[#allocation9 + $0x198] sm:$0xf]
        %v3712 = vld [vmem:[#allocation9 + $0x19c] sm:$0xf]
        %v3713 = vld [vmem:[#allocation9 + $0x1a0] sm:$0xf]
        %v3714 = vld [vmem:[#allocation9 + $0x1a4] sm:$0xf]
        %v3715 = vld [vmem:[#allocation9 + $0x1a8] sm:$0xf]
        %v3716 = vld [vmem:[#allocation9 + $0x1ac] sm:$0xf]
        %v3717 = vld [vmem:[#allocation9 + $0x1b0] sm:$0xf]
        %v3718 = vld [vmem:[#allocation9 + $0x1b4] sm:$0xf]
        %v3719 = vld [vmem:[#allocation9 + $0x1b8] sm:$0xf]
        %v3720 = vld [vmem:[#allocation9 + $0x1bc] sm:$0xf]
        %v3721 = vld [vmem:[#allocation9 + $0x1c0] sm:$0xf]
        %v3722 = vld [vmem:[#allocation9 + $0x1c4] sm:$0xf]
        %v3723 = vld [vmem:[#allocation9 + $0x1c8] sm:$0xf]
        %v3724 = vld [vmem:[#allocation9 + $0x1cc] sm:$0xf]
        %v3725 = vld [vmem:[#allocation9 + $0x1d0] sm:$0xf]
        %v3726 = vld [vmem:[#allocation9 + $0x1d4] sm:$0xf]
        %v3727 = vld [vmem:[#allocation9 + $0x1d8] sm:$0xf]
        %v3728 = vld [vmem:[#allocation9 + $0x1dc] sm:$0xf]
        %v3729 = vld [vmem:[#allocation9 + $0x1e0] sm:$0xf]
        %v3730 = vld [vmem:[#allocation9 + $0x1e4] sm:$0xf]
        %v3731 = vld [vmem:[#allocation9 + $0x1e8] sm:$0xf]
        %v3732 = vld [vmem:[#allocation9 + $0x1ec] sm:$0xf]
        %v3733 = vld [vmem:[#allocation9 + $0x1f0] sm:$0xf]
        %v3734 = vld [vmem:[#allocation9 + $0x1f4] sm:$0xf]
        %v3735 = vld [vmem:[#allocation9 + $0x1f8] sm:$0xf]
        %v3736 = vld [vmem:[#allocation9 + $0x1fc] sm:$0xf]
        %v3737 = vld [vmem:[#allocation9 + $0x200] sm:$0xf]
        %v3738 = vld [vmem:[#allocation9 + $0x204] sm:$0xf]
        %v3739 = vld [vmem:[#allocation9 + $0x208] sm:$0xf]
        %v3740 = vld [vmem:[#allocation9 + $0x20c] sm:$0xf]
        %v3741 = vld [vmem:[#allocation9 + $0x210] sm:$0xf]
        %v3742 = vld [vmem:[#allocation9 + $0x214] sm:$0xf]
        %v3743 = vld [vmem:[#allocation9 + $0x218] sm:$0xf]
        %v3744 = vld [vmem:[#allocation9 + $0x21c] sm:$0xf]
        %v3745 = vld [vmem:[#allocation9 + $0x220] sm:$0xf]
        %v3746 = vld [vmem:[#allocation9 + $0x224] sm:$0xf]
        %v3747 = vld [vmem:[#allocation9 + $0x228] sm:$0xf]
        %v3748 = vld [vmem:[#allocation9 + $0x22c] sm:$0xf]
        %v3749 = vld [vmem:[#allocation9 + $0x230] sm:$0xf]
        %v3750 = vld [vmem:[#allocation9 + $0x234] sm:$0xf]
        %v3751 = vld [vmem:[#allocation9 + $0x238] sm:$0xf]
        %v3752 = vld [vmem:[#allocation9 + $0x23c] sm:$0xf]
        %v3753 = vld [vmem:[%s4] sm:$0x1]
        %v3755 = vlaneseq
        %v3756 = vshrl.u32 %v3755, 7
        %v3757 = vsub.s32 0, %v3756
        %v3758 = vrot.slane %v3753, %v3757
        %v3904 = vunpack.c.l.b16 %v3609
        %v3905 = vunpack.c.l.b16 %v3610
        %v3906 = vunpack.c.l.b16 %v3611
        %v3907 = vunpack.c.l.b16 %v3612
        %v3908 = vunpack.c.l.b16 %v3613
        %v3909 = vunpack.c.l.b16 %v3614
        %v3910 = vunpack.c.l.b16 %v3615
        %v3911 = vunpack.c.l.b16 %v3616
        %v3912 = vunpack.c.l.b16 %v3617
        %v3913 = vunpack.c.l.b16 %v3618
        %v3914 = vunpack.c.l.b16 %v3619
        %v3915 = vunpack.c.l.b16 %v3620
        %v3916 = vunpack.c.l.b16 %v3621
        %v3917 = vunpack.c.l.b16 %v3622
        %v3918 = vunpack.c.l.b16 %v3623
        %v3919 = vunpack.c.l.b16 %v3624
        %v3920 = vunpack.c.l.b16 %v3625
        %v3921 = vunpack.c.l.b16 %v3626
        %v3922 = vunpack.c.l.b16 %v3627
        %v3923 = vunpack.c.l.b16 %v3628
        %v3924 = vunpack.c.l.b16 %v3629
        %v3925 = vunpack.c.l.b16 %v3630
        %v3926 = vunpack.c.l.b16 %v3631
        %v3927 = vunpack.c.l.b16 %v3632
        %v3928 = vunpack.c.l.b16 %v3633
        %v3929 = vunpack.c.l.b16 %v3634
        %v3930 = vunpack.c.l.b16 %v3635
        %v3931 = vunpack.c.l.b16 %v3636
        %v3932 = vunpack.c.l.b16 %v3637
        %v3933 = vunpack.c.l.b16 %v3638
        %v3934 = vunpack.c.l.b16 %v3639
        %v3935 = vunpack.c.l.b16 %v3640
        %v3936 = vunpack.c.l.b16 %v3641
        %v3937 = vunpack.c.l.b16 %v3642
        %v3938 = vunpack.c.l.b16 %v3643
        %v3939 = vunpack.c.l.b16 %v3644
        %v3940 = vunpack.c.l.b16 %v3645
        %v3941 = vunpack.c.l.b16 %v3646
        %v3942 = vunpack.c.l.b16 %v3647
        %v3943 = vunpack.c.l.b16 %v3648
        %v3944 = vunpack.c.l.b16 %v3649
        %v3945 = vunpack.c.l.b16 %v3650
        %v3946 = vunpack.c.l.b16 %v3651
        %v3947 = vunpack.c.l.b16 %v3652
        %v3948 = vunpack.c.l.b16 %v3653
        %v3949 = vunpack.c.l.b16 %v3654
        %v3950 = vunpack.c.l.b16 %v3655
        %v3951 = vunpack.c.l.b16 %v3656
        %v3952 = vunpack.c.l.b16 %v3657
        %v3953 = vunpack.c.l.b16 %v3658
        %v3954 = vunpack.c.l.b16 %v3659
        %v3955 = vunpack.c.l.b16 %v3660
        %v3956 = vunpack.c.l.b16 %v3661
        %v3957 = vunpack.c.l.b16 %v3662
        %v3958 = vunpack.c.l.b16 %v3663
        %v3959 = vunpack.c.l.b16 %v3664
        %v3960 = vunpack.c.l.b16 %v3665
        %v3961 = vunpack.c.l.b16 %v3666
        %v3962 = vunpack.c.l.b16 %v3667
        %v3963 = vunpack.c.l.b16 %v3668
        %v3964 = vunpack.c.l.b16 %v3669
        %v3965 = vunpack.c.l.b16 %v3670
        %v3966 = vunpack.c.l.b16 %v3671
        %v3967 = vunpack.c.l.b16 %v3672
        %v3968 = vunpack.c.l.b16 %v3673
        %v3969 = vunpack.c.l.b16 %v3674
        %v3970 = vunpack.c.l.b16 %v3675
        %v3971 = vunpack.c.l.b16 %v3676
        %v3972 = vunpack.c.l.b16 %v3677
        %v3973 = vunpack.c.l.b16 %v3678
        %v3974 = vunpack.c.l.b16 %v3679
        %v3975 = vunpack.c.l.b16 %v3680
        %v3976 = vunpack.c.l.b16 %v3681
        %v3977 = vunpack.c.l.b16 %v3682
        %v3978 = vunpack.c.l.b16 %v3683
        %v3979 = vunpack.c.l.b16 %v3684
        %v3980 = vunpack.c.l.b16 %v3685
        %v3981 = vunpack.c.l.b16 %v3686
        %v3982 = vunpack.c.l.b16 %v3687
        %v3983 = vunpack.c.l.b16 %v3688
        %v3984 = vunpack.c.l.b16 %v3689
        %v3985 = vunpack.c.l.b16 %v3690
        %v3986 = vunpack.c.l.b16 %v3691
        %v3987 = vunpack.c.l.b16 %v3692
        %v3988 = vunpack.c.l.b16 %v3693
        %v3989 = vunpack.c.l.b16 %v3694
        %v3990 = vunpack.c.l.b16 %v3695
        %v3991 = vunpack.c.l.b16 %v3696
        %v3992 = vunpack.c.l.b16 %v3697
        %v3993 = vunpack.c.l.b16 %v3698
        %v3994 = vunpack.c.l.b16 %v3699
        %v3995 = vunpack.c.l.b16 %v3700
        %v3996 = vunpack.c.l.b16 %v3701
        %v3997 = vunpack.c.l.b16 %v3702
        %v3998 = vunpack.c.l.b16 %v3703
        %v3999 = vunpack.c.l.b16 %v3704
        %v4000 = vunpack.c.l.b16 %v3705
        %v4001 = vunpack.c.l.b16 %v3706
        %v4002 = vunpack.c.l.b16 %v3707
        %v4003 = vunpack.c.l.b16 %v3708
        %v4004 = vunpack.c.l.b16 %v3709
        %v4005 = vunpack.c.l.b16 %v3710
        %v4006 = vunpack.c.l.b16 %v3711
        %v4007 = vunpack.c.l.b16 %v3712
        %v4008 = vunpack.c.l.b16 %v3713
        %v4009 = vunpack.c.l.b16 %v3714
        %v4010 = vunpack.c.l.b16 %v3715
        %v4011 = vunpack.c.l.b16 %v3716
        %v4012 = vunpack.c.l.b16 %v3717
        %v4013 = vunpack.c.l.b16 %v3718
        %v4014 = vunpack.c.l.b16 %v3719
        %v4015 = vunpack.c.l.b16 %v3720
        %v4016 = vunpack.c.l.b16 %v3721
        %v4017 = vunpack.c.l.b16 %v3722
        %v4018 = vunpack.c.l.b16 %v3723
        %v4019 = vunpack.c.l.b16 %v3724
        %v4020 = vunpack.c.l.b16 %v3725
        %v4021 = vunpack.c.l.b16 %v3726
        %v4022 = vunpack.c.l.b16 %v3727
        %v4023 = vunpack.c.l.b16 %v3728
        %v4024 = vunpack.c.l.b16 %v3729
        %v4025 = vunpack.c.l.b16 %v3730
        %v4026 = vunpack.c.l.b16 %v3731
        %v4027 = vunpack.c.l.b16 %v3732
        %v4028 = vunpack.c.l.b16 %v3733
        %v4029 = vunpack.c.l.b16 %v3734
        %v4030 = vunpack.c.l.b16 %v3735
        %v4031 = vunpack.c.l.b16 %v3736
        %v4032 = vunpack.c.l.b16 %v3737
        %v4033 = vunpack.c.l.b16 %v3738
        %v4034 = vunpack.c.l.b16 %v3739
        %v4035 = vunpack.c.l.b16 %v3740
        %v4036 = vunpack.c.l.b16 %v3741
        %v4037 = vunpack.c.l.b16 %v3742
        %v4038 = vunpack.c.l.b16 %v3743
        %v4039 = vunpack.c.l.b16 %v3744
        %v4040 = vunpack.c.l.b16 %v3745
        %v4041 = vunpack.c.l.b16 %v3746
        %v4042 = vunpack.c.l.b16 %v3747
        %v4043 = vunpack.c.l.b16 %v3748
        %v4044 = vunpack.c.l.b16 %v3749
        %v4045 = vunpack.c.l.b16 %v3750
        %v4046 = vunpack.c.l.b16 %v3751
        %v4047 = vunpack.c.l.b16 %v3752
        %v4048 = vpack.c.b16 %v3905, %v3904
        %v4049 = vpack.c.b16 %v3907, %v3906
        %v4050 = vpack.c.b16 %v3909, %v3908
        %v4051 = vpack.c.b16 %v3911, %v3910
        %v4052 = vpack.c.b16 %v3913, %v3912
        %v4053 = vpack.c.b16 %v3915, %v3914
        %v4054 = vpack.c.b16 %v3917, %v3916
        %v4055 = vpack.c.b16 %v3919, %v3918
        %v4056 = vpack.c.b16 %v3921, %v3920
        %v4057 = vpack.c.b16 %v3923, %v3922
        %v4058 = vpack.c.b16 %v3925, %v3924
        %v4059 = vpack.c.b16 %v3927, %v3926
        %v4060 = vpack.c.b16 %v3929, %v3928
        %v4061 = vpack.c.b16 %v3931, %v3930
        %v4062 = vpack.c.b16 %v3933, %v3932
        %v4063 = vpack.c.b16 %v3935, %v3934
        %v4064 = vpack.c.b16 %v3937, %v3936
        %v4065 = vpack.c.b16 %v3939, %v3938
        %v4066 = vpack.c.b16 %v3941, %v3940
        %v4067 = vpack.c.b16 %v3943, %v3942
        %v4068 = vpack.c.b16 %v3945, %v3944
        %v4069 = vpack.c.b16 %v3947, %v3946
        %v4070 = vpack.c.b16 %v3949, %v3948
        %v4071 = vpack.c.b16 %v3951, %v3950
        %v4072 = vpack.c.b16 %v3953, %v3952
        %v4073 = vpack.c.b16 %v3955, %v3954
        %v4074 = vpack.c.b16 %v3957, %v3956
        %v4075 = vpack.c.b16 %v3959, %v3958
        %v4076 = vpack.c.b16 %v3961, %v3960
        %v4077 = vpack.c.b16 %v3963, %v3962
        %v4078 = vpack.c.b16 %v3965, %v3964
        %v4079 = vpack.c.b16 %v3967, %v3966
        %v4080 = vpack.c.b16 %v3969, %v3968
        %v4081 = vpack.c.b16 %v3971, %v3970
        %v4082 = vpack.c.b16 %v3973, %v3972
        %v4083 = vpack.c.b16 %v3975, %v3974
        %v4084 = vpack.c.b16 %v3977, %v3976
        %v4085 = vpack.c.b16 %v3979, %v3978
        %v4086 = vpack.c.b16 %v3981, %v3980
        %v4087 = vpack.c.b16 %v3983, %v3982
        %v4088 = vpack.c.b16 %v3985, %v3984
        %v4089 = vpack.c.b16 %v3987, %v3986
        %v4090 = vpack.c.b16 %v3989, %v3988
        %v4091 = vpack.c.b16 %v3991, %v3990
        %v4092 = vpack.c.b16 %v3993, %v3992
        %v4093 = vpack.c.b16 %v3995, %v3994
        %v4094 = vpack.c.b16 %v3997, %v3996
        %v4095 = vpack.c.b16 %v3999, %v3998
        %v4096 = vpack.c.b16 %v4001, %v4000
        %v4097 = vpack.c.b16 %v4003, %v4002
        %v4098 = vpack.c.b16 %v4005, %v4004
        %v4099 = vpack.c.b16 %v4007, %v4006
        %v4100 = vpack.c.b16 %v4009, %v4008
        %v4101 = vpack.c.b16 %v4011, %v4010
        %v4102 = vpack.c.b16 %v4013, %v4012
        %v4103 = vpack.c.b16 %v4015, %v4014
        %v4104 = vpack.c.b16 %v4017, %v4016
        %v4105 = vpack.c.b16 %v4019, %v4018
        %v4106 = vpack.c.b16 %v4021, %v4020
        %v4107 = vpack.c.b16 %v4023, %v4022
        %v4108 = vpack.c.b16 %v4025, %v4024
        %v4109 = vpack.c.b16 %v4027, %v4026
        %v4110 = vpack.c.b16 %v4029, %v4028
        %v4111 = vpack.c.b16 %v4031, %v4030
        %v4112 = vpack.c.b16 %v4033, %v4032
        %v4113 = vpack.c.b16 %v4035, %v4034
        %v4114 = vpack.c.b16 %v4037, %v4036
        %v4115 = vpack.c.b16 %v4039, %v4038
        %v4116 = vpack.c.b16 %v4041, %v4040
        %v4117 = vpack.c.b16 %v4043, %v4042
        %v4118 = vpack.c.b16 %v4045, %v4044
        %v4119 = vpack.c.b16 %v4047, %v4046
        %4192 = vmatprep.subr.bf16.mxu0 0
        %4193 = vmatpush1.bf16.msra.mxu0 %v4048
        %4194 = vmatprep.subr.bf16.mxu0 0
        %4195 = vmatpush1.bf16.msra.mxu0 %v4049
        %4196 = vmatprep.subr.bf16.mxu0 0
        %4197 = vmatpush1.bf16.msra.mxu0 %v4050
        %4198 = vmatprep.subr.bf16.mxu0 0
        %4199 = vmatpush1.bf16.msra.mxu0 %v4051
        %4200 = vmatprep.subr.bf16.mxu0 0
        %4201 = vmatpush1.bf16.msra.mxu0 %v4052
        %4202 = vmatprep.subr.bf16.mxu0 0
        %4203 = vmatpush1.bf16.msra.mxu0 %v4053
        %4204 = vmatprep.subr.bf16.mxu0 0
        %4205 = vmatpush1.bf16.msra.mxu0 %v4054
        %4206 = vmatprep.subr.bf16.mxu0 0
        %4207 = vmatpush1.bf16.msra.mxu0 %v4055
        %4208 = vmatprep.subr.bf16.mxu0 0
        %4209 = vmatpush1.bf16.msra.mxu0 %v4056
        %4210 = vmatprep.subr.bf16.mxu0 0
        %4211 = vmatpush1.bf16.msra.mxu0 %v4057
        %4212 = vmatprep.subr.bf16.mxu0 0
        %4213 = vmatpush1.bf16.msra.mxu0 %v4058
        %4214 = vmatprep.subr.bf16.mxu0 0
        %4215 = vmatpush1.bf16.msra.mxu0 %v4059
        %4216 = vmatprep.subr.bf16.mxu0 0
        %4217 = vmatpush1.bf16.msra.mxu0 %v4060
        %4218 = vmatprep.subr.bf16.mxu0 0
        %4219 = vmatpush1.bf16.msra.mxu0 %v4061
        %4220 = vmatprep.subr.bf16.mxu0 0
        %4221 = vmatpush1.bf16.msra.mxu0 %v4062
        %4222 = vmatprep.subr.bf16.mxu0 0
        %4223 = vmatpush1.bf16.msra.mxu0 %v4063
        %4224 = vmatprep.mubr.bf16.mxu0 %v3538
        %4225 = vmatmul.mubr.bf16.gmra.mrb[0].mxu0 %v3537
        %v4226 = vpop.f32.mrb[0].mxu0
        %v4227 = vadd.f32 %v3758, %v4226
        %v4228 = vpop.f32.mrb[0].mxu0
        %v4229 = vpop.f32.mrb[0].mxu0
        %v4230 = vadd.f32 %v3758, %v4229
        %v4231 = vpop.f32.mrb[0].mxu0
        %4232 = vmatprep.mubr.bf16.mxu0 %v3547
        %4233 = vmatmul.mubr.bf16.gmra.mrb[0].mxu0 %v3546
        %v4234 = vpop.f32.mrb[0].mxu0
        %v4235 = vadd.f32 %v3758, %v4234
        %v4236 = vpop.f32.mrb[0].mxu0
        %v4237 = vpop.f32.mrb[0].mxu0
        %v4238 = vadd.f32 %v3758, %v4237
        %v4239 = vpop.f32.mrb[0].mxu0
        %4240 = vmatprep.mubr.bf16.mxu0 %v3556
        %4241 = vmatmul.mubr.bf16.gmra.mrb[0].mxu0 %v3555
        %v4242 = vpop.f32.mrb[0].mxu0
        %v4243 = vadd.f32 %v3758, %v4242
        %v4244 = vpop.f32.mrb[0].mxu0
        %v4245 = vpop.f32.mrb[0].mxu0
        %v4246 = vadd.f32 %v3758, %v4245
        %v4247 = vpop.f32.mrb[0].mxu0
        %4248 = vmatprep.mubr.bf16.mxu0 %v3565
        %4249 = vmatmul.mubr.bf16.gmra.mrb[0].mxu0 %v3564
        %v4250 = vpop.f32.mrb[0].mxu0
        %v4251 = vadd.f32 %v3758, %v4250
        %v4252 = vpop.f32.mrb[0].mxu0
        %v4253 = vpop.f32.mrb[0].mxu0
        %v4254 = vadd.f32 %v3758, %v4253
        %v4255 = vpop.f32.mrb[0].mxu0
        %4256 = vmatprep.mubr.bf16.mxu0 %v3574
        %4257 = vmatmul.mubr.bf16.gmra.mrb[0].mxu0 %v3573
        %v4258 = vpop.f32.mrb[0].mxu0
        %v4259 = vadd.f32 %v3758, %v4258
        %v4260 = vpop.f32.mrb[0].mxu0
        %v4261 = vpop.f32.mrb[0].mxu0
        %v4262 = vadd.f32 %v3758, %v4261
        %v4263 = vpop.f32.mrb[0].mxu0
        %4264 = vmatprep.mubr.bf16.mxu0 %v3583
        %4265 = vmatmul.mubr.bf16.gmra.mrb[0].mxu0 %v3582
        %v4266 = vpop.f32.mrb[0].mxu0
        %v4267 = vadd.f32 %v3758, %v4266
        %v4268 = vpop.f32.mrb[0].mxu0
        %v4269 = vpop.f32.mrb[0].mxu0
        %v4270 = vadd.f32 %v3758, %v4269
        %v4271 = vpop.f32.mrb[0].mxu0
        %4272 = vmatprep.mubr.bf16.mxu0 %v3592
        %4273 = vmatmul.mubr.bf16.gmra.mrb[0].mxu0 %v3591
        %v4274 = vpop.f32.mrb[0].mxu0
        %v4275 = vadd.f32 %v3758, %v4274
        %v4276 = vpop.f32.mrb[0].mxu0
        %v4277 = vpop.f32.mrb[0].mxu0
        %v4278 = vadd.f32 %v3758, %v4277
        %v4279 = vpop.f32.mrb[0].mxu0
        %4280 = vmatprep.mubr.bf16.mxu0 %v3601
        %4281 = vmatmul.mubr.bf16.gmra.mrb[0].mxu0 %v3600
        %v4282 = vpop.f32.mrb[0].mxu0
        %v4283 = vadd.f32 %v3758, %v4282
        %v4284 = vpop.f32.mrb[0].mxu0
        %v4285 = vpop.f32.mrb[0].mxu0
        %v4286 = vadd.f32 %v3758, %v4285
        %v4287 = vpop.f32.mrb[0].mxu0
        %4288 = vdwg.mxu0
        %4289 = vmatprep.subr.bf16.mxu0 0
        %4290 = vmatpush1.bf16.msra.mxu0 %v4064
        %4291 = vmatprep.subr.bf16.mxu0 0
        %4292 = vmatpush1.bf16.msra.mxu0 %v4065
        %4293 = vmatprep.subr.bf16.mxu0 0
        %4294 = vmatpush1.bf16.msra.mxu0 %v4066
        %4295 = vmatprep.subr.bf16.mxu0 0
        %4296 = vmatpush1.bf16.msra.mxu0 %v4067
        %4297 = vmatprep.subr.bf16.mxu0 0
        %4298 = vmatpush1.bf16.msra.mxu0 %v4068
        %4299 = vmatprep.subr.bf16.mxu0 0
        %4300 = vmatpush1.bf16.msra.mxu0 %v4069
        %4301 = vmatprep.subr.bf16.mxu0 0
        %4302 = vmatpush1.bf16.msra.mxu0 %v4070
        %4303 = vmatprep.subr.bf16.mxu0 0
        %4304 = vmatpush1.bf16.msra.mxu0 %v4071
        %4305 = vmatprep.subr.bf16.mxu0 0
        %4306 = vmatpush1.bf16.msra.mxu0 %v4072
        %4307 = vmatprep.subr.bf16.mxu0 0
        %4308 = vmatpush1.bf16.msra.mxu0 %v4073
        %4309 = vmatprep.subr.bf16.mxu0 0
        %4310 = vmatpush1.bf16.msra.mxu0 %v4074
        %4311 = vmatprep.subr.bf16.mxu0 0
        %4312 = vmatpush1.bf16.msra.mxu0 %v4075
        %4313 = vmatprep.subr.bf16.mxu0 0
        %4314 = vmatpush1.bf16.msra.mxu0 %v4076
        %4315 = vmatprep.subr.bf16.mxu0 0
        %4316 = vmatpush1.bf16.msra.mxu0 %v4077
        %4317 = vmatprep.subr.bf16.mxu0 0
        %4318 = vmatpush1.bf16.msra.mxu0 %v4078
        %4319 = vmatprep.subr.bf16.mxu0 0
        %4320 = vmatpush1.bf16.msra.mxu0 %v4079
        %4321 = vmatprep.mubr.bf16.mxu0 %v3540
        %4322 = vmatmul.mubr.bf16.gmra.mrb[0].mxu0 %v3539
        %v4323 = vpop.f32.mrb[0].mxu0
        %v4324 = vadd.f32 %v4227, %v4323
        %v4325 = vpop.f32.mrb[0].mxu0
        %v4326 = vpop.f32.mrb[0].mxu0
        %v4327 = vadd.f32 %v4230, %v4326
        %v4328 = vpop.f32.mrb[0].mxu0
        %4329 = vmatprep.mubr.bf16.mxu0 %v3549
        %4330 = vmatmul.mubr.bf16.gmra.mrb[0].mxu0 %v3548
        %v4331 = vpop.f32.mrb[0].mxu0
        %v4332 = vadd.f32 %v4235, %v4331
        %v4333 = vpop.f32.mrb[0].mxu0
        %v4334 = vpop.f32.mrb[0].mxu0
        %v4335 = vadd.f32 %v4238, %v4334
        %v4336 = vpop.f32.mrb[0].mxu0
        %4337 = vmatprep.mubr.bf16.mxu0 %v3558
        %4338 = vmatmul.mubr.bf16.gmra.mrb[0].mxu0 %v3557
        %v4339 = vpop.f32.mrb[0].mxu0
        %v4340 = vadd.f32 %v4243, %v4339
        %v4341 = vpop.f32.mrb[0].mxu0
        %v4342 = vpop.f32.mrb[0].mxu0
        %v4343 = vadd.f32 %v4246, %v4342
        %v4344 = vpop.f32.mrb[0].mxu0
        %4345 = vmatprep.mubr.bf16.mxu0 %v3567
        %4346 = vmatmul.mubr.bf16.gmra.mrb[0].mxu0 %v3566
        %v4347 = vpop.f32.mrb[0].mxu0
        %v4348 = vadd.f32 %v4251, %v4347
        %v4349 = vpop.f32.mrb[0].mxu0
        %v4350 = vpop.f32.mrb[0].mxu0
        %v4351 = vadd.f32 %v4254, %v4350
        %v4352 = vpop.f32.mrb[0].mxu0
        %4353 = vmatprep.mubr.bf16.mxu0 %v3576
        %4354 = vmatmul.mubr.bf16.gmra.mrb[0].mxu0 %v3575
        %v4355 = vpop.f32.mrb[0].mxu0
        %v4356 = vadd.f32 %v4259, %v4355
        %v4357 = vpop.f32.mrb[0].mxu0
        %v4358 = vpop.f32.mrb[0].mxu0
        %v4359 = vadd.f32 %v4262, %v4358
        %v4360 = vpop.f32.mrb[0].mxu0
        %4361 = vmatprep.mubr.bf16.mxu0 %v3585
        %4362 = vmatmul.mubr.bf16.gmra.mrb[0].mxu0 %v3584
        %v4363 = vpop.f32.mrb[0].mxu0
        %v4364 = vadd.f32 %v4267, %v4363
        %v4365 = vpop.f32.mrb[0].mxu0
        %v4366 = vpop.f32.mrb[0].mxu0
        %v4367 = vadd.f32 %v4270, %v4366
        %v4368 = vpop.f32.mrb[0].mxu0
        %4369 = vmatprep.mubr.bf16.mxu0 %v3594
        %4370 = vmatmul.mubr.bf16.gmra.mrb[0].mxu0 %v3593
        %v4371 = vpop.f32.mrb[0].mxu0
        %v4372 = vadd.f32 %v4275, %v4371
        %v4373 = vpop.f32.mrb[0].mxu0
        %v4374 = vpop.f32.mrb[0].mxu0
        %v4375 = vadd.f32 %v4278, %v4374
        %v4376 = vpop.f32.mrb[0].mxu0
        %4377 = vmatprep.mubr.bf16.mxu0 %v3603
        %4378 = vmatmul.mubr.bf16.gmra.mrb[0].mxu0 %v3602
        %v4379 = vpop.f32.mrb[0].mxu0
        %v4380 = vadd.f32 %v4283, %v4379
        %v4381 = vpop.f32.mrb[0].mxu0
        %v4382 = vpop.f32.mrb[0].mxu0
        %v4383 = vadd.f32 %v4286, %v4382
        %v4384 = vpop.f32.mrb[0].mxu0
        %4385 = vdwg.mxu0
        %4386 = vmatprep.subr.bf16.mxu0 0
        %4387 = vmatpush1.bf16.msra.mxu0 %v4080
        %4388 = vmatprep.subr.bf16.mxu0 0
        %4389 = vmatpush1.bf16.msra.mxu0 %v4081
        %4390 = vmatprep.subr.bf16.mxu0 0
        %4391 = vmatpush1.bf16.msra.mxu0 %v4082
        %4392 = vmatprep.subr.bf16.mxu0 0
        %4393 = vmatpush1.bf16.msra.mxu0 %v4083
        %4394 = vmatprep.subr.bf16.mxu0 0
        %4395 = vmatpush1.bf16.msra.mxu0 %v4084
        %4396 = vmatprep.subr.bf16.mxu0 0
        %4397 = vmatpush1.bf16.msra.mxu0 %v4085
        %4398 = vmatprep.subr.bf16.mxu0 0
        %4399 = vmatpush1.bf16.msra.mxu0 %v4086
        %4400 = vmatprep.subr.bf16.mxu0 0
        %4401 = vmatpush1.bf16.msra.mxu0 %v4087
        %4402 = vmatprep.subr.bf16.mxu0 0
        %4403 = vmatpush1.bf16.msra.mxu0 %v4088
        %4404 = vmatprep.subr.bf16.mxu0 0
        %4405 = vmatpush1.bf16.msra.mxu0 %v4089
        %4406 = vmatprep.subr.bf16.mxu0 0
        %4407 = vmatpush1.bf16.msra.mxu0 %v4090
        %4408 = vmatprep.subr.bf16.mxu0 0
        %4409 = vmatpush1.bf16.msra.mxu0 %v4091
        %4410 = vmatprep.subr.bf16.mxu0 0
        %4411 = vmatpush1.bf16.msra.mxu0 %v4092
        %4412 = vmatprep.subr.bf16.mxu0 0
        %4413 = vmatpush1.bf16.msra.mxu0 %v4093
        %4414 = vmatprep.subr.bf16.mxu0 0
        %4415 = vmatpush1.bf16.msra.mxu0 %v4094
        %4416 = vmatprep.subr.bf16.mxu0 0
        %4417 = vmatpush1.bf16.msra.mxu0 %v4095
        %4418 = vmatprep.mubr.bf16.mxu0 %v3542
        %4419 = vmatmul.mubr.bf16.gmra.mrb[0].mxu0 %v3541
        %v4420 = vpop.f32.mrb[0].mxu0
        %v4421 = vadd.f32 %v4324, %v4420
        %v4422 = vpop.f32.mrb[0].mxu0
        %v4423 = vpop.f32.mrb[0].mxu0
        %v4424 = vadd.f32 %v4327, %v4423
        %v4425 = vpop.f32.mrb[0].mxu0
        %4426 = vmatprep.mubr.bf16.mxu0 %v3551
        %4427 = vmatmul.mubr.bf16.gmra.mrb[0].mxu0 %v3550
        %v4428 = vpop.f32.mrb[0].mxu0
        %v4429 = vadd.f32 %v4332, %v4428
        %v4430 = vpop.f32.mrb[0].mxu0
        %v4431 = vpop.f32.mrb[0].mxu0
        %v4432 = vadd.f32 %v4335, %v4431
        %v4433 = vpop.f32.mrb[0].mxu0
        %4434 = vmatprep.mubr.bf16.mxu0 %v3560
        %4435 = vmatmul.mubr.bf16.gmra.mrb[0].mxu0 %v3559
        %v4436 = vpop.f32.mrb[0].mxu0
        %v4437 = vadd.f32 %v4340, %v4436
        %v4438 = vpop.f32.mrb[0].mxu0
        %v4439 = vpop.f32.mrb[0].mxu0
        %v4440 = vadd.f32 %v4343, %v4439
        %v4441 = vpop.f32.mrb[0].mxu0
        %4442 = vmatprep.mubr.bf16.mxu0 %v3569
        %4443 = vmatmul.mubr.bf16.gmra.mrb[0].mxu0 %v3568
        %v4444 = vpop.f32.mrb[0].mxu0
        %v4445 = vadd.f32 %v4348, %v4444
        %v4446 = vpop.f32.mrb[0].mxu0
        %v4447 = vpop.f32.mrb[0].mxu0
        %v4448 = vadd.f32 %v4351, %v4447
        %v4449 = vpop.f32.mrb[0].mxu0
        %4450 = vmatprep.mubr.bf16.mxu0 %v3578
        %4451 = vmatmul.mubr.bf16.gmra.mrb[0].mxu0 %v3577
        %v4452 = vpop.f32.mrb[0].mxu0
        %v4453 = vadd.f32 %v4356, %v4452
        %v4454 = vpop.f32.mrb[0].mxu0
        %v4455 = vpop.f32.mrb[0].mxu0
        %v4456 = vadd.f32 %v4359, %v4455
        %v4457 = vpop.f32.mrb[0].mxu0
        %4458 = vmatprep.mubr.bf16.mxu0 %v3587
        %4459 = vmatmul.mubr.bf16.gmra.mrb[0].mxu0 %v3586
        %v4460 = vpop.f32.mrb[0].mxu0
        %v4461 = vadd.f32 %v4364, %v4460
        %v4462 = vpop.f32.mrb[0].mxu0
        %v4463 = vpop.f32.mrb[0].mxu0
        %v4464 = vadd.f32 %v4367, %v4463
        %v4465 = vpop.f32.mrb[0].mxu0
        %4466 = vmatprep.mubr.bf16.mxu0 %v3596
        %4467 = vmatmul.mubr.bf16.gmra.mrb[0].mxu0 %v3595
        %v4468 = vpop.f32.mrb[0].mxu0
        %v4469 = vadd.f32 %v4372, %v4468
        %v4470 = vpop.f32.mrb[0].mxu0
        %v4471 = vpop.f32.mrb[0].mxu0
        %v4472 = vadd.f32 %v4375, %v4471
        %v4473 = vpop.f32.mrb[0].mxu0
        %4474 = vmatprep.mubr.bf16.mxu0 %v3605
        %4475 = vmatmul.mubr.bf16.gmra.mrb[0].mxu0 %v3604
        %v4476 = vpop.f32.mrb[0].mxu0
        %v4477 = vadd.f32 %v4380, %v4476
        %v4478 = vpop.f32.mrb[0].mxu0
        %v4479 = vpop.f32.mrb[0].mxu0
        %v4480 = vadd.f32 %v4383, %v4479
        %v4481 = vpop.f32.mrb[0].mxu0
        %4482 = vdwg.mxu0
        %4483 = vmatprep.subr.bf16.mxu0 0
        %4484 = vmatpush1.bf16.msra.mxu0 %v4096
        %4485 = vmatprep.subr.bf16.mxu0 0
        %4486 = vmatpush1.bf16.msra.mxu0 %v4097
        %4487 = vmatprep.subr.bf16.mxu0 0
        %4488 = vmatpush1.bf16.msra.mxu0 %v4098
        %4489 = vmatprep.subr.bf16.mxu0 0
        %4490 = vmatpush1.bf16.msra.mxu0 %v4099
        %4491 = vmatprep.subr.bf16.mxu0 0
        %4492 = vmatpush1.bf16.msra.mxu0 %v4100
        %4493 = vmatprep.subr.bf16.mxu0 0
        %4494 = vmatpush1.bf16.msra.mxu0 %v4101
        %4495 = vmatprep.subr.bf16.mxu0 0
        %4496 = vmatpush1.bf16.msra.mxu0 %v4102
        %4497 = vmatprep.subr.bf16.mxu0 0
        %4498 = vmatpush1.bf16.msra.mxu0 %v4103
        %4499 = vmatprep.subr.bf16.mxu0 0
        %4500 = vmatpush1.bf16.msra.mxu0 %v4104
        %4501 = vmatprep.subr.bf16.mxu0 0
        %4502 = vmatpush1.bf16.msra.mxu0 %v4105
        %4503 = vmatprep.subr.bf16.mxu0 0
        %4504 = vmatpush1.bf16.msra.mxu0 %v4106
        %4505 = vmatprep.subr.bf16.mxu0 0
        %4506 = vmatpush1.bf16.msra.mxu0 %v4107
        %4507 = vmatprep.subr.bf16.mxu0 0
        %4508 = vmatpush1.bf16.msra.mxu0 %v4108
        %4509 = vmatprep.subr.bf16.mxu0 0
        %4510 = vmatpush1.bf16.msra.mxu0 %v4109
        %4511 = vmatprep.subr.bf16.mxu0 0
        %4512 = vmatpush1.bf16.msra.mxu0 %v4110
        %4513 = vmatprep.subr.bf16.mxu0 0
        %4514 = vmatpush1.bf16.msra.mxu0 %v4111
        %4515 = vmatprep.mubr.bf16.mxu0 %v3544
        %4516 = vmatmul.mubr.bf16.gmra.mrb[0].mxu0 %v3543
        %v4517 = vpop.f32.mrb[0].mxu0
        %v4518 = vadd.f32 %v4421, %v4517
        %v4519 = vpop.f32.mrb[0].mxu0
        %v4520 = vpop.f32.mrb[0].mxu0
        %v4521 = vadd.f32 %v4424, %v4520
        %v4522 = vpop.f32.mrb[0].mxu0
        %4523 = vmatprep.mubr.bf16.mxu0 %v3553
        %4524 = vmatmul.mubr.bf16.gmra.mrb[0].mxu0 %v3552
        %v4525 = vpop.f32.mrb[0].mxu0
        %v4526 = vadd.f32 %v4429, %v4525
        %v4527 = vpop.f32.mrb[0].mxu0
        %v4528 = vpop.f32.mrb[0].mxu0
        %v4529 = vadd.f32 %v4432, %v4528
        %v4530 = vpop.f32.mrb[0].mxu0
        %4531 = vmatprep.mubr.bf16.mxu0 %v3562
        %4532 = vmatmul.mubr.bf16.gmra.mrb[0].mxu0 %v3561
        %v4533 = vpop.f32.mrb[0].mxu0
        %v4534 = vadd.f32 %v4437, %v4533
        %v4535 = vpop.f32.mrb[0].mxu0
        %v4536 = vpop.f32.mrb[0].mxu0
        %v4537 = vadd.f32 %v4440, %v4536
        %v4538 = vpop.f32.mrb[0].mxu0
        %4539 = vmatprep.mubr.bf16.mxu0 %v3571
        %4540 = vmatmul.mubr.bf16.gmra.mrb[0].mxu0 %v3570
        %v4541 = vpop.f32.mrb[0].mxu0
        %v4542 = vadd.f32 %v4445, %v4541
        %v4543 = vpop.f32.mrb[0].mxu0
        %v4544 = vpop.f32.mrb[0].mxu0
        %v4545 = vadd.f32 %v4448, %v4544
        %v4546 = vpop.f32.mrb[0].mxu0
        %4547 = vmatprep.mubr.bf16.mxu0 %v3580
        %4548 = vmatmul.mubr.bf16.gmra.mrb[0].mxu0 %v3579
        %v4549 = vpop.f32.mrb[0].mxu0
        %v4550 = vadd.f32 %v4453, %v4549
        %v4551 = vpop.f32.mrb[0].mxu0
        %v4552 = vpop.f32.mrb[0].mxu0
        %v4553 = vadd.f32 %v4456, %v4552
        %v4554 = vpop.f32.mrb[0].mxu0
        %4555 = vmatprep.mubr.bf16.mxu0 %v3589
        %4556 = vmatmul.mubr.bf16.gmra.mrb[0].mxu0 %v3588
        %v4557 = vpop.f32.mrb[0].mxu0
        %v4558 = vadd.f32 %v4461, %v4557
        %v4559 = vpop.f32.mrb[0].mxu0
        %v4560 = vpop.f32.mrb[0].mxu0
        %v4561 = vadd.f32 %v4464, %v4560
        %v4562 = vpop.f32.mrb[0].mxu0
        %4563 = vmatprep.mubr.bf16.mxu0 %v3598
        %4564 = vmatmul.mubr.bf16.gmra.mrb[0].mxu0 %v3597
        %v4565 = vpop.f32.mrb[0].mxu0
        %v4566 = vadd.f32 %v4469, %v4565
        %v4567 = vpop.f32.mrb[0].mxu0
        %v4568 = vpop.f32.mrb[0].mxu0
        %v4569 = vadd.f32 %v4472, %v4568
        %v4570 = vpop.f32.mrb[0].mxu0
        %4571 = vmatprep.mubr.bf16.mxu0 %v3607
        %4572 = vmatmul.mubr.bf16.gmra.mrb[0].mxu0 %v3606
        %v4573 = vpop.f32.mrb[0].mxu0
        %v4574 = vadd.f32 %v4477, %v4573
        %v4575 = vpop.f32.mrb[0].mxu0
        %v4576 = vpop.f32.mrb[0].mxu0
        %v4577 = vadd.f32 %v4480, %v4576
        %v4578 = vpop.f32.mrb[0].mxu0
        %4579 = vdwg.mxu0
        %4580 = vmatprep.subr.bf16.mxu0 0
        %4581 = vmatpush1.bf16.msra.mxu0 %v4112
        %4582 = vmatprep.subr.bf16.mxu0 0
        %4583 = vmatpush1.bf16.msra.mxu0 %v4113
        %4584 = vmatprep.subr.bf16.mxu0 0
        %4585 = vmatpush1.bf16.msra.mxu0 %v4114
        %4586 = vmatprep.subr.bf16.mxu0 0
        %4587 = vmatpush1.bf16.msra.mxu0 %v4115
        %4588 = vmatprep.subr.bf16.mxu0 0
        %4589 = vmatpush1.bf16.msra.mxu0 %v4116
        %4590 = vmatprep.subr.bf16.mxu0 0
        %4591 = vmatpush1.bf16.msra.mxu0 %v4117
        %4592 = vmatprep.subr.bf16.mxu0 0
        %4593 = vmatpush1.bf16.msra.mxu0 %v4118
        %4594 = vmatprep.subr.bf16.mxu0 0
        %4595 = vmatpush1.bf16.msra.mxu0 %v4119
        %4596 = vmatprep.subr.bf16.mxu0 0
        %4597 = vmatpush1.bf16.msra.mxu0 0
        %4598 = vmatprep.subr.bf16.mxu0 0
        %4599 = vmatpush1.bf16.msra.mxu0 0
        %4600 = vmatprep.subr.bf16.mxu0 0
        %4601 = vmatpush1.bf16.msra.mxu0 0
        %4602 = vmatprep.subr.bf16.mxu0 0
        %4603 = vmatpush1.bf16.msra.mxu0 0
        %4604 = vmatprep.subr.bf16.mxu0 0
        %4605 = vmatpush1.bf16.msra.mxu0 0
        %4606 = vmatprep.subr.bf16.mxu0 0
        %4607 = vmatpush1.bf16.msra.mxu0 0
        %4608 = vmatprep.subr.bf16.mxu0 0
        %4609 = vmatpush1.bf16.msra.mxu0 0
        %4610 = vmatprep.subr.bf16.mxu0 0
        %4611 = vmatpush1.bf16.msra.mxu0 0
        %4612 = vmatprep.mubr.bf16.mxu0 0
        %4613 = vmatmul.mubr.bf16.gmra.mrb[0].mxu0 %v3545
        %v4614 = vpop.f32.mrb[0].mxu0
        %v4615 = vadd.f32 %v4518, %v4614
        %v4616 = vpop.f32.mrb[0].mxu0
        %v4617 = vpop.f32.mrb[0].mxu0
        %v4618 = vadd.f32 %v4521, %v4617
        %v4619 = vpop.f32.mrb[0].mxu0
        %4620 = vmatprep.mubr.bf16.mxu0 0
        %4621 = vmatmul.mubr.bf16.gmra.mrb[0].mxu0 %v3554
        %v4622 = vpop.f32.mrb[0].mxu0
        %v4623 = vadd.f32 %v4526, %v4622
        %v4624 = vpop.f32.mrb[0].mxu0
        %v4625 = vpop.f32.mrb[0].mxu0
        %v4626 = vadd.f32 %v4529, %v4625
        %v4627 = vpop.f32.mrb[0].mxu0
        %4628 = vmatprep.mubr.bf16.mxu0 0
        %4629 = vmatmul.mubr.bf16.gmra.mrb[0].mxu0 %v3563
        %v4630 = vpop.f32.mrb[0].mxu0
        %v4631 = vadd.f32 %v4534, %v4630
        %v4632 = vpop.f32.mrb[0].mxu0
        %v4633 = vpop.f32.mrb[0].mxu0
        %v4634 = vadd.f32 %v4537, %v4633
        %v4635 = vpop.f32.mrb[0].mxu0
        %4636 = vmatprep.mubr.bf16.mxu0 0
        %4637 = vmatmul.mubr.bf16.gmra.mrb[0].mxu0 %v3572
        %v4638 = vpop.f32.mrb[0].mxu0
        %v4639 = vadd.f32 %v4542, %v4638
        %v4640 = vpop.f32.mrb[0].mxu0
        %v4641 = vpop.f32.mrb[0].mxu0
        %v4642 = vadd.f32 %v4545, %v4641
        %v4643 = vpop.f32.mrb[0].mxu0
        %4644 = vmatprep.mubr.bf16.mxu0 0
        %4645 = vmatmul.mubr.bf16.gmra.mrb[0].mxu0 %v3581
        %v4646 = vpop.f32.mrb[0].mxu0
        %v4647 = vadd.f32 %v4550, %v4646
        %v4648 = vpop.f32.mrb[0].mxu0
        %v4649 = vpop.f32.mrb[0].mxu0
        %v4650 = vadd.f32 %v4553, %v4649
        %v4651 = vpop.f32.mrb[0].mxu0
        %4652 = vmatprep.mubr.bf16.mxu0 0
        %4653 = vmatmul.mubr.bf16.gmra.mrb[0].mxu0 %v3590
        %v4654 = vpop.f32.mrb[0].mxu0
        %v4655 = vadd.f32 %v4558, %v4654
        %v4656 = vpop.f32.mrb[0].mxu0
        %v4657 = vpop.f32.mrb[0].mxu0
        %v4658 = vadd.f32 %v4561, %v4657
        %v4659 = vpop.f32.mrb[0].mxu0
        %4660 = vmatprep.mubr.bf16.mxu0 0
        %4661 = vmatmul.mubr.bf16.gmra.mrb[0].mxu0 %v3599
        %v4662 = vpop.f32.mrb[0].mxu0
        %v4663 = vadd.f32 %v4566, %v4662
        %v4664 = vpop.f32.mrb[0].mxu0
        %v4665 = vpop.f32.mrb[0].mxu0
        %v4666 = vadd.f32 %v4569, %v4665
        %v4667 = vpop.f32.mrb[0].mxu0
        %4668 = vmatprep.mubr.bf16.mxu0 0
        %4669 = vmatmul.mubr.bf16.gmra.mrb[0].mxu0 %v3608
        %v4670 = vpop.f32.mrb[0].mxu0
        %v4671 = vadd.f32 %v4574, %v4670
        %v4672 = vpop.f32.mrb[0].mxu0
        %v4673 = vpop.f32.mrb[0].mxu0
        %v4674 = vadd.f32 %v4577, %v4673
        %v4675 = vpop.f32.mrb[0].mxu0
        %4676 = vdwg.mxu0
        %v4677 = vadd.f32 %v4615, %v4618
        %v4678 = vadd.f32 %v4677, %v4623
        %v4679 = vadd.f32 %v4678, %v4626
        %v4680 = vadd.f32 %v4679, %v4631
        %v4681 = vadd.f32 %v4680, %v4634
        %v4682 = vadd.f32 %v4681, %v4639
        %v4683 = vadd.f32 %v4682, %v4642
        %v4684 = vrot.slane %v4683, 4
        %v4685 = vadd.f32 %v4683, %v4684
        %v4686 = vrot.slane %v4685, 2
        %v4687 = vadd.f32 %v4685, %v4686
        %v4688 = vrot.slane %v4687, 1
        %v4689 = vadd.f32 %v4687, %v4688
        %v4690 = vadd.f32 %v4647, %v4650
        %v4691 = vadd.f32 %v4690, %v4655
        %v4692 = vadd.f32 %v4691, %v4658
        %v4693 = vadd.f32 %v4692, %v4663
        %v4694 = vadd.f32 %v4693, %v4666
        %v4695 = vadd.f32 %v4694, %v4671
        %v4696 = vadd.f32 %v4695, %v4674
        %v4697 = vrot.slane %v4696, 4
        %v4698 = vadd.f32 %v4696, %v4697
        %v4699 = vrot.slane %v4698, 2
        %v4700 = vadd.f32 %v4698, %v4699
        %v4701 = vrot.slane %v4700, 1
        %v4702 = vadd.f32 %v4700, %v4701
        %v4703 = vrcp.pop 64.0
        %v4704 = vmul.f32 %v4689, %v4703
        %v4705 = vmul.f32 %v4702, %v4703
        %v4706 = vld [vmem:[#allocation10] sm:$0xff]
        %v4707 = vld [vmem:[#allocation10 + $0x8] sm:$0xff]
        %v4708 = vld [vmem:[#allocation10 + $0x10] sm:$0xff]
        %v4709 = vld [vmem:[#allocation10 + $0x18] sm:$0xff]
        %v4710 = vld [vmem:[#allocation10 + $0x20] sm:$0xff]
        %v4711 = vld [vmem:[#allocation10 + $0x28] sm:$0xff]
        %v4712 = vld [vmem:[#allocation10 + $0x30] sm:$0xff]
        %v4713 = vld [vmem:[#allocation10 + $0x38] sm:$0xff]
        %v4714 = vld [vmem:[#allocation10 + $0x40] sm:$0xff]
        %v4715 = vld [vmem:[#allocation10 + $0x48] sm:$0xff]
        %v4716 = vld [vmem:[#allocation10 + $0x50] sm:$0xff]
        %v4717 = vld [vmem:[#allocation10 + $0x58] sm:$0xff]
        %v4718 = vld [vmem:[#allocation10 + $0x60] sm:$0xff]
        %v4719 = vld [vmem:[#allocation10 + $0x68] sm:$0xff]
        %v4720 = vld [vmem:[#allocation10 + $0x70] sm:$0xff]
        %v4721 = vld [vmem:[#allocation10 + $0x78] sm:$0xff]
        %vm4724 = vcmask 1041409
        %v4725 = vsel %vm4724, %v4705, %v4704
        %4727 = vmatprep.subr.mxu0 0.0
        %4728 = vmatpush1.msra.mxu0 %v4706
        %4729 = vmatprep.subr.mxu0 0.0
        %4730 = vmatpush1.msra.mxu0 %v4707
        %4731 = vmatprep.subr.mxu0 0.0
        %4732 = vmatpush1.msra.mxu0 %v4708
        %4733 = vmatprep.subr.mxu0 0.0
        %4734 = vmatpush1.msra.mxu0 %v4709
        %4735 = vmatprep.subr.mxu0 0.0
        %4736 = vmatpush1.msra.mxu0 %v4710
        %4737 = vmatprep.subr.mxu0 0.0
        %4738 = vmatpush1.msra.mxu0 %v4711
        %4739 = vmatprep.subr.mxu0 0.0
        %4740 = vmatpush1.msra.mxu0 %v4712
        %4741 = vmatprep.subr.mxu0 0.0
        %4742 = vmatpush1.msra.mxu0 %v4713
        %4743 = vmatprep.subr.mxu0 0.0
        %4744 = vmatpush1.msra.mxu0 %v4714
        %4745 = vmatprep.subr.mxu0 0.0
        %4746 = vmatpush1.msra.mxu0 %v4715
        %4747 = vmatprep.subr.mxu0 0.0
        %4748 = vmatpush1.msra.mxu0 %v4716
        %4749 = vmatprep.subr.mxu0 0.0
        %4750 = vmatpush1.msra.mxu0 %v4717
        %4751 = vmatprep.subr.mxu0 0.0
        %4752 = vmatpush1.msra.mxu0 %v4718
        %4753 = vmatprep.subr.mxu0 0.0
        %4754 = vmatpush1.msra.mxu0 %v4719
        %4755 = vmatprep.subr.mxu0 0.0
        %4756 = vmatpush1.msra.mxu0 %v4720
        %4757 = vmatprep.subr.mxu0 0.0
        %4758 = vmatpush1.msra.mxu0 %v4721
        %4759 = vmatprep.subr.mxu0 0.0
        %4760 = vmatpush1.msra.mxu0 0.0
        %4761 = vmatprep.subr.mxu0 0.0
        %4762 = vmatpush1.msra.mxu0 0.0
        %4763 = vmatprep.subr.mxu0 0.0
        %4764 = vmatpush1.msra.mxu0 0.0
        %4765 = vmatprep.subr.mxu0 0.0
        %4766 = vmatpush1.msra.mxu0 0.0
        %4767 = vmatprep.subr.mxu0 0.0
        %4768 = vmatpush1.msra.mxu0 0.0
        %4769 = vmatprep.subr.mxu0 0.0
        %4770 = vmatpush1.msra.mxu0 0.0
        %4771 = vmatprep.subr.mxu0 0.0
        %4772 = vmatpush1.msra.mxu0 0.0
        %4773 = vmatprep.subr.mxu0 0.0
        %4774 = vmatpush1.msra.mxu0 0.0
        %4775 = vmatprep.subr.mxu0 0.0
        %4776 = vmatpush1.msra.mxu0 0.0
        %4777 = vmatprep.subr.mxu0 0.0
        %4778 = vmatpush1.msra.mxu0 0.0
        %4779 = vmatprep.subr.mxu0 0.0
        %4780 = vmatpush1.msra.mxu0 0.0
        %4781 = vmatprep.subr.mxu0 0.0
        %4782 = vmatpush1.msra.mxu0 0.0
        %4783 = vmatprep.subr.mxu0 0.0
        %4784 = vmatpush1.msra.mxu0 0.0
        %4785 = vmatprep.subr.mxu0 0.0
        %4786 = vmatpush1.msra.mxu0 0.0
        %4787 = vmatprep.subr.mxu0 0.0
        %4788 = vmatpush1.msra.mxu0 0.0
        %4789 = vmatprep.subr.mxu0 0.0
        %4790 = vmatpush1.msra.mxu0 0.0
        %4791 = vmatprep.mubr.f32.mxu0 0.0
        %4792 = vmatmul.mubr.f32.gmra.mrb[0].mxu0 %v4725
        %v4793 = vpop.f32.mrb[0].mxu0
        %v4794 = vadd.f32 0.0, %v4793
        %v4795 = vpop.f32.mrb[0].mxu0
        %4796 = vdwg.mxu0
        %v4797 = vmax.f32 %v4794, 0.0
        %v4798 = vld [vmem:[#allocation12] sm:$0xff]
        %v4799 = vld [vmem:[#allocation12 + $0x8] sm:$0xff]
        %v4800 = vld [vmem:[#allocation12 + $0x10] sm:$0xff]
        %v4801 = vld [vmem:[#allocation12 + $0x18] sm:$0xff]
        %v4802 = vld [vmem:[#allocation12 + $0x20] sm:$0xff]
        %v4803 = vld [vmem:[#allocation12 + $0x28] sm:$0xff]
        %v4804 = vld [vmem:[#allocation12 + $0x30] sm:$0xff]
        %v4805 = vld [vmem:[#allocation12 + $0x38] sm:$0xff]
        %v4806 = vld [vmem:[#allocation12 + $0x40] sm:$0xff]
        %v4807 = vld [vmem:[#allocation12 + $0x48] sm:$0xff]
        %v4808 = vld [vmem:[#allocation12 + $0x50] sm:$0xff]
        %v4809 = vld [vmem:[#allocation12 + $0x58] sm:$0xff]
        %v4810 = vld [vmem:[#allocation12 + $0x60] sm:$0xff]
        %v4811 = vld [vmem:[#allocation12 + $0x68] sm:$0xff]
        %v4812 = vld [vmem:[#allocation12 + $0x70] sm:$0xff]
        %v4813 = vld [vmem:[#allocation12 + $0x78] sm:$0xff]
        %4814 = vmatprep.subr.mxu0 0.0
        %4815 = vmatpush1.msra.mxu0 %v4798
        %4816 = vmatprep.subr.mxu0 0.0
        %4817 = vmatpush1.msra.mxu0 %v4799
        %4818 = vmatprep.subr.mxu0 0.0
        %4819 = vmatpush1.msra.mxu0 %v4800
        %4820 = vmatprep.subr.mxu0 0.0
        %4821 = vmatpush1.msra.mxu0 %v4801
        %4822 = vmatprep.subr.mxu0 0.0
        %4823 = vmatpush1.msra.mxu0 %v4802
        %4824 = vmatprep.subr.mxu0 0.0
        %4825 = vmatpush1.msra.mxu0 %v4803
        %4826 = vmatprep.subr.mxu0 0.0
        %4827 = vmatpush1.msra.mxu0 %v4804
        %4828 = vmatprep.subr.mxu0 0.0
        %4829 = vmatpush1.msra.mxu0 %v4805
        %4830 = vmatprep.subr.mxu0 0.0
        %4831 = vmatpush1.msra.mxu0 %v4806
        %4832 = vmatprep.subr.mxu0 0.0
        %4833 = vmatpush1.msra.mxu0 %v4807
        %4834 = vmatprep.subr.mxu0 0.0
        %4835 = vmatpush1.msra.mxu0 %v4808
        %4836 = vmatprep.subr.mxu0 0.0
        %4837 = vmatpush1.msra.mxu0 %v4809
        %4838 = vmatprep.subr.mxu0 0.0
        %4839 = vmatpush1.msra.mxu0 %v4810
        %4840 = vmatprep.subr.mxu0 0.0
        %4841 = vmatpush1.msra.mxu0 %v4811
        %4842 = vmatprep.subr.mxu0 0.0
        %4843 = vmatpush1.msra.mxu0 %v4812
        %4844 = vmatprep.subr.mxu0 0.0
        %4845 = vmatpush1.msra.mxu0 %v4813
        %4846 = vmatprep.subr.mxu0 0.0
        %4847 = vmatpush1.msra.mxu0 0.0
        %4848 = vmatprep.subr.mxu0 0.0
        %4849 = vmatpush1.msra.mxu0 0.0
        %4850 = vmatprep.subr.mxu0 0.0
        %4851 = vmatpush1.msra.mxu0 0.0
        %4852 = vmatprep.subr.mxu0 0.0
        %4853 = vmatpush1.msra.mxu0 0.0
        %4854 = vmatprep.subr.mxu0 0.0
        %4855 = vmatpush1.msra.mxu0 0.0
        %4856 = vmatprep.subr.mxu0 0.0
        %4857 = vmatpush1.msra.mxu0 0.0
        %4858 = vmatprep.subr.mxu0 0.0
        %4859 = vmatpush1.msra.mxu0 0.0
        %4860 = vmatprep.subr.mxu0 0.0
        %4861 = vmatpush1.msra.mxu0 0.0
        %4862 = vmatprep.subr.mxu0 0.0
        %4863 = vmatpush1.msra.mxu0 0.0
        %4864 = vmatprep.subr.mxu0 0.0
        %4865 = vmatpush1.msra.mxu0 0.0
        %4866 = vmatprep.subr.mxu0 0.0
        %4867 = vmatpush1.msra.mxu0 0.0
        %4868 = vmatprep.subr.mxu0 0.0
        %4869 = vmatpush1.msra.mxu0 0.0
        %4870 = vmatprep.subr.mxu0 0.0
        %4871 = vmatpush1.msra.mxu0 0.0
        %4872 = vmatprep.subr.mxu0 0.0
        %4873 = vmatpush1.msra.mxu0 0.0
        %4874 = vmatprep.subr.mxu0 0.0
        %4875 = vmatpush1.msra.mxu0 0.0
        %4876 = vmatprep.subr.mxu0 0.0
        %4877 = vmatpush1.msra.mxu0 0.0
        %4878 = vmatprep.mubr.f32.mxu0 0.0
        %4879 = vmatmul.mubr.f32.gmra.mrb[0].mxu0 %v4797
        %v4880 = vpop.f32.mrb[0].mxu0
        %v4881 = vadd.f32 0.0, %v4880
        %v4882 = vpop.f32.mrb[0].mxu0
        %4883 = vdwg.mxu0
        %v4884 = vxor.u32 %v4881, 2147483648
        %v4885 = vmul.f32 %v4884, 1.442695
        %v4886 = vpow.pop %v4885
        %v4887 = vadd.f32 %v4886, 1.0
        %v4888 = vrcp.pop %v4887
        %v4889 = vmul.f32 1.0, %v4888
        %v4892 = vunpack.c.l.s4 1966171168
        %v4893 = vunpack.c.0.s8 %v4892
        %v4894 = vlaneseq
        %v4895 = vshrl.u32 %v4894, 7
        %v4896 = vsub.s32 %v4893, %v4895
        %v4897 = vrot.slane %v4889, %v4896
        %v4898 = vcombine.high %v4897, %v4897
        %v4900 = vunpack.c.l.s4 1966171168
        %v4901 = vunpack.c.0.s8 %v4900
        %v4902 = vlaneseq
        %v4903 = vshrl.u32 %v4902, 7
        %v4904 = vsub.s32 %v4901, %v4903
        %v4905 = vrot.slane %v4897, %v4904
        %v4907 = vunpack.c.l.s4 1966171168
        %v4908 = vunpack.c.0.s8 %v4907
        %v4909 = vlaneseq
        %v4910 = vshrl.u32 %v4909, 7
        %v4911 = vsub.s32 %v4908, %v4910
        %v4912 = vrot.slane %v4898, %v4911
        %v4913 = vlaneseq
        %v4914 = vshrl.u32 %v4913, 7
        %v4915 = vsub.s32 0, %v4914
        %v4916 = vrot.slane %v4905, %v4915
        %v4917 = vlaneseq
        %v4918 = vshrl.u32 %v4917, 7
        %v4919 = vsub.s32 0, %v4918
        %v4920 = vrot.slane %v4912, %v4919
        %v4923 = vmul.f32 %v4615, %v4916
        %v4924 = vmul.f32 %v4618, %v4916
        %v4925 = vmul.f32 %v4623, %v4916
        %v4926 = vmul.f32 %v4626, %v4916
        %v4927 = vmul.f32 %v4631, %v4916
        %v4928 = vmul.f32 %v4634, %v4916
        %v4929 = vmul.f32 %v4639, %v4916
        %v4930 = vmul.f32 %v4642, %v4916
        %v4931 = vmul.f32 %v4647, %v4920
        %v4932 = vmul.f32 %v4650, %v4920
        %v4933 = vmul.f32 %v4655, %v4920
        %v4934 = vmul.f32 %v4658, %v4920
        %v4935 = vmul.f32 %v4663, %v4920
        %v4936 = vmul.f32 %v4666, %v4920
        %v4937 = vmul.f32 %v4671, %v4920
        %v4938 = vmul.f32 %v4674, %v4920
        %v4939 = vld [vmem:[%s309] sm:$0xff]
        %v4940 = vld [vmem:[%s309 + $0x8] sm:$0xff]
        %v4941 = vld [vmem:[%s309 + $0x10] sm:$0xff]
        %v4942 = vld [vmem:[%s309 + $0x18] sm:$0xff]
        %v4943 = vld [vmem:[%s309 + $0x20] sm:$0xff]
        %v4944 = vld [vmem:[%s309 + $0x28] sm:$0xff]
        %v4945 = vld [vmem:[%s309 + $0x30] sm:$0xff]
        %v4946 = vld [vmem:[%s309 + $0x38] sm:$0xff]
        %v4947 = vld [vmem:[%s309 + $0x40] sm:$0xff]
        %v4948 = vld [vmem:[%s309 + $0x48] sm:$0xff]
        %v4949 = vld [vmem:[%s309 + $0x50] sm:$0xff]
        %v4950 = vld [vmem:[%s309 + $0x58] sm:$0xff]
        %v4951 = vld [vmem:[%s309 + $0x60] sm:$0xff]
        %v4952 = vld [vmem:[%s309 + $0x68] sm:$0xff]
        %v4953 = vld [vmem:[%s309 + $0x70] sm:$0xff]
        %v4954 = vld [vmem:[%s309 + $0x78] sm:$0xff]
        %v4955 = vadd.f32 %v4923, %v4939
        %v4956 = vadd.f32 %v4924, %v4940
        %v4957 = vadd.f32 %v4925, %v4941
        %v4958 = vadd.f32 %v4926, %v4942
        %v4959 = vadd.f32 %v4927, %v4943
        %v4960 = vadd.f32 %v4928, %v4944
        %v4961 = vadd.f32 %v4929, %v4945
        %v4962 = vadd.f32 %v4930, %v4946
        %v4963 = vadd.f32 %v4931, %v4947
        %v4964 = vadd.f32 %v4932, %v4948
        %v4965 = vadd.f32 %v4933, %v4949
        %v4966 = vadd.f32 %v4934, %v4950
        %v4967 = vadd.f32 %v4935, %v4951
        %v4968 = vadd.f32 %v4936, %v4952
        %v4969 = vadd.f32 %v4937, %v4953
        %v4970 = vadd.f32 %v4938, %v4954
        %v4971 = vmax.f32 %v4955, 0.0
        %v4972 = vmax.f32 %v4956, 0.0
        %v4973 = vmax.f32 %v4957, 0.0
        %v4974 = vmax.f32 %v4958, 0.0
        %v4975 = vmax.f32 %v4959, 0.0
        %v4976 = vmax.f32 %v4960, 0.0
        %v4977 = vmax.f32 %v4961, 0.0
        %v4978 = vmax.f32 %v4962, 0.0
        %v4979 = vmax.f32 %v4963, 0.0
        %v4980 = vmax.f32 %v4964, 0.0
        %v4981 = vmax.f32 %v4965, 0.0
        %v4982 = vmax.f32 %v4966, 0.0
        %v4983 = vmax.f32 %v4967, 0.0
        %v4984 = vmax.f32 %v4968, 0.0
        %v4985 = vmax.f32 %v4969, 0.0
        %v4986 = vmax.f32 %v4970, 0.0
        %4987 = vst [vmem:[%s355] sm:$0xff] %v4971
        %4988 = vst [vmem:[%s355 + $0x8] sm:$0xff] %v4972
        %4989 = vst [vmem:[%s355 + $0x10] sm:$0xff] %v4973
        %4990 = vst [vmem:[%s355 + $0x18] sm:$0xff] %v4974
        %4991 = vst [vmem:[%s355 + $0x20] sm:$0xff] %v4975
        %4992 = vst [vmem:[%s355 + $0x28] sm:$0xff] %v4976
        %4993 = vst [vmem:[%s355 + $0x30] sm:$0xff] %v4977
        %4994 = vst [vmem:[%s355 + $0x38] sm:$0xff] %v4978
        %4995 = vst [vmem:[%s355 + $0x40] sm:$0xff] %v4979
        %4996 = vst [vmem:[%s355 + $0x48] sm:$0xff] %v4980
        %4997 = vst [vmem:[%s355 + $0x50] sm:$0xff] %v4981
        %4998 = vst [vmem:[%s355 + $0x58] sm:$0xff] %v4982
        %4999 = vst [vmem:[%s355 + $0x60] sm:$0xff] %v4983
        %5000 = vst [vmem:[%s355 + $0x68] sm:$0xff] %v4984
        %5001 = vst [vmem:[%s355 + $0x70] sm:$0xff] %v4985
        %5002 = vst [vmem:[%s355 + $0x78] sm:$0xff] %v4986
        %s5003 = sand.u32 %s186, 1
        %s5004 = scalar_lea.sflag [#allocation6], %s5003
        %s5005 = sand.u32 %s186, 1
        %s5006 = smul.addr %s5005, 128
        %s5007 = scalar_lea.vmem [#allocation13], %s5006
        // Predicated region
        $region69: #{tpu_custom_call.1} parent=47 // pred_check
          %p5008 = pneg %p196
        $region70: #{tpu_custom_call.1} parent=47 // pred_check_branch
          %5010 = sbr.rel (%p5008) target = $region72
        $region71: #{tpu_custom_call.1} parent=47 // pred_region
          %s5011 = smul.u32 2, %s26
          %s5013 = ssub.s32 2048, 2048
          %5014 = vsyncadd %s5004, %s5013
          %s5015 = smul.addr %s5011, 8
          %s5016 = smul.addr %s5015, 128
          %s5017 = scalar_lea.hbm %s7, %s5016
          %s5018 = sshll.u32 %s5007, 4
          %s5019 = int_to_ptr.vmem [resolvable:$true] %s5018
          %5024 = dma.vmem_to_hbm [thread:$0]  %s5019, 2048, %s5017, %s5004, 128, 128, 8
        $region72: #{tpu_custom_call.1} parent=47 // pred_fallthru
          _
      $region48: #{tpu_custom_call.1} parent=5 // pred_fallthru
        _
      %p5025 = scmp.le.s32.totalorder 2, %s21
      // Predicated region
      $region73: #{tpu_custom_call.1} parent=5 // pred_check
        %p5026 = pneg %p5025
      $region74: #{tpu_custom_call.1} parent=5 // pred_check_branch
        %5028 = sbr.rel (%p5026) target = $region76
      $region75: #{tpu_custom_call.1} parent=5 // pred_region
        %s5029 = ssub.s32 %s21, 2
        // Predicated region
        $region77: #{tpu_custom_call.1} parent=75 // pred_check
          %p5030 = pneg %p202
        $region78: #{tpu_custom_call.1} parent=75 // pred_check_branch
          %5032 = sbr.rel (%p5030) target = $region80
        $region79: #{tpu_custom_call.1} parent=75 // pred_region
          %s5033 = sand.u32 %s187, 1
          %s5034 = scalar_lea.sflag [#allocation6], %s5033
          %s5035 = sand.u32 %s187, 1
          %s5036 = smul.addr %s5035, 128
          %s5037 = scalar_lea.vmem [#allocation13], %s5036
          %5038 = dma.done %s5034, 2048
        $region80: #{tpu_custom_call.1} parent=75 // pred_fallthru
          _
      $region76: #{tpu_custom_call.1} parent=5 // pred_fallthru
        _
    $region6: #{tpu_custom_call.1} parent=1 // loop_footer
      %s25 = sadd.s32 1, %s21
    $region7: #{tpu_custom_call.1} parent=1 // loop_footer_branch
      %20 = sbr.rel target = $region3
    $region8: #{tpu_custom_call.1} parent=1 // loop_exit
      _
    %5039 = vsyncpa [#allocation5], 1
    %s5040 = scalar_lea.sflag [#allocation5], 1
    %5041 = vsyncpa %s5040, 1
    %5042 = vsyncpa [#allocation8], 1
    %5043 = vsyncpa [#allocation11], 1
    %5044 = vsyncpa [#allocation6], 1
    %s5045 = scalar_lea.sflag [#allocation6], 1
    %5046 = vsyncpa %s5045, 1

</llo_original>
